<compile_context>
chip_gen: v5e
topology: v5e:2x2
jax: 0.10.0
libtpu: 0.0.40
codegen_flags: <defaults>
</compile_context>

<pallas_src>
import jax
import jax.numpy as jnp
from jax.experimental import pallas as pl
from jax.experimental.pallas import tpu as pltpu


# ----------------------------- kernels ----------------------------------------

def _apply_block(x_f32, w1, w2):
    """tt = relu(relu(x@W1)@W2); return x + tt.  bf16 MXU, f32 accumulate."""
    h = jnp.maximum(
        jnp.dot(x_f32.astype(w1.dtype), w1, preferred_element_type=jnp.float32),
        0.0)
    t = jnp.maximum(
        jnp.dot(h.astype(w2.dtype), w2, preferred_element_type=jnp.float32),
        0.0)
    return x_f32 + t


def _res_stack_kernel_resident(x_ref, w1_ref, w2_ref, o_ref, act_ref):
    """Grid = (row_tiles, L).  Whole weight stack VMEM-resident: w*_ref is
    (L, M, M), fetched once (constant index map); activation carried in f32
    VMEM scratch across the (last, sequential) layer axis."""
    l = pl.program_id(1)

    @pl.when(l == 0)
    def _init():
        act_ref[...] = x_ref[...].astype(jnp.float32)

    act_ref[...] = _apply_block(act_ref[...], w1_ref[l], w2_ref[l])

    @pl.when(l == pl.num_programs(1) - 1)
    def _finalize():
        o_ref[...] = act_ref[...].astype(o_ref.dtype)


def _res_stack_kernel_streamed(x_ref, w1_ref, w2_ref, o_ref, act_ref):
    """Fallback for weight stacks too large to keep VMEM-resident: one (M, M)
    weight pair streamed per layer step (leading layer dim squeezed away)."""
    l = pl.program_id(1)

    @pl.when(l == 0)
    def _init():
        act_ref[...] = x_ref[...].astype(jnp.float32)

    act_ref[...] = _apply_block(act_ref[...], w1_ref[...], w2_ref[...])

    @pl.when(l == pl.num_programs(1) - 1)
    def _finalize():
        o_ref[...] = act_ref[...].astype(o_ref.dtype)


# ----------------------------- wrapper ----------------------------------------

def _round_up(a, b):
    return (a + b - 1) // b * b


def _resident_weight_spec(L, M):
    idx = lambda i, l: (0, 0, 0)     # constant index -> fetched once, resident
    try:
        # Single-buffer the resident stack (no point double-buffering a block
        # that never changes; halves weight VMEM, matters on v7x's 64 MiB).
        return pl.BlockSpec((L, M, M), idx, pipeline_mode=pl.Buffered(1))
    except TypeError:
        return pl.BlockSpec((L, M, M), idx)


def residual_stack(x, w1s, w2s, *, row_tile=256):
    """Apply L fused residual blocks: x <- x + relu(relu(x@W1[l])@W2[l])."""
    N, M = x.shape
    L = w1s.shape[0]
    assert w1s.shape == (L, M, M) and w2s.shape == (L, M, M)

    # --- row tiling ------------------------------------------------------------
    # Multiple of 8; keep >= 2 row tiles when N allows (v7x shards the
    # "parallel" row axis over its 2 TensorCores); pad N up to a tile multiple
    # instead of collapsing to a single (N, M) tile.
    tn = max(8, row_tile - row_tile % 8)
    while tn > 128 and pl.cdiv(N, tn) < 2:
        tn //= 2
    tn = max(8, tn - tn % 8)
    if N < tn:
        tn = _round_up(N, 8)
    n_pad = _round_up(N, tn)
    x_in = x if n_pad == N else jnp.pad(x, ((0, n_pad - N), (0, 0)))

    grid = (n_pad // tn, L)

    # --- weight residency decision ---------------------------------------------
    w_itemsize = w1s.dtype.itemsize
    wstack_bytes_2buf = 2 * 2 * L * M * M * w_itemsize   # worst case (double buf)
    resident = wstack_bytes_2buf <= (24 << 20)           # leaves headroom in 32 MiB scoped / v7x 64 MiB

    if resident:
        kernel = _res_stack_kernel_resident
        w1_spec = _resident_weight_spec(L, M)
        w2_spec = _resident_weight_spec(L, M)
        wbytes = wstack_bytes_2buf
    else:
        # TODO(synk): for very large M additionally K-tile the contraction dim
        # instead of streaming full (M, M) weight slabs.
        kernel = _res_stack_kernel_streamed
        w1_spec = pl.BlockSpec((pl.Squeezed(), M, M), lambda i, l: (l, 0, 0))
        w2_spec = pl.BlockSpec((pl.Squeezed(), M, M), lambda i, l: (l, 0, 0))
        wbytes = 2 * 2 * M * M * w_itemsize               # double-buffered pair

    # --- explicit VMEM budget ----------------------------------------------------
    abytes = 2 * 2 * tn * M * x.dtype.itemsize            # x + out, double-buffered
    sbytes = tn * M * 4                                    # f32 activation scratch
    vmem_limit = min(max(wbytes + abytes + sbytes + (8 << 20), 32 << 20), 100 << 20)

    # --- cost estimate for XLA scheduling ---------------------------------------
    flops = 4 * n_pad * M * M * L                          # 2 matmuls * 2*N*M*M per layer
    bytes_accessed = (2 * n_pad * M * x.dtype.itemsize     # read x + write out
                      + 2 * L * M * M * w_itemsize)        # weight stack read once

    out = pl.pallas_call(
        kernel,
        out_shape=jax.ShapeDtypeStruct((n_pad, M), x.dtype),
        grid_spec=pltpu.PrefetchScalarGridSpec(
            num_scalar_prefetch=0,
            grid=grid,
            in_specs=[
                pl.BlockSpec((tn, M), lambda i, l: (i, 0)),   # activation row tile
                w1_spec,
                w2_spec,
            ],
            out_specs=pl.BlockSpec((tn, M), lambda i, l: (i, 0)),
            scratch_shapes=[pltpu.VMEM((tn, M), jnp.float32)],
        ),
        compiler_params=pltpu.CompilerParams(
            # NOTE: the layer axis MUST remain the last grid axis and be
            # "arbitrary" (sequential): the activation is carried in VMEM
            # scratch across it and x/out index maps are constant over l.
            dimension_semantics=("parallel", "arbitrary"),
            vmem_limit_bytes=int(vmem_limit),
        ),
        cost_estimate=pl.CostEstimate(flops=flops, transcendentals=0,
                                      bytes_accessed=bytes_accessed),
        input_output_aliases={0: 0},
    )(x_in, w1s, w2s)

    return out if n_pad == N else out[:N]


class ResidualBlockPallas:
    """JAX/Pallas port of residual_block(nChn): x + relu(relu(x@W1)@W2)."""

    def __init__(self, nChn=512, key=None, dtype=jnp.bfloat16):
        if key is None:
            key = jax.random.PRNGKey(0)
        k1, k2 = jax.random.split(key)
        bound = 1.0 / (nChn ** 0.5)  # PyTorch Linear(no-bias) init U(-1/sqrt(in), 1/sqrt(in))
        self.w1 = jax.random.uniform(
            k1, (nChn, nChn), jnp.float32, -bound, bound).astype(dtype)
        self.w2 = jax.random.uniform(
            k2, (nChn, nChn), jnp.float32, -bound, bound).astype(dtype)

    def __call__(self, x):
        return residual_stack(x, self.w1[None], self.w2[None])


# ----------------------------- reference --------------------------------------

def _reference_stack(x, w1s, w2s):
    """Pure-JAX reference replicating the kernel's precision choices."""
    act = x.astype(jnp.float32)
    for l in range(w1s.shape[0]):
        h = jnp.maximum(
            jnp.dot(act.astype(w1s.dtype), w1s[l],
                    preferred_element_type=jnp.float32), 0.0)
        t = jnp.maximum(
            jnp.dot(h.astype(w2s.dtype), w2s[l],
                    preferred_element_type=jnp.float32), 0.0)
        act = act + t
    return act.astype(x.dtype)


# ------------------------------- main ------------------------------------------

if __name__ == "__main__":
    key = jax.random.PRNGKey(0)
    kx, kp, ks, kx2 = jax.random.split(key, 4)

    N = 256   # instances (rows); tiled at 128 rows -> 2 parallel row tiles
    M = 512   # nChn (PyTorch default, multiple of 128 -> lane-dense)
    L = 3     # residual blocks fused into one pallas_call for the stack test

    x = jax.random.normal(kx, (N, M), dtype=jnp.float32).astype(jnp.bfloat16)

    # --- single residual_block: exact semantics of the PyTorch module -------
    block = ResidualBlockPallas(nChn=M, key=kp)
    out1 = jax.block_until_ready(block(x))
    ref1 = _reference_stack(x, block.w1[None], block.w2[None])
    assert out1.shape == (N, M), out1.shape
    err1 = float(jnp.max(jnp.abs(out1.astype(jnp.float32) - ref1.astype(jnp.float32))))
    assert err1 <= 5e-2, f"residual_block mismatch: {err1}"

    # --- fused stack of L residual blocks (VMEM-resident weights) -----------
    bound = 1.0 / (M ** 0.5)
    k1, k2 = jax.random.split(ks)
    w1s = jax.random.uniform(k1, (L, M, M), jnp.float32,
                             -bound, bound).astype(jnp.bfloat16)
    w2s = jax.random.uniform(k2, (L, M, M), jnp.float32,
                             -bound, bound).astype(jnp.bfloat16)
    out2 = jax.block_until_ready(residual_stack(x, w1s, w2s))
    ref2 = _reference_stack(x, w1s, w2s)
    err2 = float(jnp.max(jnp.abs(out2.astype(jnp.float32) - ref2.astype(jnp.float32))))
    assert err2 <= 5e-2, f"residual_stack mismatch: {err2}"

    # --- ragged N (not a multiple of the row tile): exercises the pad path --
    N3 = 200
    x3 = jax.random.normal(kx2, (N3, M), dtype=jnp.float32).astype(jnp.bfloat16)
    out3 = jax.block_until_ready(residual_stack(x3, w1s[:2], w2s[:2]))
    ref3 = _reference_stack(x3, w1s[:2], w2s[:2])
    assert out3.shape == (N3, M), out3.shape
    err3 = float(jnp.max(jnp.abs(out3.astype(jnp.float32) - ref3.astype(jnp.float32))))
    assert err3 <= 5e-2, f"padded residual_stack mismatch: {err3}"

    print("KERNEL_OK")
</pallas_src>

<mosaic_0001>
module attributes {stable_mosaic.version = 11 : i64} {
  func.func @_res_stack_kernel_resident(%arg0: i32, %arg1: i32, %arg2: memref<128x512xbf16, #tpu.memory_space<vmem>>, %arg3: memref<1x512x512xbf16, #tpu.memory_space<vmem>>, %arg4: memref<1x512x512xbf16, #tpu.memory_space<vmem>>, %arg5: memref<128x512xbf16, #tpu.memory_space<vmem>>, %arg6: memref<128x512xf32, #tpu.memory_space<vmem>>) attributes {dimension_semantics = [#tpu.dimension_semantics<parallel>, #tpu.dimension_semantics<arbitrary>], iteration_bounds = array<i64: 2, 1>, scalar_prefetch = 0 : i64, scratch_operands = 1 : i64, tpu.core_type = #tpu.core_type<tc>, window_params = [{transform_indices = @transform_0, window_bounds = array<i64: 128, 512>}, {pipeline_mode = #tpu.pipeline_mode<synchronous>, transform_indices = @transform_1, window_bounds = array<i64: 1, 512, 512>}, {pipeline_mode = #tpu.pipeline_mode<synchronous>, transform_indices = @transform_2, window_bounds = array<i64: 1, 512, 512>}, {transform_indices = @transform_3, window_bounds = array<i64: 128, 512>}]} {
    %c0_i32 = arith.constant 0 : i32
    %0 = arith.cmpi eq, %arg1, %c0_i32 : i32
    %1 = arith.extui %0 : i1 to i32
    %c0_i32_0 = arith.constant 0 : i32
    %2 = arith.cmpi ne, %1, %c0_i32_0 : i32
    scf.if %2 {
      %c0_13 = arith.constant 0 : index
      %c0_14 = arith.constant 0 : index
      %23 = vector.load %arg2[%c0_13, %c0_14] : memref<128x512xbf16, #tpu.memory_space<vmem>>, vector<128x512xbf16>
      %24 = arith.extf %23 : vector<128x512xbf16> to vector<128x512xf32>
      %c0_15 = arith.constant 0 : index
      %c0_16 = arith.constant 0 : index
      %25 = vector.load %arg6[%c0_15, %c0_16] : memref<128x512xf32, #tpu.memory_space<vmem>>, vector<128x512xf32>
      tpu.vector_store %arg6[%c0_15, %c0_16], %24 {strides = array<i32>} : memref<128x512xf32, #tpu.memory_space<vmem>>, vector<128x512xf32>,
    } else {
    }
    %c0 = arith.constant 0 : index
    %c0_1 = arith.constant 0 : index
    %3 = vector.load %arg6[%c0, %c0_1] : memref<128x512xf32, #tpu.memory_space<vmem>>, vector<128x512xf32>
    %4 = arith.index_cast %arg1 : i32 to index
    %c0_2 = arith.constant 0 : index
    %c0_3 = arith.constant 0 : index
    %5 = vector.load %arg3[%4, %c0_2, %c0_3] : memref<1x512x512xbf16, #tpu.memory_space<vmem>>, vector<1x512x512xbf16>
    %6 = vector.shape_cast %5 : vector<1x512x512xbf16> to vector<512x512xbf16>
    %7 = arith.index_cast %arg1 : i32 to index
    %c0_4 = arith.constant 0 : index
    %c0_5 = arith.constant 0 : index
    %8 = vector.load %arg4[%7, %c0_4, %c0_5] : memref<1x512x512xbf16, #tpu.memory_space<vmem>>, vector<1x512x512xbf16>
    %9 = vector.shape_cast %8 : vector<1x512x512xbf16> to vector<512x512xbf16>
    %10 = arith.truncf %3 : vector<128x512xf32> to vector<128x512xbf16>
    %cst = arith.constant dense<0.000000e+00> : vector<128x512xf32>
    %11 = tpu.matmul %10, %6, %cst {dimension_numbers = #tpu.dot_dimension_numbers<[1], [0], [0], [1], [0, 0, 1, 1], [], []>} : vector<128x512xbf16>, vector<512x512xbf16>, vector<128x512xf32> -> vector<128x512xf32>
    %cst_6 = arith.constant 0.000000e+00 : f32
    %12 = vector.broadcast %cst_6 : f32 to vector<128x512xf32>
    %13 = arith.maximumf %11, %12 : vector<128x512xf32>
    %14 = arith.truncf %13 : vector<128x512xf32> to vector<128x512xbf16>
    %cst_7 = arith.constant dense<0.000000e+00> : vector<128x512xf32>
    %15 = tpu.matmul %14, %9, %cst_7 {dimension_numbers = #tpu.dot_dimension_numbers<[1], [0], [0], [1], [0, 0, 1, 1], [], []>} : vector<128x512xbf16>, vector<512x512xbf16>, vector<128x512xf32> -> vector<128x512xf32>
    %cst_8 = arith.constant 0.000000e+00 : f32
    %16 = vector.broadcast %cst_8 : f32 to vector<128x512xf32>
    %17 = arith.maximumf %15, %16 : vector<128x512xf32>
    %18 = arith.addf %3, %17 : vector<128x512xf32>
    %c0_9 = arith.constant 0 : index
    %c0_10 = arith.constant 0 : index
    %19 = vector.load %arg6[%c0_9, %c0_10] : memref<128x512xf32, #tpu.memory_space<vmem>>, vector<128x512xf32>
    tpu.vector_store %arg6[%c0_9, %c0_10], %18 {strides = array<i32>} : memref<128x512xf32, #tpu.memory_space<vmem>>, vector<128x512xf32>,
    %c0_i32_11 = arith.constant 0 : i32
    %20 = arith.cmpi eq, %arg1, %c0_i32_11 : i32
    %21 = arith.extui %20 : i1 to i32
    %c0_i32_12 = arith.constant 0 : i32
    %22 = arith.cmpi ne, %21, %c0_i32_12 : i32
    scf.if %22 {
      %c0_13 = arith.constant 0 : index
      %c0_14 = arith.constant 0 : index
      %23 = vector.load %arg6[%c0_13, %c0_14] : memref<128x512xf32, #tpu.memory_space<vmem>>, vector<128x512xf32>
      %24 = arith.truncf %23 : vector<128x512xf32> to vector<128x512xbf16>
      %c0_15 = arith.constant 0 : index
      %c0_16 = arith.constant 0 : index
      %25 = vector.load %arg5[%c0_15, %c0_16] : memref<128x512xbf16, #tpu.memory_space<vmem>>, vector<128x512xbf16>
      tpu.vector_store %arg5[%c0_15, %c0_16], %24 {strides = array<i32>} : memref<128x512xbf16, #tpu.memory_space<vmem>>, vector<128x512xbf16>,
    } else {
    }
    return
  }
  func.func @transform_0(%arg0: i32, %arg1: i32) -> (i32, i32) {
    %c0_i32 = arith.constant 0 : i32
    %c0_i32_0 = arith.constant 0 : i32
    return %arg0, %c0_i32 : i32, i32
  }
  func.func @transform_1(%arg0: i32, %arg1: i32) -> (i32, i32, i32) {
    %c0_i32 = arith.constant 0 : i32
    %c0_i32_0 = arith.constant 0 : i32
    %c0_i32_1 = arith.constant 0 : i32
    %c0_i32_2 = arith.constant 0 : i32
    return %c0_i32, %c0_i32_0, %c0_i32_1 : i32, i32, i32
  }
  func.func @transform_2(%arg0: i32, %arg1: i32) -> (i32, i32, i32) {
    %c0_i32 = arith.constant 0 : i32
    %c0_i32_0 = arith.constant 0 : i32
    %c0_i32_1 = arith.constant 0 : i32
    %c0_i32_2 = arith.constant 0 : i32
    return %c0_i32, %c0_i32_0, %c0_i32_1 : i32, i32, i32
  }
  func.func @transform_3(%arg0: i32, %arg1: i32) -> (i32, i32) {
    %c0_i32 = arith.constant 0 : i32
    %c0_i32_0 = arith.constant 0 : i32
    return %arg0, %c0_i32 : i32, i32
  }
}

</mosaic_0001>

<llo_original>
// kernel: tpu_custom_call.1
$region0: #{tpu_custom_call.1}
  #allocation0 [shape = 'u32[]', space=smem, size = 0x4, offset = 0x4, fixed_abs, tag = 'smem constant byte address 0x4 - core index']
  #allocation1 [shape = 'u32[72,128]{1,0:T(1,128)}', space=vmem, size = 0x9000, scoped, tag = 'internal scratch']
  #allocation2 [shape = 'f32[128,512]{1,0:T(8,128)}', space=vmem, size = 0x40000, scoped, tag = 'scratch operand']
  %s0 = inlined_call_operand.hbm [shape: bf16[256,512], index: 0, kind: input, shape index: {}, may-alias: {0,3}]
  %s1 = inlined_call_operand.vmem [shape: bf16[1,512,512], index: 1, kind: input, shape index: {}]
  %s2 = inlined_call_operand.hbm [shape: bf16[1,512,512], index: 2, kind: input, shape index: {}]
  %s3 = inlined_call_operand.hbm [shape: bf16[256,512], index: 3, kind: output, shape index: {}, may-alias: {0,3}]
  %s4 = sld [smem:[#allocation0]]
  $region61: #{tpu_custom_call.1} parent=0
    _
  %s6 = ssub.s32 1, %s4
  %s7 = scalar_select 0, %s6, %s4
  $region1: #{tpu_custom_call.1} parent=0
    #allocation3 [shape = 'u8[262144]{0}', space=vmem, size = 0x40000, scoped, tag = 'input window, operand 0']
    #allocation4 [shape = 's32[2]{0}', space=sflag, size = 0x8, scoped, tag = 'scoped memory for tpu_custom_call.1']
    #allocation5 [shape = 's32[2]{0}', space=sflag, size = 0x8, scoped, tag = 'scoped memory for tpu_custom_call.1']
    #allocation6 [shape = 'u8[524288]{0}', space=vmem, size = 0x80000, scoped, tag = 'input window, operand 2, single buffered']
    #allocation7 [shape = 's32[1]{0}', space=sflag, size = 0x4, scoped, tag = 'scoped memory for tpu_custom_call.1']
    #allocation8 [shape = 'u8[262144]{0}', space=vmem, size = 0x40000, scoped, tag = 'output window, operand 0']
    %8 = vsyncpa [#allocation4], 0
    %s9 = scalar_lea.sflag [#allocation4], 1
    %10 = vsyncpa %s9, 0
    %11 = vsyncpa [#allocation7], 0
    %12 = vsyncpa [#allocation5], 0
    %s13 = scalar_lea.sflag [#allocation5], 1
    %14 = vsyncpa %s13, 0
    loop: start=0, step=1, limit=4
    $region2: #{tpu_custom_call.1} parent=1 // loop_pre_header
      _
    $region3: #{tpu_custom_call.1} parent=1 // loop_header
      %s16 = sphi 0, %s20
      %p17 = scmp.ge.s32.totalorder %s16, 4
      %s23 = sphi 0, %s35
      %s24 = sphi 0, %s31
      %s25 = sphi 0, %s23
      %s26 = sphi 0, %s24
      %s27 = sphi 0, %s25
      %s28 = sphi 0, %s26
      %s38 = sphi 0, %s40
      %s41 = sphi 0, %s38
      %s42 = sphi 0, %s41
      %s58 = sphi 0, %s42
      %s62 = sphi 0, %s62
      %s64 = sphi 0, %s62
      %s65 = sphi 0, %s64
      %s79 = sphi 0, %s65
      %s83 = sphi 0, %s83
      %s85 = sphi 0, %s83
      %s86 = sphi 0, %s85
      %s100 = sphi 0, %s86
      %s106 = sphi 0, %s108
      %s109 = sphi 0, %s106
      %s110 = sphi 0, %s109
      %s126 = sphi 0, %s110
    $region4: #{tpu_custom_call.1} parent=1 // loop_header_branch
      %19 = sbr.rel (%p17) target = $region8
    $region5: #{tpu_custom_call.1} parent=1 // loop_body
      %s21 = ssub.s32 %s16, 1
      %s22 = ssub.s32 %s16, 2
      %s29 = sadd.s32 1, %s24
      %p30 = scmp.ge.s32.totalorder %s29, 1
      %s31 = scalar_select %p30, 0, %s29
      %s32 = sadd.s32 1, %s23
      %s33 = scalar_select %p30, %s32, %s23
      %p34 = scmp.ge.s32.totalorder %s33, 2
      %s35 = scalar_select %p34, 0, %s33
      %s36 = ssub.s32 %s23, %s35
      %p37 = scmp.eq.s32.totalorder %s36, 0
      %s39 = sadd.s32 %s38, 1
      %s40 = scalar_select %p37, %s38, %s39
      %p43 = pneg %p37
      %p44 = scmp.eq.s32.totalorder %s16, 1
      %p45 = por %p43, %p44
      %p46 = scmp.ne.s32.totalorder %s38, %s41
      %p47 = scmp.eq.s32.totalorder %s16, 0
      %p48 = por %p46, %p47
      %p49 = scmp.ne.s32.totalorder %s38, %s41
      %p50 = scmp.eq.s32.totalorder %s21, 1
      %p51 = por %p49, %p50
      %p52 = scmp.ne.s32.totalorder %s41, %s42
      %p53 = scmp.eq.s32.totalorder %s21, 0
      %p54 = por %p52, %p53
      %p55 = scmp.ne.s32.totalorder %s41, %s42
      %p56 = scmp.eq.s32.totalorder %s22, 1
      %p57 = por %p55, %p56
      %p59 = scmp.ne.s32.totalorder %s42, %s58
      %p60 = scmp.eq.s32.totalorder %s22, 0
      %p61 = por %p59, %p60
      %s63 = sadd.s32 %s62, 1
      %p66 = scmp.eq.s32.totalorder %s16, 1
      %p67 = scmp.ne.s32.totalorder %s62, %s64
      %p68 = scmp.eq.s32.totalorder %s16, 0
      %p69 = por %p67, %p68
      %p70 = scmp.ne.s32.totalorder %s62, %s64
      %p71 = scmp.eq.s32.totalorder %s21, 1
      %p72 = por %p70, %p71
      %p73 = scmp.ne.s32.totalorder %s64, %s65
      %p74 = scmp.eq.s32.totalorder %s21, 0
      %p75 = por %p73, %p74
      %p76 = scmp.ne.s32.totalorder %s64, %s65
      %p77 = scmp.eq.s32.totalorder %s22, 1
      %p78 = por %p76, %p77
      %p80 = scmp.ne.s32.totalorder %s65, %s79
      %p81 = scmp.eq.s32.totalorder %s22, 0
      %p82 = por %p80, %p81
      %s84 = sadd.s32 %s83, 1
      %p87 = scmp.eq.s32.totalorder %s16, 1
      %p88 = scmp.ne.s32.totalorder %s83, %s85
      %p89 = scmp.eq.s32.totalorder %s16, 0
      %p90 = por %p88, %p89
      %p91 = scmp.ne.s32.totalorder %s83, %s85
      %p92 = scmp.eq.s32.totalorder %s21, 1
      %p93 = por %p91, %p92
      %p94 = scmp.ne.s32.totalorder %s85, %s86
      %p95 = scmp.eq.s32.totalorder %s21, 0
      %p96 = por %p94, %p95
      %p97 = scmp.ne.s32.totalorder %s85, %s86
      %p98 = scmp.eq.s32.totalorder %s22, 1
      %p99 = por %p97, %p98
      %p101 = scmp.ne.s32.totalorder %s86, %s100
      %p102 = scmp.eq.s32.totalorder %s22, 0
      %p103 = por %p101, %p102
      %s104 = ssub.s32 %s23, %s35
      %p105 = scmp.eq.s32.totalorder %s104, 0
      %s107 = sadd.s32 %s106, 1
      %s108 = scalar_select %p105, %s106, %s107
      %p111 = pneg %p105
      %p112 = scmp.eq.s32.totalorder %s16, 1
      %p113 = por %p111, %p112
      %p114 = scmp.ne.s32.totalorder %s106, %s109
      %p115 = scmp.eq.s32.totalorder %s16, 0
      %p116 = por %p114, %p115
      %p117 = scmp.ne.s32.totalorder %s106, %s109
      %p118 = scmp.eq.s32.totalorder %s21, 1
      %p119 = por %p117, %p118
      %p120 = scmp.ne.s32.totalorder %s109, %s110
      %p121 = scmp.eq.s32.totalorder %s21, 0
      %p122 = por %p120, %p121
      %p123 = scmp.ne.s32.totalorder %s109, %s110
      %p124 = scmp.eq.s32.totalorder %s22, 1
      %p125 = por %p123, %p124
      %p127 = scmp.ne.s32.totalorder %s110, %s126
      %p128 = scmp.eq.s32.totalorder %s22, 0
      %p129 = por %p127, %p128
      %p130 = scmp.le.s32.totalorder 1, %s16
      %p131 = scmp.lt.s32.totalorder %s16, 3
      %p132 = pnand %p130, %p131
      %p133 = pneg %p132
      // Predicated region
      $region9: #{tpu_custom_call.1} parent=5 // pred_check
        _
      $region10: #{tpu_custom_call.1} parent=5 // pred_check_branch
        %135 = sbr.rel (%p132) target = $region12
      $region11: #{tpu_custom_call.1} parent=5 // pred_region
        %s136 = ssub.s32 %s16, 1
        // Predicated region
        $region13: #{tpu_custom_call.1} parent=11 // pred_check
          %p137 = pneg %p75
        $region14: #{tpu_custom_call.1} parent=11 // pred_check_branch
          %139 = sbr.rel (%p137) target = $region16
        $region15: #{tpu_custom_call.1} parent=11 // pred_region
          _
        $region16: #{tpu_custom_call.1} parent=11 // pred_fallthru
          _
        // Predicated region
        $region17: #{tpu_custom_call.1} parent=11 // pred_check
          %p140 = pneg %p96
        $region18: #{tpu_custom_call.1} parent=11 // pred_check_branch
          %142 = sbr.rel (%p140) target = $region20
        $region19: #{tpu_custom_call.1} parent=11 // pred_region
          %144 = vsyncadd [#allocation7], 0
          %s145 = sshll.u32 %s2, 4
          %s146 = int_to_ptr.hbm [resolvable:$true] %s145
          %s147 = sshll.u32 [#allocation6], 4
          %s148 = int_to_ptr.vmem [resolvable:$true] %s147
          %153 = dma.hbm_to_vmem [thread:$0]  %s146, 16384, %s148, [#allocation7], 256, 256, 16
        $region20: #{tpu_custom_call.1} parent=11 // pred_fallthru
          _
      $region12: #{tpu_custom_call.1} parent=5 // pred_fallthru
        _
      %p154 = scmp.lt.s32.totalorder %s16, 2
      // Predicated region
      $region21: #{tpu_custom_call.1} parent=5 // pred_check
        %p155 = pneg %p154
      $region22: #{tpu_custom_call.1} parent=5 // pred_check_branch
        %157 = sbr.rel (%p155) target = $region24
      $region23: #{tpu_custom_call.1} parent=5 // pred_region
        // Predicated region
        $region25: #{tpu_custom_call.1} parent=23 // pred_check
          %p158 = pneg %p48
        $region26: #{tpu_custom_call.1} parent=23 // pred_check_branch
          %160 = sbr.rel (%p158) target = $region28
        $region27: #{tpu_custom_call.1} parent=23 // pred_region
          %s161 = sand.u32 %s38, 1
          %s162 = scalar_lea.sflag [#allocation4], %s161
          %s163 = sand.u32 %s38, 1
          %s164 = smul.addr %s163, 256
          %s165 = scalar_lea.vmem [#allocation3], %s164
          %s166 = smul.u32 16, %s23
          %168 = vsyncadd %s162, 0
          %s169 = smul.addr %s166, 4
          %s170 = smul.addr %s169, 4
          %s171 = scalar_lea.hbm %s0, %s170
          %s172 = sshll.u32 %s171, 4
          %s173 = int_to_ptr.hbm [resolvable:$true] %s172
          %s174 = sshll.u32 %s165, 4
          %s175 = int_to_ptr.vmem [resolvable:$true] %s174
          %180 = dma.hbm_to_vmem [thread:$0]  %s173, 4096, %s175, %s162, 256, 256, 16
        $region28: #{tpu_custom_call.1} parent=23 // pred_fallthru
          _
      $region24: #{tpu_custom_call.1} parent=5 // pred_fallthru
        _
      %p181 = scmp.le.s32.totalorder 1, %s16
      %p182 = scmp.lt.s32.totalorder %s16, 3
      %p183 = pnand %p181, %p182
      %p184 = pneg %p183
      // Predicated region
      $region29: #{tpu_custom_call.1} parent=5 // pred_check
        _
      $region30: #{tpu_custom_call.1} parent=5 // pred_check_branch
        %186 = sbr.rel (%p183) target = $region32
      $region31: #{tpu_custom_call.1} parent=5 // pred_region
        %s187 = ssub.s32 %s16, 1
        %s188 = sand.u32 %s41, 1
        %s189 = scalar_lea.sflag [#allocation4], %s188
        %s190 = sand.u32 %s41, 1
        %s191 = smul.addr %s190, 256
        %s192 = scalar_lea.vmem [#allocation3], %s191
        // Predicated region
        $region33: #{tpu_custom_call.1} parent=31 // pred_check
          %p193 = pneg %p54
        $region34: #{tpu_custom_call.1} parent=31 // pred_check_branch
          %195 = sbr.rel (%p193) target = $region36
        $region35: #{tpu_custom_call.1} parent=31 // pred_region
          %197 = dma.done %s189, 4096
        $region36: #{tpu_custom_call.1} parent=31 // pred_fallthru
          _
        // Predicated region
        $region37: #{tpu_custom_call.1} parent=31 // pred_check
          %p198 = pneg %p96
        $region38: #{tpu_custom_call.1} parent=31 // pred_check_branch
          %200 = sbr.rel (%p198) target = $region40
        $region39: #{tpu_custom_call.1} parent=31 // pred_region
          %202 = dma.done [#allocation7], 16384
        $region40: #{tpu_custom_call.1} parent=31 // pred_fallthru
          _
        %s203 = sand.u32 %s41, 1
        %s204 = scalar_lea.sflag [#allocation4], %s203
        %s205 = sand.u32 %s41, 1
        %s206 = smul.addr %s205, 256
        %s207 = scalar_lea.vmem [#allocation3], %s206
        %p208 = pneg %p54
        %p209 = pneg %p51
        %p210 = pneg %p75
        %p211 = pneg %p72
        %p212 = pneg %p96
        %p213 = pneg %p93
        %p214 = pneg %p122
        %p215 = pneg %p119
        %s216 = sand.u32 %s109, 1
        %s217 = scalar_lea.sflag [#allocation5], %s216
        %s218 = sand.u32 %s109, 1
        %s219 = smul.addr %s218, 256
        %s220 = scalar_lea.vmem [#allocation8], %s219
        %s221 = smul.u32 16, %s25
        %s222 = smul.u32 16, %s25
        %p223 = scmp.eq.s32.totalorder %s26, 0
        // Predicated region
        $region41: #{tpu_custom_call.1} parent=31 // pred_check
          %p224 = pneg %p223
        $region42: #{tpu_custom_call.1} parent=31 // pred_check_branch
          %226 = sbr.rel (%p224) target = $region44
        $region43: #{tpu_custom_call.1} parent=31 // pred_region
          %v227 = vld [vmem:[%s192] sm:$0xff]
          %v228 = vld [vmem:[%s192 + $0x8] sm:$0xff]
          %v229 = vld [vmem:[%s192 + $0x10] sm:$0xff]
          %v230 = vld [vmem:[%s192 + $0x18] sm:$0xff]
          %v231 = vld [vmem:[%s192 + $0x20] sm:$0xff]
          %v232 = vld [vmem:[%s192 + $0x28] sm:$0xff]
          %v233 = vld [vmem:[%s192 + $0x30] sm:$0xff]
          %v234 = vld [vmem:[%s192 + $0x38] sm:$0xff]
          %v235 = vld [vmem:[%s192 + $0x40] sm:$0xff]
          %v236 = vld [vmem:[%s192 + $0x48] sm:$0xff]
          %v237 = vld [vmem:[%s192 + $0x50] sm:$0xff]
          %v238 = vld [vmem:[%s192 + $0x58] sm:$0xff]
          %v239 = vld [vmem:[%s192 + $0x60] sm:$0xff]
          %v240 = vld [vmem:[%s192 + $0x68] sm:$0xff]
          %v241 = vld [vmem:[%s192 + $0x70] sm:$0xff]
          %v242 = vld [vmem:[%s192 + $0x78] sm:$0xff]
          %v243 = vld [vmem:[%s192 + $0x80] sm:$0xff]
          %v244 = vld [vmem:[%s192 + $0x88] sm:$0xff]
          %v245 = vld [vmem:[%s192 + $0x90] sm:$0xff]
          %v246 = vld [vmem:[%s192 + $0x98] sm:$0xff]
          %v247 = vld [vmem:[%s192 + $0xa0] sm:$0xff]
          %v248 = vld [vmem:[%s192 + $0xa8] sm:$0xff]
          %v249 = vld [vmem:[%s192 + $0xb0] sm:$0xff]
          %v250 = vld [vmem:[%s192 + $0xb8] sm:$0xff]
          %v251 = vld [vmem:[%s192 + $0xc0] sm:$0xff]
          %v252 = vld [vmem:[%s192 + $0xc8] sm:$0xff]
          %v253 = vld [vmem:[%s192 + $0xd0] sm:$0xff]
          %v254 = vld [vmem:[%s192 + $0xd8] sm:$0xff]
          %v255 = vld [vmem:[%s192 + $0xe0] sm:$0xff]
          %v256 = vld [vmem:[%s192 + $0xe8] sm:$0xff]
          %v257 = vld [vmem:[%s192 + $0xf0] sm:$0xff]
          %v258 = vld [vmem:[%s192 + $0xf8] sm:$0xff]
          %v259 = vunpack.c.l.bf16 %v227
          %v260 = vunpack.c.h.bf16 %v227
          %v261 = vunpack.c.l.bf16 %v228
          %v262 = vunpack.c.h.bf16 %v228
          %v263 = vunpack.c.l.bf16 %v229
          %v264 = vunpack.c.h.bf16 %v229
          %v265 = vunpack.c.l.bf16 %v230
          %v266 = vunpack.c.h.bf16 %v230
          %v267 = vunpack.c.l.bf16 %v231
          %v268 = vunpack.c.h.bf16 %v231
          %v269 = vunpack.c.l.bf16 %v232
          %v270 = vunpack.c.h.bf16 %v232
          %v271 = vunpack.c.l.bf16 %v233
          %v272 = vunpack.c.h.bf16 %v233
          %v273 = vunpack.c.l.bf16 %v234
          %v274 = vunpack.c.h.bf16 %v234
          %v275 = vunpack.c.l.bf16 %v235
          %v276 = vunpack.c.h.bf16 %v235
          %v277 = vunpack.c.l.bf16 %v236
          %v278 = vunpack.c.h.bf16 %v236
          %v279 = vunpack.c.l.bf16 %v237
          %v280 = vunpack.c.h.bf16 %v237
          %v281 = vunpack.c.l.bf16 %v238
          %v282 = vunpack.c.h.bf16 %v238
          %v283 = vunpack.c.l.bf16 %v239
          %v284 = vunpack.c.h.bf16 %v239
          %v285 = vunpack.c.l.bf16 %v240
          %v286 = vunpack.c.h.bf16 %v240
          %v287 = vunpack.c.l.bf16 %v241
          %v288 = vunpack.c.h.bf16 %v241
          %v289 = vunpack.c.l.bf16 %v242
          %v290 = vunpack.c.h.bf16 %v242
          %v291 = vunpack.c.l.bf16 %v243
          %v292 = vunpack.c.h.bf16 %v243
          %v293 = vunpack.c.l.bf16 %v244
          %v294 = vunpack.c.h.bf16 %v244
          %v295 = vunpack.c.l.bf16 %v245
          %v296 = vunpack.c.h.bf16 %v245
          %v297 = vunpack.c.l.bf16 %v246
          %v298 = vunpack.c.h.bf16 %v246
          %v299 = vunpack.c.l.bf16 %v247
          %v300 = vunpack.c.h.bf16 %v247
          %v301 = vunpack.c.l.bf16 %v248
          %v302 = vunpack.c.h.bf16 %v248
          %v303 = vunpack.c.l.bf16 %v249
          %v304 = vunpack.c.h.bf16 %v249
          %v305 = vunpack.c.l.bf16 %v250
          %v306 = vunpack.c.h.bf16 %v250
          %v307 = vunpack.c.l.bf16 %v251
          %v308 = vunpack.c.h.bf16 %v251
          %v309 = vunpack.c.l.bf16 %v252
          %v310 = vunpack.c.h.bf16 %v252
          %v311 = vunpack.c.l.bf16 %v253
          %v312 = vunpack.c.h.bf16 %v253
          %v313 = vunpack.c.l.bf16 %v254
          %v314 = vunpack.c.h.bf16 %v254
          %v315 = vunpack.c.l.bf16 %v255
          %v316 = vunpack.c.h.bf16 %v255
          %v317 = vunpack.c.l.bf16 %v256
          %v318 = vunpack.c.h.bf16 %v256
          %v319 = vunpack.c.l.bf16 %v257
          %v320 = vunpack.c.h.bf16 %v257
          %v321 = vunpack.c.l.bf16 %v258
          %v322 = vunpack.c.h.bf16 %v258
          %323 = vst [vmem:[#allocation2] sm:$0xff] %v259
          %324 = vst [vmem:[#allocation2 + $0x8] sm:$0xff] %v260
          %325 = vst [vmem:[#allocation2 + $0x10] sm:$0xff] %v261
          %326 = vst [vmem:[#allocation2 + $0x18] sm:$0xff] %v262
          %327 = vst [vmem:[#allocation2 + $0x20] sm:$0xff] %v263
          %328 = vst [vmem:[#allocation2 + $0x28] sm:$0xff] %v264
          %329 = vst [vmem:[#allocation2 + $0x30] sm:$0xff] %v265
          %330 = vst [vmem:[#allocation2 + $0x38] sm:$0xff] %v266
          %331 = vst [vmem:[#allocation2 + $0x40] sm:$0xff] %v267
          %332 = vst [vmem:[#allocation2 + $0x48] sm:$0xff] %v268
          %333 = vst [vmem:[#allocation2 + $0x50] sm:$0xff] %v269
          %334 = vst [vmem:[#allocation2 + $0x58] sm:$0xff] %v270
          %335 = vst [vmem:[#allocation2 + $0x60] sm:$0xff] %v271
          %336 = vst [vmem:[#allocation2 + $0x68] sm:$0xff] %v272
          %337 = vst [vmem:[#allocation2 + $0x70] sm:$0xff] %v273
          %338 = vst [vmem:[#allocation2 + $0x78] sm:$0xff] %v274
          %339 = vst [vmem:[#allocation2 + $0x80] sm:$0xff] %v275
          %340 = vst [vmem:[#allocation2 + $0x88] sm:$0xff] %v276
          %341 = vst [vmem:[#allocation2 + $0x90] sm:$0xff] %v277
          %342 = vst [vmem:[#allocation2 + $0x98] sm:$0xff] %v278
          %343 = vst [vmem:[#allocation2 + $0xa0] sm:$0xff] %v279
          %344 = vst [vmem:[#allocation2 + $0xa8] sm:$0xff] %v280
          %345 = vst [vmem:[#allocation2 + $0xb0] sm:$0xff] %v281
          %346 = vst [vmem:[#allocation2 + $0xb8] sm:$0xff] %v282
          %347 = vst [vmem:[#allocation2 + $0xc0] sm:$0xff] %v283
          %348 = vst [vmem:[#allocation2 + $0xc8] sm:$0xff] %v284
          %349 = vst [vmem:[#allocation2 + $0xd0] sm:$0xff] %v285
          %350 = vst [vmem:[#allocation2 + $0xd8] sm:$0xff] %v286
          %351 = vst [vmem:[#allocation2 + $0xe0] sm:$0xff] %v287
          %352 = vst [vmem:[#allocation2 + $0xe8] sm:$0xff] %v288
          %353 = vst [vmem:[#allocation2 + $0xf0] sm:$0xff] %v289
          %354 = vst [vmem:[#allocation2 + $0xf8] sm:$0xff] %v290
          %355 = vst [vmem:[#allocation2 + $0x100] sm:$0xff] %v291
          %356 = vst [vmem:[#allocation2 + $0x108] sm:$0xff] %v292
          %357 = vst [vmem:[#allocation2 + $0x110] sm:$0xff] %v293
          %358 = vst [vmem:[#allocation2 + $0x118] sm:$0xff] %v294
          %359 = vst [vmem:[#allocation2 + $0x120] sm:$0xff] %v295
          %360 = vst [vmem:[#allocation2 + $0x128] sm:$0xff] %v296
          %361 = vst [vmem:[#allocation2 + $0x130] sm:$0xff] %v297
          %362 = vst [vmem:[#allocation2 + $0x138] sm:$0xff] %v298
          %363 = vst [vmem:[#allocation2 + $0x140] sm:$0xff] %v299
          %364 = vst [vmem:[#allocation2 + $0x148] sm:$0xff] %v300
          %365 = vst [vmem:[#allocation2 + $0x150] sm:$0xff] %v301
          %366 = vst [vmem:[#allocation2 + $0x158] sm:$0xff] %v302
          %367 = vst [vmem:[#allocation2 + $0x160] sm:$0xff] %v303
          %368 = vst [vmem:[#allocation2 + $0x168] sm:$0xff] %v304
          %369 = vst [vmem:[#allocation2 + $0x170] sm:$0xff] %v305
          %370 = vst [vmem:[#allocation2 + $0x178] sm:$0xff] %v306
          %371 = vst [vmem:[#allocation2 + $0x180] sm:$0xff] %v307
          %372 = vst [vmem:[#allocation2 + $0x188] sm:$0xff] %v308
          %373 = vst [vmem:[#allocation2 + $0x190] sm:$0xff] %v309
          %374 = vst [vmem:[#allocation2 + $0x198] sm:$0xff] %v310
          %375 = vst [vmem:[#allocation2 + $0x1a0] sm:$0xff] %v311
          %376 = vst [vmem:[#allocation2 + $0x1a8] sm:$0xff] %v312
          %377 = vst [vmem:[#allocation2 + $0x1b0] sm:$0xff] %v313
          %378 = vst [vmem:[#allocation2 + $0x1b8] sm:$0xff] %v314
          %379 = vst [vmem:[#allocation2 + $0x1c0] sm:$0xff] %v315
          %380 = vst [vmem:[#allocation2 + $0x1c8] sm:$0xff] %v316
          %381 = vst [vmem:[#allocation2 + $0x1d0] sm:$0xff] %v317
          %382 = vst [vmem:[#allocation2 + $0x1d8] sm:$0xff] %v318
          %383 = vst [vmem:[#allocation2 + $0x1e0] sm:$0xff] %v319
          %384 = vst [vmem:[#allocation2 + $0x1e8] sm:$0xff] %v320
          %385 = vst [vmem:[#allocation2 + $0x1f0] sm:$0xff] %v321
          %386 = vst [vmem:[#allocation2 + $0x1f8] sm:$0xff] %v322
        $region44: #{tpu_custom_call.1} parent=31 // pred_fallthru
          _
        %v387 = vld [vmem:[#allocation2] sm:$0xff]
        %v388 = vld [vmem:[#allocation2 + $0x8] sm:$0xff]
        %v389 = vld [vmem:[#allocation2 + $0x10] sm:$0xff]
        %v390 = vld [vmem:[#allocation2 + $0x18] sm:$0xff]
        %v391 = vld [vmem:[#allocation2 + $0x20] sm:$0xff]
        %v392 = vld [vmem:[#allocation2 + $0x28] sm:$0xff]
        %v393 = vld [vmem:[#allocation2 + $0x30] sm:$0xff]
        %v394 = vld [vmem:[#allocation2 + $0x38] sm:$0xff]
        %v395 = vld [vmem:[#allocation2 + $0x40] sm:$0xff]
        %v396 = vld [vmem:[#allocation2 + $0x48] sm:$0xff]
        %v397 = vld [vmem:[#allocation2 + $0x50] sm:$0xff]
        %v398 = vld [vmem:[#allocation2 + $0x58] sm:$0xff]
        %v399 = vld [vmem:[#allocation2 + $0x60] sm:$0xff]
        %v400 = vld [vmem:[#allocation2 + $0x68] sm:$0xff]
        %v401 = vld [vmem:[#allocation2 + $0x70] sm:$0xff]
        %v402 = vld [vmem:[#allocation2 + $0x78] sm:$0xff]
        %v403 = vld [vmem:[#allocation2 + $0x80] sm:$0xff]
        %v404 = vld [vmem:[#allocation2 + $0x88] sm:$0xff]
        %v405 = vld [vmem:[#allocation2 + $0x90] sm:$0xff]
        %v406 = vld [vmem:[#allocation2 + $0x98] sm:$0xff]
        %v407 = vld [vmem:[#allocation2 + $0xa0] sm:$0xff]
        %v408 = vld [vmem:[#allocation2 + $0xa8] sm:$0xff]
        %v409 = vld [vmem:[#allocation2 + $0xb0] sm:$0xff]
        %v410 = vld [vmem:[#allocation2 + $0xb8] sm:$0xff]
        %v411 = vld [vmem:[#allocation2 + $0xc0] sm:$0xff]
        %v412 = vld [vmem:[#allocation2 + $0xc8] sm:$0xff]
        %v413 = vld [vmem:[#allocation2 + $0xd0] sm:$0xff]
        %v414 = vld [vmem:[#allocation2 + $0xd8] sm:$0xff]
        %v415 = vld [vmem:[#allocation2 + $0xe0] sm:$0xff]
        %v416 = vld [vmem:[#allocation2 + $0xe8] sm:$0xff]
        %v417 = vld [vmem:[#allocation2 + $0xf0] sm:$0xff]
        %v418 = vld [vmem:[#allocation2 + $0xf8] sm:$0xff]
        %v419 = vld [vmem:[#allocation2 + $0x100] sm:$0xff]
        %v420 = vld [vmem:[#allocation2 + $0x108] sm:$0xff]
        %v421 = vld [vmem:[#allocation2 + $0x110] sm:$0xff]
        %v422 = vld [vmem:[#allocation2 + $0x118] sm:$0xff]
        %v423 = vld [vmem:[#allocation2 + $0x120] sm:$0xff]
        %v424 = vld [vmem:[#allocation2 + $0x128] sm:$0xff]
        %v425 = vld [vmem:[#allocation2 + $0x130] sm:$0xff]
        %v426 = vld [vmem:[#allocation2 + $0x138] sm:$0xff]
        %v427 = vld [vmem:[#allocation2 + $0x140] sm:$0xff]
        %v428 = vld [vmem:[#allocation2 + $0x148] sm:$0xff]
        %v429 = vld [vmem:[#allocation2 + $0x150] sm:$0xff]
        %v430 = vld [vmem:[#allocation2 + $0x158] sm:$0xff]
        %v431 = vld [vmem:[#allocation2 + $0x160] sm:$0xff]
        %v432 = vld [vmem:[#allocation2 + $0x168] sm:$0xff]
        %v433 = vld [vmem:[#allocation2 + $0x170] sm:$0xff]
        %v434 = vld [vmem:[#allocation2 + $0x178] sm:$0xff]
        %v435 = vld [vmem:[#allocation2 + $0x180] sm:$0xff]
        %v436 = vld [vmem:[#allocation2 + $0x188] sm:$0xff]
        %v437 = vld [vmem:[#allocation2 + $0x190] sm:$0xff]
        %v438 = vld [vmem:[#allocation2 + $0x198] sm:$0xff]
        %v439 = vld [vmem:[#allocation2 + $0x1a0] sm:$0xff]
        %v440 = vld [vmem:[#allocation2 + $0x1a8] sm:$0xff]
        %v441 = vld [vmem:[#allocation2 + $0x1b0] sm:$0xff]
        %v442 = vld [vmem:[#allocation2 + $0x1b8] sm:$0xff]
        %v443 = vld [vmem:[#allocation2 + $0x1c0] sm:$0xff]
        %v444 = vld [vmem:[#allocation2 + $0x1c8] sm:$0xff]
        %v445 = vld [vmem:[#allocation2 + $0x1d0] sm:$0xff]
        %v446 = vld [vmem:[#allocation2 + $0x1d8] sm:$0xff]
        %v447 = vld [vmem:[#allocation2 + $0x1e0] sm:$0xff]
        %v448 = vld [vmem:[#allocation2 + $0x1e8] sm:$0xff]
        %v449 = vld [vmem:[#allocation2 + $0x1f0] sm:$0xff]
        %v450 = vld [vmem:[#allocation2 + $0x1f8] sm:$0xff]
        %s451 = smul.u32 %s26, 256
        %s452 = smul.addr %s451, 4
        %s453 = scalar_lea.vmem %s1, %s452
        %v454 = vld [vmem:[%s453] sm:$0xff]
        %v455 = vld [vmem:[%s453 + $0x8] sm:$0xff]
        %v456 = vld [vmem:[%s453 + $0x10] sm:$0xff]
        %v457 = vld [vmem:[%s453 + $0x18] sm:$0xff]
        %v458 = vld [vmem:[%s453 + $0x20] sm:$0xff]
        %v459 = vld [vmem:[%s453 + $0x28] sm:$0xff]
        %v460 = vld [vmem:[%s453 + $0x30] sm:$0xff]
        %v461 = vld [vmem:[%s453 + $0x38] sm:$0xff]
        %v462 = vld [vmem:[%s453 + $0x40] sm:$0xff]
        %v463 = vld [vmem:[%s453 + $0x48] sm:$0xff]
        %v464 = vld [vmem:[%s453 + $0x50] sm:$0xff]
        %v465 = vld [vmem:[%s453 + $0x58] sm:$0xff]
        %v466 = vld [vmem:[%s453 + $0x60] sm:$0xff]
        %v467 = vld [vmem:[%s453 + $0x68] sm:$0xff]
        %v468 = vld [vmem:[%s453 + $0x70] sm:$0xff]
        %v469 = vld [vmem:[%s453 + $0x78] sm:$0xff]
        %v470 = vld [vmem:[%s453 + $0x80] sm:$0xff]
        %v471 = vld [vmem:[%s453 + $0x88] sm:$0xff]
        %v472 = vld [vmem:[%s453 + $0x90] sm:$0xff]
        %v473 = vld [vmem:[%s453 + $0x98] sm:$0xff]
        %v474 = vld [vmem:[%s453 + $0xa0] sm:$0xff]
        %v475 = vld [vmem:[%s453 + $0xa8] sm:$0xff]
        %v476 = vld [vmem:[%s453 + $0xb0] sm:$0xff]
        %v477 = vld [vmem:[%s453 + $0xb8] sm:$0xff]
        %v478 = vld [vmem:[%s453 + $0xc0] sm:$0xff]
        %v479 = vld [vmem:[%s453 + $0xc8] sm:$0xff]
        %v480 = vld [vmem:[%s453 + $0xd0] sm:$0xff]
        %v481 = vld [vmem:[%s453 + $0xd8] sm:$0xff]
        %v482 = vld [vmem:[%s453 + $0xe0] sm:$0xff]
        %v483 = vld [vmem:[%s453 + $0xe8] sm:$0xff]
        %v484 = vld [vmem:[%s453 + $0xf0] sm:$0xff]
        %v485 = vld [vmem:[%s453 + $0xf8] sm:$0xff]
        %v486 = vld [vmem:[%s453 + $0x100] sm:$0xff]
        %v487 = vld [vmem:[%s453 + $0x108] sm:$0xff]
        %v488 = vld [vmem:[%s453 + $0x110] sm:$0xff]
        %v489 = vld [vmem:[%s453 + $0x118] sm:$0xff]
        %v490 = vld [vmem:[%s453 + $0x120] sm:$0xff]
        %v491 = vld [vmem:[%s453 + $0x128] sm:$0xff]
        %v492 = vld [vmem:[%s453 + $0x130] sm:$0xff]
        %v493 = vld [vmem:[%s453 + $0x138] sm:$0xff]
        %v494 = vld [vmem:[%s453 + $0x140] sm:$0xff]
        %v495 = vld [vmem:[%s453 + $0x148] sm:$0xff]
        %v496 = vld [vmem:[%s453 + $0x150] sm:$0xff]
        %v497 = vld [vmem:[%s453 + $0x158] sm:$0xff]
        %v498 = vld [vmem:[%s453 + $0x160] sm:$0xff]
        %v499 = vld [vmem:[%s453 + $0x168] sm:$0xff]
        %v500 = vld [vmem:[%s453 + $0x170] sm:$0xff]
        %v501 = vld [vmem:[%s453 + $0x178] sm:$0xff]
        %v502 = vld [vmem:[%s453 + $0x180] sm:$0xff]
        %v503 = vld [vmem:[%s453 + $0x188] sm:$0xff]
        %v504 = vld [vmem:[%s453 + $0x190] sm:$0xff]
        %v505 = vld [vmem:[%s453 + $0x198] sm:$0xff]
        %v506 = vld [vmem:[%s453 + $0x1a0] sm:$0xff]
        %v507 = vld [vmem:[%s453 + $0x1a8] sm:$0xff]
        %v508 = vld [vmem:[%s453 + $0x1b0] sm:$0xff]
        %v509 = vld [vmem:[%s453 + $0x1b8] sm:$0xff]
        %v510 = vld [vmem:[%s453 + $0x1c0] sm:$0xff]
        %v511 = vld [vmem:[%s453 + $0x1c8] sm:$0xff]
        %v512 = vld [vmem:[%s453 + $0x1d0] sm:$0xff]
        %v513 = vld [vmem:[%s453 + $0x1d8] sm:$0xff]
        %v514 = vld [vmem:[%s453 + $0x1e0] sm:$0xff]
        %v515 = vld [vmem:[%s453 + $0x1e8] sm:$0xff]
        %v516 = vld [vmem:[%s453 + $0x1f0] sm:$0xff]
        %v517 = vld [vmem:[%s453 + $0x1f8] sm:$0xff]
        %v518 = vld [vmem:[%s453 + $0x200] sm:$0xff]
        %v519 = vld [vmem:[%s453 + $0x208] sm:$0xff]
        %v520 = vld [vmem:[%s453 + $0x210] sm:$0xff]
        %v521 = vld [vmem:[%s453 + $0x218] sm:$0xff]
        %v522 = vld [vmem:[%s453 + $0x220] sm:$0xff]
        %v523 = vld [vmem:[%s453 + $0x228] sm:$0xff]
        %v524 = vld [vmem:[%s453 + $0x230] sm:$0xff]
        %v525 = vld [vmem:[%s453 + $0x238] sm:$0xff]
        %v526 = vld [vmem:[%s453 + $0x240] sm:$0xff]
        %v527 = vld [vmem:[%s453 + $0x248] sm:$0xff]
        %v528 = vld [vmem:[%s453 + $0x250] sm:$0xff]
        %v529 = vld [vmem:[%s453 + $0x258] sm:$0xff]
        %v530 = vld [vmem:[%s453 + $0x260] sm:$0xff]
        %v531 = vld [vmem:[%s453 + $0x268] sm:$0xff]
        %v532 = vld [vmem:[%s453 + $0x270] sm:$0xff]
        %v533 = vld [vmem:[%s453 + $0x278] sm:$0xff]
        %v534 = vld [vmem:[%s453 + $0x280] sm:$0xff]
        %v535 = vld [vmem:[%s453 + $0x288] sm:$0xff]
        %v536 = vld [vmem:[%s453 + $0x290] sm:$0xff]
        %v537 = vld [vmem:[%s453 + $0x298] sm:$0xff]
        %v538 = vld [vmem:[%s453 + $0x2a0] sm:$0xff]
        %v539 = vld [vmem:[%s453 + $0x2a8] sm:$0xff]
        %v540 = vld [vmem:[%s453 + $0x2b0] sm:$0xff]
        %v541 = vld [vmem:[%s453 + $0x2b8] sm:$0xff]
        %v542 = vld [vmem:[%s453 + $0x2c0] sm:$0xff]
        %v543 = vld [vmem:[%s453 + $0x2c8] sm:$0xff]
        %v544 = vld [vmem:[%s453 + $0x2d0] sm:$0xff]
        %v545 = vld [vmem:[%s453 + $0x2d8] sm:$0xff]
        %v546 = vld [vmem:[%s453 + $0x2e0] sm:$0xff]
        %v547 = vld [vmem:[%s453 + $0x2e8] sm:$0xff]
        %v548 = vld [vmem:[%s453 + $0x2f0] sm:$0xff]
        %v549 = vld [vmem:[%s453 + $0x2f8] sm:$0xff]
        %v550 = vld [vmem:[%s453 + $0x300] sm:$0xff]
        %v551 = vld [vmem:[%s453 + $0x308] sm:$0xff]
        %v552 = vld [vmem:[%s453 + $0x310] sm:$0xff]
        %v553 = vld [vmem:[%s453 + $0x318] sm:$0xff]
        %v554 = vld [vmem:[%s453 + $0x320] sm:$0xff]
        %v555 = vld [vmem:[%s453 + $0x328] sm:$0xff]
        %v556 = vld [vmem:[%s453 + $0x330] sm:$0xff]
        %v557 = vld [vmem:[%s453 + $0x338] sm:$0xff]
        %v558 = vld [vmem:[%s453 + $0x340] sm:$0xff]
        %v559 = vld [vmem:[%s453 + $0x348] sm:$0xff]
        %v560 = vld [vmem:[%s453 + $0x350] sm:$0xff]
        %v561 = vld [vmem:[%s453 + $0x358] sm:$0xff]
        %v562 = vld [vmem:[%s453 + $0x360] sm:$0xff]
        %v563 = vld [vmem:[%s453 + $0x368] sm:$0xff]
        %v564 = vld [vmem:[%s453 + $0x370] sm:$0xff]
        %v565 = vld [vmem:[%s453 + $0x378] sm:$0xff]
        %v566 = vld [vmem:[%s453 + $0x380] sm:$0xff]
        %v567 = vld [vmem:[%s453 + $0x388] sm:$0xff]
        %v568 = vld [vmem:[%s453 + $0x390] sm:$0xff]
        %v569 = vld [vmem:[%s453 + $0x398] sm:$0xff]
        %v570 = vld [vmem:[%s453 + $0x3a0] sm:$0xff]
        %v571 = vld [vmem:[%s453 + $0x3a8] sm:$0xff]
        %v572 = vld [vmem:[%s453 + $0x3b0] sm:$0xff]
        %v573 = vld [vmem:[%s453 + $0x3b8] sm:$0xff]
        %v574 = vld [vmem:[%s453 + $0x3c0] sm:$0xff]
        %v575 = vld [vmem:[%s453 + $0x3c8] sm:$0xff]
        %v576 = vld [vmem:[%s453 + $0x3d0] sm:$0xff]
        %v577 = vld [vmem:[%s453 + $0x3d8] sm:$0xff]
        %v578 = vld [vmem:[%s453 + $0x3e0] sm:$0xff]
        %v579 = vld [vmem:[%s453 + $0x3e8] sm:$0xff]
        %v580 = vld [vmem:[%s453 + $0x3f0] sm:$0xff]
        %v581 = vld [vmem:[%s453 + $0x3f8] sm:$0xff]
        %s582 = smul.addr %s451, 4
        %s583 = scalar_lea.vmem [#allocation6], %s582
        %v584 = vld [vmem:[%s583] sm:$0xff]
        %v585 = vld [vmem:[%s583 + $0x8] sm:$0xff]
        %v586 = vld [vmem:[%s583 + $0x10] sm:$0xff]
        %v587 = vld [vmem:[%s583 + $0x18] sm:$0xff]
        %v588 = vld [vmem:[%s583 + $0x20] sm:$0xff]
        %v589 = vld [vmem:[%s583 + $0x28] sm:$0xff]
        %v590 = vld [vmem:[%s583 + $0x30] sm:$0xff]
        %v591 = vld [vmem:[%s583 + $0x38] sm:$0xff]
        %v592 = vld [vmem:[%s583 + $0x40] sm:$0xff]
        %v593 = vld [vmem:[%s583 + $0x48] sm:$0xff]
        %v594 = vld [vmem:[%s583 + $0x50] sm:$0xff]
        %v595 = vld [vmem:[%s583 + $0x58] sm:$0xff]
        %v596 = vld [vmem:[%s583 + $0x60] sm:$0xff]
        %v597 = vld [vmem:[%s583 + $0x68] sm:$0xff]
        %v598 = vld [vmem:[%s583 + $0x70] sm:$0xff]
        %v599 = vld [vmem:[%s583 + $0x78] sm:$0xff]
        %v600 = vld [vmem:[%s583 + $0x80] sm:$0xff]
        %v601 = vld [vmem:[%s583 + $0x88] sm:$0xff]
        %v602 = vld [vmem:[%s583 + $0x90] sm:$0xff]
        %v603 = vld [vmem:[%s583 + $0x98] sm:$0xff]
        %v604 = vld [vmem:[%s583 + $0xa0] sm:$0xff]
        %v605 = vld [vmem:[%s583 + $0xa8] sm:$0xff]
        %v606 = vld [vmem:[%s583 + $0xb0] sm:$0xff]
        %v607 = vld [vmem:[%s583 + $0xb8] sm:$0xff]
        %v608 = vld [vmem:[%s583 + $0xc0] sm:$0xff]
        %v609 = vld [vmem:[%s583 + $0xc8] sm:$0xff]
        %v610 = vld [vmem:[%s583 + $0xd0] sm:$0xff]
        %v611 = vld [vmem:[%s583 + $0xd8] sm:$0xff]
        %v612 = vld [vmem:[%s583 + $0xe0] sm:$0xff]
        %v613 = vld [vmem:[%s583 + $0xe8] sm:$0xff]
        %v614 = vld [vmem:[%s583 + $0xf0] sm:$0xff]
        %v615 = vld [vmem:[%s583 + $0xf8] sm:$0xff]
        %v616 = vld [vmem:[%s583 + $0x100] sm:$0xff]
        %v617 = vld [vmem:[%s583 + $0x108] sm:$0xff]
        %v618 = vld [vmem:[%s583 + $0x110] sm:$0xff]
        %v619 = vld [vmem:[%s583 + $0x118] sm:$0xff]
        %v620 = vld [vmem:[%s583 + $0x120] sm:$0xff]
        %v621 = vld [vmem:[%s583 + $0x128] sm:$0xff]
        %v622 = vld [vmem:[%s583 + $0x130] sm:$0xff]
        %v623 = vld [vmem:[%s583 + $0x138] sm:$0xff]
        %v624 = vld [vmem:[%s583 + $0x140] sm:$0xff]
        %v625 = vld [vmem:[%s583 + $0x148] sm:$0xff]
        %v626 = vld [vmem:[%s583 + $0x150] sm:$0xff]
        %v627 = vld [vmem:[%s583 + $0x158] sm:$0xff]
        %v628 = vld [vmem:[%s583 + $0x160] sm:$0xff]
        %v629 = vld [vmem:[%s583 + $0x168] sm:$0xff]
        %v630 = vld [vmem:[%s583 + $0x170] sm:$0xff]
        %v631 = vld [vmem:[%s583 + $0x178] sm:$0xff]
        %v632 = vld [vmem:[%s583 + $0x180] sm:$0xff]
        %v633 = vld [vmem:[%s583 + $0x188] sm:$0xff]
        %v634 = vld [vmem:[%s583 + $0x190] sm:$0xff]
        %v635 = vld [vmem:[%s583 + $0x198] sm:$0xff]
        %v636 = vld [vmem:[%s583 + $0x1a0] sm:$0xff]
        %v637 = vld [vmem:[%s583 + $0x1a8] sm:$0xff]
        %v638 = vld [vmem:[%s583 + $0x1b0] sm:$0xff]
        %v639 = vld [vmem:[%s583 + $0x1b8] sm:$0xff]
        %v640 = vld [vmem:[%s583 + $0x1c0] sm:$0xff]
        %v641 = vld [vmem:[%s583 + $0x1c8] sm:$0xff]
        %v642 = vld [vmem:[%s583 + $0x1d0] sm:$0xff]
        %v643 = vld [vmem:[%s583 + $0x1d8] sm:$0xff]
        %v644 = vld [vmem:[%s583 + $0x1e0] sm:$0xff]
        %v645 = vld [vmem:[%s583 + $0x1e8] sm:$0xff]
        %v646 = vld [vmem:[%s583 + $0x1f0] sm:$0xff]
        %v647 = vld [vmem:[%s583 + $0x1f8] sm:$0xff]
        %v648 = vld [vmem:[%s583 + $0x200] sm:$0xff]
        %v649 = vld [vmem:[%s583 + $0x208] sm:$0xff]
        %v650 = vld [vmem:[%s583 + $0x210] sm:$0xff]
        %v651 = vld [vmem:[%s583 + $0x218] sm:$0xff]
        %v652 = vld [vmem:[%s583 + $0x220] sm:$0xff]
        %v653 = vld [vmem:[%s583 + $0x228] sm:$0xff]
        %v654 = vld [vmem:[%s583 + $0x230] sm:$0xff]
        %v655 = vld [vmem:[%s583 + $0x238] sm:$0xff]
        %v656 = vld [vmem:[%s583 + $0x240] sm:$0xff]
        %v657 = vld [vmem:[%s583 + $0x248] sm:$0xff]
        %v658 = vld [vmem:[%s583 + $0x250] sm:$0xff]
        %v659 = vld [vmem:[%s583 + $0x258] sm:$0xff]
        %v660 = vld [vmem:[%s583 + $0x260] sm:$0xff]
        %v661 = vld [vmem:[%s583 + $0x268] sm:$0xff]
        %v662 = vld [vmem:[%s583 + $0x270] sm:$0xff]
        %v663 = vld [vmem:[%s583 + $0x278] sm:$0xff]
        %v664 = vld [vmem:[%s583 + $0x280] sm:$0xff]
        %v665 = vld [vmem:[%s583 + $0x288] sm:$0xff]
        %v666 = vld [vmem:[%s583 + $0x290] sm:$0xff]
        %v667 = vld [vmem:[%s583 + $0x298] sm:$0xff]
        %v668 = vld [vmem:[%s583 + $0x2a0] sm:$0xff]
        %v669 = vld [vmem:[%s583 + $0x2a8] sm:$0xff]
        %v670 = vld [vmem:[%s583 + $0x2b0] sm:$0xff]
        %v671 = vld [vmem:[%s583 + $0x2b8] sm:$0xff]
        %v672 = vld [vmem:[%s583 + $0x2c0] sm:$0xff]
        %v673 = vld [vmem:[%s583 + $0x2c8] sm:$0xff]
        %v674 = vld [vmem:[%s583 + $0x2d0] sm:$0xff]
        %v675 = vld [vmem:[%s583 + $0x2d8] sm:$0xff]
        %v676 = vld [vmem:[%s583 + $0x2e0] sm:$0xff]
        %v677 = vld [vmem:[%s583 + $0x2e8] sm:$0xff]
        %v678 = vld [vmem:[%s583 + $0x2f0] sm:$0xff]
        %v679 = vld [vmem:[%s583 + $0x2f8] sm:$0xff]
        %v680 = vld [vmem:[%s583 + $0x300] sm:$0xff]
        %v681 = vld [vmem:[%s583 + $0x308] sm:$0xff]
        %v682 = vld [vmem:[%s583 + $0x310] sm:$0xff]
        %v683 = vld [vmem:[%s583 + $0x318] sm:$0xff]
        %v684 = vld [vmem:[%s583 + $0x320] sm:$0xff]
        %v685 = vld [vmem:[%s583 + $0x328] sm:$0xff]
        %v686 = vld [vmem:[%s583 + $0x330] sm:$0xff]
        %v687 = vld [vmem:[%s583 + $0x338] sm:$0xff]
        %v688 = vld [vmem:[%s583 + $0x340] sm:$0xff]
        %v689 = vld [vmem:[%s583 + $0x348] sm:$0xff]
        %v690 = vld [vmem:[%s583 + $0x350] sm:$0xff]
        %v691 = vld [vmem:[%s583 + $0x358] sm:$0xff]
        %v692 = vld [vmem:[%s583 + $0x360] sm:$0xff]
        %v693 = vld [vmem:[%s583 + $0x368] sm:$0xff]
        %v694 = vld [vmem:[%s583 + $0x370] sm:$0xff]
        %v695 = vld [vmem:[%s583 + $0x378] sm:$0xff]
        %v696 = vld [vmem:[%s583 + $0x380] sm:$0xff]
        %v697 = vld [vmem:[%s583 + $0x388] sm:$0xff]
        %v698 = vld [vmem:[%s583 + $0x390] sm:$0xff]
        %v699 = vld [vmem:[%s583 + $0x398] sm:$0xff]
        %v700 = vld [vmem:[%s583 + $0x3a0] sm:$0xff]
        %v701 = vld [vmem:[%s583 + $0x3a8] sm:$0xff]
        %v702 = vld [vmem:[%s583 + $0x3b0] sm:$0xff]
        %v703 = vld [vmem:[%s583 + $0x3b8] sm:$0xff]
        %v704 = vld [vmem:[%s583 + $0x3c0] sm:$0xff]
        %v705 = vld [vmem:[%s583 + $0x3c8] sm:$0xff]
        %v706 = vld [vmem:[%s583 + $0x3d0] sm:$0xff]
        %v707 = vld [vmem:[%s583 + $0x3d8] sm:$0xff]
        %v708 = vld [vmem:[%s583 + $0x3e0] sm:$0xff]
        %v709 = vld [vmem:[%s583 + $0x3e8] sm:$0xff]
        %v710 = vld [vmem:[%s583 + $0x3f0] sm:$0xff]
        %v711 = vld [vmem:[%s583 + $0x3f8] sm:$0xff]
        %v712 = vpack.c.bf16 %v391, %v387
        %v713 = vpack.c.bf16 %v392, %v388
        %v714 = vpack.c.bf16 %v393, %v389
        %v715 = vpack.c.bf16 %v394, %v390
        %v716 = vpack.c.bf16 %v399, %v395
        %v717 = vpack.c.bf16 %v400, %v396
        %v718 = vpack.c.bf16 %v401, %v397
        %v719 = vpack.c.bf16 %v402, %v398
        %v720 = vpack.c.bf16 %v407, %v403
        %v721 = vpack.c.bf16 %v408, %v404
        %v722 = vpack.c.bf16 %v409, %v405
        %v723 = vpack.c.bf16 %v410, %v406
        %v724 = vpack.c.bf16 %v415, %v411
        %v725 = vpack.c.bf16 %v416, %v412
        %v726 = vpack.c.bf16 %v417, %v413
        %v727 = vpack.c.bf16 %v418, %v414
        %v728 = vpack.c.bf16 %v423, %v419
        %v729 = vpack.c.bf16 %v424, %v420
        %v730 = vpack.c.bf16 %v425, %v421
        %v731 = vpack.c.bf16 %v426, %v422
        %v732 = vpack.c.bf16 %v431, %v427
        %v733 = vpack.c.bf16 %v432, %v428
        %v734 = vpack.c.bf16 %v433, %v429
        %v735 = vpack.c.bf16 %v434, %v430
        %v736 = vpack.c.bf16 %v439, %v435
        %v737 = vpack.c.bf16 %v440, %v436
        %v738 = vpack.c.bf16 %v441, %v437
        %v739 = vpack.c.bf16 %v442, %v438
        %v740 = vpack.c.bf16 %v447, %v443
        %v741 = vpack.c.bf16 %v448, %v444
        %v742 = vpack.c.bf16 %v449, %v445
        %v743 = vpack.c.bf16 %v450, %v446
        %v872 = vunpack.c.l.b16 %v454
        %v873 = vunpack.c.h.b16 %v454
        %v874 = vunpack.c.l.b16 %v455
        %v875 = vunpack.c.h.b16 %v455
        %v876 = vunpack.c.l.b16 %v456
        %v877 = vunpack.c.h.b16 %v456
        %v878 = vunpack.c.l.b16 %v457
        %v879 = vunpack.c.h.b16 %v457
        %v880 = vunpack.c.l.b16 %v458
        %v881 = vunpack.c.h.b16 %v458
        %v882 = vunpack.c.l.b16 %v459
        %v883 = vunpack.c.h.b16 %v459
        %v884 = vunpack.c.l.b16 %v460
        %v885 = vunpack.c.h.b16 %v460
        %v886 = vunpack.c.l.b16 %v461
        %v887 = vunpack.c.h.b16 %v461
        %v888 = vunpack.c.l.b16 %v462
        %v889 = vunpack.c.h.b16 %v462
        %v890 = vunpack.c.l.b16 %v463
        %v891 = vunpack.c.h.b16 %v463
        %v892 = vunpack.c.l.b16 %v464
        %v893 = vunpack.c.h.b16 %v464
        %v894 = vunpack.c.l.b16 %v465
        %v895 = vunpack.c.h.b16 %v465
        %v896 = vunpack.c.l.b16 %v466
        %v897 = vunpack.c.h.b16 %v466
        %v898 = vunpack.c.l.b16 %v467
        %v899 = vunpack.c.h.b16 %v467
        %v900 = vunpack.c.l.b16 %v468
        %v901 = vunpack.c.h.b16 %v468
        %v902 = vunpack.c.l.b16 %v469
        %v903 = vunpack.c.h.b16 %v469
        %v904 = vunpack.c.l.b16 %v470
        %v905 = vunpack.c.h.b16 %v470
        %v906 = vunpack.c.l.b16 %v471
        %v907 = vunpack.c.h.b16 %v471
        %v908 = vunpack.c.l.b16 %v472
        %v909 = vunpack.c.h.b16 %v472
        %v910 = vunpack.c.l.b16 %v473
        %v911 = vunpack.c.h.b16 %v473
        %v912 = vunpack.c.l.b16 %v474
        %v913 = vunpack.c.h.b16 %v474
        %v914 = vunpack.c.l.b16 %v475
        %v915 = vunpack.c.h.b16 %v475
        %v916 = vunpack.c.l.b16 %v476
        %v917 = vunpack.c.h.b16 %v476
        %v918 = vunpack.c.l.b16 %v477
        %v919 = vunpack.c.h.b16 %v477
        %v920 = vunpack.c.l.b16 %v478
        %v921 = vunpack.c.h.b16 %v478
        %v922 = vunpack.c.l.b16 %v479
        %v923 = vunpack.c.h.b16 %v479
        %v924 = vunpack.c.l.b16 %v480
        %v925 = vunpack.c.h.b16 %v480
        %v926 = vunpack.c.l.b16 %v481
        %v927 = vunpack.c.h.b16 %v481
        %v928 = vunpack.c.l.b16 %v482
        %v929 = vunpack.c.h.b16 %v482
        %v930 = vunpack.c.l.b16 %v483
        %v931 = vunpack.c.h.b16 %v483
        %v932 = vunpack.c.l.b16 %v484
        %v933 = vunpack.c.h.b16 %v484
        %v934 = vunpack.c.l.b16 %v485
        %v935 = vunpack.c.h.b16 %v485
        %v936 = vunpack.c.l.b16 %v486
        %v937 = vunpack.c.h.b16 %v486
        %v938 = vunpack.c.l.b16 %v487
        %v939 = vunpack.c.h.b16 %v487
        %v940 = vunpack.c.l.b16 %v488
        %v941 = vunpack.c.h.b16 %v488
        %v942 = vunpack.c.l.b16 %v489
        %v943 = vunpack.c.h.b16 %v489
        %v944 = vunpack.c.l.b16 %v490
        %v945 = vunpack.c.h.b16 %v490
        %v946 = vunpack.c.l.b16 %v491
        %v947 = vunpack.c.h.b16 %v491
        %v948 = vunpack.c.l.b16 %v492
        %v949 = vunpack.c.h.b16 %v492
        %v950 = vunpack.c.l.b16 %v493
        %v951 = vunpack.c.h.b16 %v493
        %v952 = vunpack.c.l.b16 %v494
        %v953 = vunpack.c.h.b16 %v494
        %v954 = vunpack.c.l.b16 %v495
        %v955 = vunpack.c.h.b16 %v495
        %v956 = vunpack.c.l.b16 %v496
        %v957 = vunpack.c.h.b16 %v496
        %v958 = vunpack.c.l.b16 %v497
        %v959 = vunpack.c.h.b16 %v497
        %v960 = vunpack.c.l.b16 %v498
        %v961 = vunpack.c.h.b16 %v498
        %v962 = vunpack.c.l.b16 %v499
        %v963 = vunpack.c.h.b16 %v499
        %v964 = vunpack.c.l.b16 %v500
        %v965 = vunpack.c.h.b16 %v500
        %v966 = vunpack.c.l.b16 %v501
        %v967 = vunpack.c.h.b16 %v501
        %v968 = vunpack.c.l.b16 %v502
        %v969 = vunpack.c.h.b16 %v502
        %v970 = vunpack.c.l.b16 %v503
        %v971 = vunpack.c.h.b16 %v503
        %v972 = vunpack.c.l.b16 %v504
        %v973 = vunpack.c.h.b16 %v504
        %v974 = vunpack.c.l.b16 %v505
        %v975 = vunpack.c.h.b16 %v505
        %v976 = vunpack.c.l.b16 %v506
        %v977 = vunpack.c.h.b16 %v506
        %v978 = vunpack.c.l.b16 %v507
        %v979 = vunpack.c.h.b16 %v507
        %v980 = vunpack.c.l.b16 %v508
        %v981 = vunpack.c.h.b16 %v508
        %v982 = vunpack.c.l.b16 %v509
        %v983 = vunpack.c.h.b16 %v509
        %v984 = vunpack.c.l.b16 %v510
        %v985 = vunpack.c.h.b16 %v510
        %v986 = vunpack.c.l.b16 %v511
        %v987 = vunpack.c.h.b16 %v511
        %v988 = vunpack.c.l.b16 %v512
        %v989 = vunpack.c.h.b16 %v512
        %v990 = vunpack.c.l.b16 %v513
        %v991 = vunpack.c.h.b16 %v513
        %v992 = vunpack.c.l.b16 %v514
        %v993 = vunpack.c.h.b16 %v514
        %v994 = vunpack.c.l.b16 %v515
        %v995 = vunpack.c.h.b16 %v515
        %v996 = vunpack.c.l.b16 %v516
        %v997 = vunpack.c.h.b16 %v516
        %v998 = vunpack.c.l.b16 %v517
        %v999 = vunpack.c.h.b16 %v517
        %v1000 = vunpack.c.l.b16 %v518
        %v1001 = vunpack.c.h.b16 %v518
        %v1002 = vunpack.c.l.b16 %v519
        %v1003 = vunpack.c.h.b16 %v519
        %v1004 = vunpack.c.l.b16 %v520
        %v1005 = vunpack.c.h.b16 %v520
        %v1006 = vunpack.c.l.b16 %v521
        %v1007 = vunpack.c.h.b16 %v521
        %v1008 = vunpack.c.l.b16 %v522
        %v1009 = vunpack.c.h.b16 %v522
        %v1010 = vunpack.c.l.b16 %v523
        %v1011 = vunpack.c.h.b16 %v523
        %v1012 = vunpack.c.l.b16 %v524
        %v1013 = vunpack.c.h.b16 %v524
        %v1014 = vunpack.c.l.b16 %v525
        %v1015 = vunpack.c.h.b16 %v525
        %v1016 = vunpack.c.l.b16 %v526
        %v1017 = vunpack.c.h.b16 %v526
        %v1018 = vunpack.c.l.b16 %v527
        %v1019 = vunpack.c.h.b16 %v527
        %v1020 = vunpack.c.l.b16 %v528
        %v1021 = vunpack.c.h.b16 %v528
        %v1022 = vunpack.c.l.b16 %v529
        %v1023 = vunpack.c.h.b16 %v529
        %v1024 = vunpack.c.l.b16 %v530
        %v1025 = vunpack.c.h.b16 %v530
        %v1026 = vunpack.c.l.b16 %v531
        %v1027 = vunpack.c.h.b16 %v531
        %v1028 = vunpack.c.l.b16 %v532
        %v1029 = vunpack.c.h.b16 %v532
        %v1030 = vunpack.c.l.b16 %v533
        %v1031 = vunpack.c.h.b16 %v533
        %v1032 = vunpack.c.l.b16 %v534
        %v1033 = vunpack.c.h.b16 %v534
        %v1034 = vunpack.c.l.b16 %v535
        %v1035 = vunpack.c.h.b16 %v535
        %v1036 = vunpack.c.l.b16 %v536
        %v1037 = vunpack.c.h.b16 %v536
        %v1038 = vunpack.c.l.b16 %v537
        %v1039 = vunpack.c.h.b16 %v537
        %v1040 = vunpack.c.l.b16 %v538
        %v1041 = vunpack.c.h.b16 %v538
        %v1042 = vunpack.c.l.b16 %v539
        %v1043 = vunpack.c.h.b16 %v539
        %v1044 = vunpack.c.l.b16 %v540
        %v1045 = vunpack.c.h.b16 %v540
        %v1046 = vunpack.c.l.b16 %v541
        %v1047 = vunpack.c.h.b16 %v541
        %v1048 = vunpack.c.l.b16 %v542
        %v1049 = vunpack.c.h.b16 %v542
        %v1050 = vunpack.c.l.b16 %v543
        %v1051 = vunpack.c.h.b16 %v543
        %v1052 = vunpack.c.l.b16 %v544
        %v1053 = vunpack.c.h.b16 %v544
        %v1054 = vunpack.c.l.b16 %v545
        %v1055 = vunpack.c.h.b16 %v545
        %v1056 = vunpack.c.l.b16 %v546
        %v1057 = vunpack.c.h.b16 %v546
        %v1058 = vunpack.c.l.b16 %v547
        %v1059 = vunpack.c.h.b16 %v547
        %v1060 = vunpack.c.l.b16 %v548
        %v1061 = vunpack.c.h.b16 %v548
        %v1062 = vunpack.c.l.b16 %v549
        %v1063 = vunpack.c.h.b16 %v549
        %v1064 = vunpack.c.l.b16 %v550
        %v1065 = vunpack.c.h.b16 %v550
        %v1066 = vunpack.c.l.b16 %v551
        %v1067 = vunpack.c.h.b16 %v551
        %v1068 = vunpack.c.l.b16 %v552
        %v1069 = vunpack.c.h.b16 %v552
        %v1070 = vunpack.c.l.b16 %v553
        %v1071 = vunpack.c.h.b16 %v553
        %v1072 = vunpack.c.l.b16 %v554
        %v1073 = vunpack.c.h.b16 %v554
        %v1074 = vunpack.c.l.b16 %v555
        %v1075 = vunpack.c.h.b16 %v555
        %v1076 = vunpack.c.l.b16 %v556
        %v1077 = vunpack.c.h.b16 %v556
        %v1078 = vunpack.c.l.b16 %v557
        %v1079 = vunpack.c.h.b16 %v557
        %v1080 = vunpack.c.l.b16 %v558
        %v1081 = vunpack.c.h.b16 %v558
        %v1082 = vunpack.c.l.b16 %v559
        %v1083 = vunpack.c.h.b16 %v559
        %v1084 = vunpack.c.l.b16 %v560
        %v1085 = vunpack.c.h.b16 %v560
        %v1086 = vunpack.c.l.b16 %v561
        %v1087 = vunpack.c.h.b16 %v561
        %v1088 = vunpack.c.l.b16 %v562
        %v1089 = vunpack.c.h.b16 %v562
        %v1090 = vunpack.c.l.b16 %v563
        %v1091 = vunpack.c.h.b16 %v563
        %v1092 = vunpack.c.l.b16 %v564
        %v1093 = vunpack.c.h.b16 %v564
        %v1094 = vunpack.c.l.b16 %v565
        %v1095 = vunpack.c.h.b16 %v565
        %v1096 = vunpack.c.l.b16 %v566
        %v1097 = vunpack.c.h.b16 %v566
        %v1098 = vunpack.c.l.b16 %v567
        %v1099 = vunpack.c.h.b16 %v567
        %v1100 = vunpack.c.l.b16 %v568
        %v1101 = vunpack.c.h.b16 %v568
        %v1102 = vunpack.c.l.b16 %v569
        %v1103 = vunpack.c.h.b16 %v569
        %v1104 = vunpack.c.l.b16 %v570
        %v1105 = vunpack.c.h.b16 %v570
        %v1106 = vunpack.c.l.b16 %v571
        %v1107 = vunpack.c.h.b16 %v571
        %v1108 = vunpack.c.l.b16 %v572
        %v1109 = vunpack.c.h.b16 %v572
        %v1110 = vunpack.c.l.b16 %v573
        %v1111 = vunpack.c.h.b16 %v573
        %v1112 = vunpack.c.l.b16 %v574
        %v1113 = vunpack.c.h.b16 %v574
        %v1114 = vunpack.c.l.b16 %v575
        %v1115 = vunpack.c.h.b16 %v575
        %v1116 = vunpack.c.l.b16 %v576
        %v1117 = vunpack.c.h.b16 %v576
        %v1118 = vunpack.c.l.b16 %v577
        %v1119 = vunpack.c.h.b16 %v577
        %v1120 = vunpack.c.l.b16 %v578
        %v1121 = vunpack.c.h.b16 %v578
        %v1122 = vunpack.c.l.b16 %v579
        %v1123 = vunpack.c.h.b16 %v579
        %v1124 = vunpack.c.l.b16 %v580
        %v1125 = vunpack.c.h.b16 %v580
        %v1126 = vunpack.c.l.b16 %v581
        %v1127 = vunpack.c.h.b16 %v581
        %v1128 = vpack.c.b16 %v876, %v872
        %v1129 = vpack.c.b16 %v877, %v873
        %v1130 = vpack.c.b16 %v878, %v874
        %v1131 = vpack.c.b16 %v879, %v875
        %v1132 = vpack.c.b16 %v884, %v880
        %v1133 = vpack.c.b16 %v885, %v881
        %v1134 = vpack.c.b16 %v886, %v882
        %v1135 = vpack.c.b16 %v887, %v883
        %v1136 = vpack.c.b16 %v892, %v888
        %v1137 = vpack.c.b16 %v893, %v889
        %v1138 = vpack.c.b16 %v894, %v890
        %v1139 = vpack.c.b16 %v895, %v891
        %v1140 = vpack.c.b16 %v900, %v896
        %v1141 = vpack.c.b16 %v901, %v897
        %v1142 = vpack.c.b16 %v902, %v898
        %v1143 = vpack.c.b16 %v903, %v899
        %v1144 = vpack.c.b16 %v908, %v904
        %v1145 = vpack.c.b16 %v909, %v905
        %v1146 = vpack.c.b16 %v910, %v906
        %v1147 = vpack.c.b16 %v911, %v907
        %v1148 = vpack.c.b16 %v916, %v912
        %v1149 = vpack.c.b16 %v917, %v913
        %v1150 = vpack.c.b16 %v918, %v914
        %v1151 = vpack.c.b16 %v919, %v915
        %v1152 = vpack.c.b16 %v924, %v920
        %v1153 = vpack.c.b16 %v925, %v921
        %v1154 = vpack.c.b16 %v926, %v922
        %v1155 = vpack.c.b16 %v927, %v923
        %v1156 = vpack.c.b16 %v932, %v928
        %v1157 = vpack.c.b16 %v933, %v929
        %v1158 = vpack.c.b16 %v934, %v930
        %v1159 = vpack.c.b16 %v935, %v931
        %v1160 = vpack.c.b16 %v940, %v936
        %v1161 = vpack.c.b16 %v941, %v937
        %v1162 = vpack.c.b16 %v942, %v938
        %v1163 = vpack.c.b16 %v943, %v939
        %v1164 = vpack.c.b16 %v948, %v944
        %v1165 = vpack.c.b16 %v949, %v945
        %v1166 = vpack.c.b16 %v950, %v946
        %v1167 = vpack.c.b16 %v951, %v947
        %v1168 = vpack.c.b16 %v956, %v952
        %v1169 = vpack.c.b16 %v957, %v953
        %v1170 = vpack.c.b16 %v958, %v954
        %v1171 = vpack.c.b16 %v959, %v955
        %v1172 = vpack.c.b16 %v964, %v960
        %v1173 = vpack.c.b16 %v965, %v961
        %v1174 = vpack.c.b16 %v966, %v962
        %v1175 = vpack.c.b16 %v967, %v963
        %v1176 = vpack.c.b16 %v972, %v968
        %v1177 = vpack.c.b16 %v973, %v969
        %v1178 = vpack.c.b16 %v974, %v970
        %v1179 = vpack.c.b16 %v975, %v971
        %v1180 = vpack.c.b16 %v980, %v976
        %v1181 = vpack.c.b16 %v981, %v977
        %v1182 = vpack.c.b16 %v982, %v978
        %v1183 = vpack.c.b16 %v983, %v979
        %v1184 = vpack.c.b16 %v988, %v984
        %v1185 = vpack.c.b16 %v989, %v985
        %v1186 = vpack.c.b16 %v990, %v986
        %v1187 = vpack.c.b16 %v991, %v987
        %v1188 = vpack.c.b16 %v996, %v992
        %v1189 = vpack.c.b16 %v997, %v993
        %v1190 = vpack.c.b16 %v998, %v994
        %v1191 = vpack.c.b16 %v999, %v995
        %v1192 = vpack.c.b16 %v1004, %v1000
        %v1193 = vpack.c.b16 %v1005, %v1001
        %v1194 = vpack.c.b16 %v1006, %v1002
        %v1195 = vpack.c.b16 %v1007, %v1003
        %v1196 = vpack.c.b16 %v1012, %v1008
        %v1197 = vpack.c.b16 %v1013, %v1009
        %v1198 = vpack.c.b16 %v1014, %v1010
        %v1199 = vpack.c.b16 %v1015, %v1011
        %v1200 = vpack.c.b16 %v1020, %v1016
        %v1201 = vpack.c.b16 %v1021, %v1017
        %v1202 = vpack.c.b16 %v1022, %v1018
        %v1203 = vpack.c.b16 %v1023, %v1019
        %v1204 = vpack.c.b16 %v1028, %v1024
        %v1205 = vpack.c.b16 %v1029, %v1025
        %v1206 = vpack.c.b16 %v1030, %v1026
        %v1207 = vpack.c.b16 %v1031, %v1027
        %v1208 = vpack.c.b16 %v1036, %v1032
        %v1209 = vpack.c.b16 %v1037, %v1033
        %v1210 = vpack.c.b16 %v1038, %v1034
        %v1211 = vpack.c.b16 %v1039, %v1035
        %v1212 = vpack.c.b16 %v1044, %v1040
        %v1213 = vpack.c.b16 %v1045, %v1041
        %v1214 = vpack.c.b16 %v1046, %v1042
        %v1215 = vpack.c.b16 %v1047, %v1043
        %v1216 = vpack.c.b16 %v1052, %v1048
        %v1217 = vpack.c.b16 %v1053, %v1049
        %v1218 = vpack.c.b16 %v1054, %v1050
        %v1219 = vpack.c.b16 %v1055, %v1051
        %v1220 = vpack.c.b16 %v1060, %v1056
        %v1221 = vpack.c.b16 %v1061, %v1057
        %v1222 = vpack.c.b16 %v1062, %v1058
        %v1223 = vpack.c.b16 %v1063, %v1059
        %v1224 = vpack.c.b16 %v1068, %v1064
        %v1225 = vpack.c.b16 %v1069, %v1065
        %v1226 = vpack.c.b16 %v1070, %v1066
        %v1227 = vpack.c.b16 %v1071, %v1067
        %v1228 = vpack.c.b16 %v1076, %v1072
        %v1229 = vpack.c.b16 %v1077, %v1073
        %v1230 = vpack.c.b16 %v1078, %v1074
        %v1231 = vpack.c.b16 %v1079, %v1075
        %v1232 = vpack.c.b16 %v1084, %v1080
        %v1233 = vpack.c.b16 %v1085, %v1081
        %v1234 = vpack.c.b16 %v1086, %v1082
        %v1235 = vpack.c.b16 %v1087, %v1083
        %v1236 = vpack.c.b16 %v1092, %v1088
        %v1237 = vpack.c.b16 %v1093, %v1089
        %v1238 = vpack.c.b16 %v1094, %v1090
        %v1239 = vpack.c.b16 %v1095, %v1091
        %v1240 = vpack.c.b16 %v1100, %v1096
        %v1241 = vpack.c.b16 %v1101, %v1097
        %v1242 = vpack.c.b16 %v1102, %v1098
        %v1243 = vpack.c.b16 %v1103, %v1099
        %v1244 = vpack.c.b16 %v1108, %v1104
        %v1245 = vpack.c.b16 %v1109, %v1105
        %v1246 = vpack.c.b16 %v1110, %v1106
        %v1247 = vpack.c.b16 %v1111, %v1107
        %v1248 = vpack.c.b16 %v1116, %v1112
        %v1249 = vpack.c.b16 %v1117, %v1113
        %v1250 = vpack.c.b16 %v1118, %v1114
        %v1251 = vpack.c.b16 %v1119, %v1115
        %v1252 = vpack.c.b16 %v1124, %v1120
        %v1253 = vpack.c.b16 %v1125, %v1121
        %v1254 = vpack.c.b16 %v1126, %v1122
        %v1255 = vpack.c.b16 %v1127, %v1123
        %1384 = vmatpush.bf16.msra.mxu0 %v1156
        %1385 = vmatpush.bf16.msra.mxu0 %v1152
        %1386 = vmatpush.bf16.msra.mxu0 %v1148
        %1387 = vmatpush.bf16.msra.mxu0 %v1144
        %1388 = vmatpush.bf16.msra.mxu0 %v1140
        %1389 = vmatpush.bf16.msra.mxu0 %v1136
        %1390 = vmatpush.bf16.msra.mxu0 %v1132
        %1391 = vmatpush.bf16.msra.mxu0 %v1128
        %1392 = vmatmul.bf16.gmra.mxu0 %v712
        %v1393 = vpop.f32.mrf.mxu0
        %v1394 = vadd.f32 0.0, %v1393
        %v1395 = vpop.f32.mrf.mxu0
        %v1396 = vadd.f32 0.0, %v1395
        %1397 = vmatmul.bf16.gmra.mxu0 %v716
        %v1398 = vpop.f32.mrf.mxu0
        %v1399 = vadd.f32 0.0, %v1398
        %v1400 = vpop.f32.mrf.mxu0
        %v1401 = vadd.f32 0.0, %v1400
        %1402 = vmatmul.bf16.gmra.mxu0 %v720
        %v1403 = vpop.f32.mrf.mxu0
        %v1404 = vadd.f32 0.0, %v1403
        %v1405 = vpop.f32.mrf.mxu0
        %v1406 = vadd.f32 0.0, %v1405
        %1407 = vmatmul.bf16.gmra.mxu0 %v724
        %v1408 = vpop.f32.mrf.mxu0
        %v1409 = vadd.f32 0.0, %v1408
        %v1410 = vpop.f32.mrf.mxu0
        %v1411 = vadd.f32 0.0, %v1410
        %1412 = vmatmul.bf16.gmra.mxu0 %v728
        %v1413 = vpop.f32.mrf.mxu0
        %v1414 = vadd.f32 0.0, %v1413
        %v1415 = vpop.f32.mrf.mxu0
        %v1416 = vadd.f32 0.0, %v1415
        %1417 = vmatmul.bf16.gmra.mxu0 %v732
        %v1418 = vpop.f32.mrf.mxu0
        %v1419 = vadd.f32 0.0, %v1418
        %v1420 = vpop.f32.mrf.mxu0
        %v1421 = vadd.f32 0.0, %v1420
        %1422 = vmatmul.bf16.gmra.mxu0 %v736
        %v1423 = vpop.f32.mrf.mxu0
        %v1424 = vadd.f32 0.0, %v1423
        %v1425 = vpop.f32.mrf.mxu0
        %v1426 = vadd.f32 0.0, %v1425
        %1427 = vmatmul.bf16.gmra.mxu0 %v740
        %v1428 = vpop.f32.mrf.mxu0
        %v1429 = vadd.f32 0.0, %v1428
        %v1430 = vpop.f32.mrf.mxu0
        %v1431 = vadd.f32 0.0, %v1430
        %1432 = vdwg.mxu0
        %1433 = vmatpush.bf16.msra.mxu0 %v1188
        %1434 = vmatpush.bf16.msra.mxu0 %v1184
        %1435 = vmatpush.bf16.msra.mxu0 %v1180
        %1436 = vmatpush.bf16.msra.mxu0 %v1176
        %1437 = vmatpush.bf16.msra.mxu0 %v1172
        %1438 = vmatpush.bf16.msra.mxu0 %v1168
        %1439 = vmatpush.bf16.msra.mxu0 %v1164
        %1440 = vmatpush.bf16.msra.mxu0 %v1160
        %1441 = vmatmul.bf16.gmra.mxu0 %v713
        %v1442 = vpop.f32.mrf.mxu0
        %v1443 = vadd.f32 %v1394, %v1442
        %v1444 = vpop.f32.mrf.mxu0
        %v1445 = vadd.f32 %v1396, %v1444
        %1446 = vmatmul.bf16.gmra.mxu0 %v717
        %v1447 = vpop.f32.mrf.mxu0
        %v1448 = vadd.f32 %v1399, %v1447
        %v1449 = vpop.f32.mrf.mxu0
        %v1450 = vadd.f32 %v1401, %v1449
        %1451 = vmatmul.bf16.gmra.mxu0 %v721
        %v1452 = vpop.f32.mrf.mxu0
        %v1453 = vadd.f32 %v1404, %v1452
        %v1454 = vpop.f32.mrf.mxu0
        %v1455 = vadd.f32 %v1406, %v1454
        %1456 = vmatmul.bf16.gmra.mxu0 %v725
        %v1457 = vpop.f32.mrf.mxu0
        %v1458 = vadd.f32 %v1409, %v1457
        %v1459 = vpop.f32.mrf.mxu0
        %v1460 = vadd.f32 %v1411, %v1459
        %1461 = vmatmul.bf16.gmra.mxu0 %v729
        %v1462 = vpop.f32.mrf.mxu0
        %v1463 = vadd.f32 %v1414, %v1462
        %v1464 = vpop.f32.mrf.mxu0
        %v1465 = vadd.f32 %v1416, %v1464
        %1466 = vmatmul.bf16.gmra.mxu0 %v733
        %v1467 = vpop.f32.mrf.mxu0
        %v1468 = vadd.f32 %v1419, %v1467
        %v1469 = vpop.f32.mrf.mxu0
        %v1470 = vadd.f32 %v1421, %v1469
        %1471 = vmatmul.bf16.gmra.mxu0 %v737
        %v1472 = vpop.f32.mrf.mxu0
        %v1473 = vadd.f32 %v1424, %v1472
        %v1474 = vpop.f32.mrf.mxu0
        %v1475 = vadd.f32 %v1426, %v1474
        %1476 = vmatmul.bf16.gmra.mxu0 %v741
        %v1477 = vpop.f32.mrf.mxu0
        %v1478 = vadd.f32 %v1429, %v1477
        %v1479 = vpop.f32.mrf.mxu0
        %v1480 = vadd.f32 %v1431, %v1479
        %1481 = vdwg.mxu0
        %1482 = vmatpush.bf16.msra.mxu0 %v1220
        %1483 = vmatpush.bf16.msra.mxu0 %v1216
        %1484 = vmatpush.bf16.msra.mxu0 %v1212
        %1485 = vmatpush.bf16.msra.mxu0 %v1208
        %1486 = vmatpush.bf16.msra.mxu0 %v1204
        %1487 = vmatpush.bf16.msra.mxu0 %v1200
        %1488 = vmatpush.bf16.msra.mxu0 %v1196
        %1489 = vmatpush.bf16.msra.mxu0 %v1192
        %1490 = vmatmul.bf16.gmra.mxu0 %v714
        %v1491 = vpop.f32.mrf.mxu0
        %v1492 = vadd.f32 %v1443, %v1491
        %v1493 = vpop.f32.mrf.mxu0
        %v1494 = vadd.f32 %v1445, %v1493
        %1495 = vmatmul.bf16.gmra.mxu0 %v718
        %v1496 = vpop.f32.mrf.mxu0
        %v1497 = vadd.f32 %v1448, %v1496
        %v1498 = vpop.f32.mrf.mxu0
        %v1499 = vadd.f32 %v1450, %v1498
        %1500 = vmatmul.bf16.gmra.mxu0 %v722
        %v1501 = vpop.f32.mrf.mxu0
        %v1502 = vadd.f32 %v1453, %v1501
        %v1503 = vpop.f32.mrf.mxu0
        %v1504 = vadd.f32 %v1455, %v1503
        %1505 = vmatmul.bf16.gmra.mxu0 %v726
        %v1506 = vpop.f32.mrf.mxu0
        %v1507 = vadd.f32 %v1458, %v1506
        %v1508 = vpop.f32.mrf.mxu0
        %v1509 = vadd.f32 %v1460, %v1508
        %1510 = vmatmul.bf16.gmra.mxu0 %v730
        %v1511 = vpop.f32.mrf.mxu0
        %v1512 = vadd.f32 %v1463, %v1511
        %v1513 = vpop.f32.mrf.mxu0
        %v1514 = vadd.f32 %v1465, %v1513
        %1515 = vmatmul.bf16.gmra.mxu0 %v734
        %v1516 = vpop.f32.mrf.mxu0
        %v1517 = vadd.f32 %v1468, %v1516
        %v1518 = vpop.f32.mrf.mxu0
        %v1519 = vadd.f32 %v1470, %v1518
        %1520 = vmatmul.bf16.gmra.mxu0 %v738
        %v1521 = vpop.f32.mrf.mxu0
        %v1522 = vadd.f32 %v1473, %v1521
        %v1523 = vpop.f32.mrf.mxu0
        %v1524 = vadd.f32 %v1475, %v1523
        %1525 = vmatmul.bf16.gmra.mxu0 %v742
        %v1526 = vpop.f32.mrf.mxu0
        %v1527 = vadd.f32 %v1478, %v1526
        %v1528 = vpop.f32.mrf.mxu0
        %v1529 = vadd.f32 %v1480, %v1528
        %1530 = vdwg.mxu0
        %1531 = vmatpush.bf16.msra.mxu0 %v1252
        %1532 = vmatpush.bf16.msra.mxu0 %v1248
        %1533 = vmatpush.bf16.msra.mxu0 %v1244
        %1534 = vmatpush.bf16.msra.mxu0 %v1240
        %1535 = vmatpush.bf16.msra.mxu0 %v1236
        %1536 = vmatpush.bf16.msra.mxu0 %v1232
        %1537 = vmatpush.bf16.msra.mxu0 %v1228
        %1538 = vmatpush.bf16.msra.mxu0 %v1224
        %1539 = vmatmul.bf16.gmra.mxu0 %v715
        %v1540 = vpop.f32.mrf.mxu0
        %v1541 = vadd.f32 %v1492, %v1540
        %v1542 = vpop.f32.mrf.mxu0
        %v1543 = vadd.f32 %v1494, %v1542
        %1544 = vmatmul.bf16.gmra.mxu0 %v719
        %v1545 = vpop.f32.mrf.mxu0
        %v1546 = vadd.f32 %v1497, %v1545
        %v1547 = vpop.f32.mrf.mxu0
        %v1548 = vadd.f32 %v1499, %v1547
        %1549 = vmatmul.bf16.gmra.mxu0 %v723
        %v1550 = vpop.f32.mrf.mxu0
        %v1551 = vadd.f32 %v1502, %v1550
        %v1552 = vpop.f32.mrf.mxu0
        %v1553 = vadd.f32 %v1504, %v1552
        %1554 = vmatmul.bf16.gmra.mxu0 %v727
        %v1555 = vpop.f32.mrf.mxu0
        %v1556 = vadd.f32 %v1507, %v1555
        %v1557 = vpop.f32.mrf.mxu0
        %v1558 = vadd.f32 %v1509, %v1557
        %1559 = vmatmul.bf16.gmra.mxu0 %v731
        %v1560 = vpop.f32.mrf.mxu0
        %v1561 = vadd.f32 %v1512, %v1560
        %v1562 = vpop.f32.mrf.mxu0
        %v1563 = vadd.f32 %v1514, %v1562
        %1564 = vmatmul.bf16.gmra.mxu0 %v735
        %v1565 = vpop.f32.mrf.mxu0
        %v1566 = vadd.f32 %v1517, %v1565
        %v1567 = vpop.f32.mrf.mxu0
        %v1568 = vadd.f32 %v1519, %v1567
        %1569 = vmatmul.bf16.gmra.mxu0 %v739
        %v1570 = vpop.f32.mrf.mxu0
        %v1571 = vadd.f32 %v1522, %v1570
        %v1572 = vpop.f32.mrf.mxu0
        %v1573 = vadd.f32 %v1524, %v1572
        %1574 = vmatmul.bf16.gmra.mxu0 %v743
        %v1575 = vpop.f32.mrf.mxu0
        %v1576 = vadd.f32 %v1527, %v1575
        %v1577 = vpop.f32.mrf.mxu0
        %v1578 = vadd.f32 %v1529, %v1577
        %1579 = vdwg.mxu0
        %1580 = vmatpush.bf16.msra.mxu0 %v1157
        %1581 = vmatpush.bf16.msra.mxu0 %v1153
        %1582 = vmatpush.bf16.msra.mxu0 %v1149
        %1583 = vmatpush.bf16.msra.mxu0 %v1145
        %1584 = vmatpush.bf16.msra.mxu0 %v1141
        %1585 = vmatpush.bf16.msra.mxu0 %v1137
        %1586 = vmatpush.bf16.msra.mxu0 %v1133
        %1587 = vmatpush.bf16.msra.mxu0 %v1129
        %1588 = vmatmul.bf16.gmra.mxu0 %v712
        %v1589 = vpop.f32.mrf.mxu0
        %v1590 = vadd.f32 0.0, %v1589
        %v1591 = vpop.f32.mrf.mxu0
        %v1592 = vadd.f32 0.0, %v1591
        %1593 = vmatmul.bf16.gmra.mxu0 %v716
        %v1594 = vpop.f32.mrf.mxu0
        %v1595 = vadd.f32 0.0, %v1594
        %v1596 = vpop.f32.mrf.mxu0
        %v1597 = vadd.f32 0.0, %v1596
        %1598 = vmatmul.bf16.gmra.mxu0 %v720
        %v1599 = vpop.f32.mrf.mxu0
        %v1600 = vadd.f32 0.0, %v1599
        %v1601 = vpop.f32.mrf.mxu0
        %v1602 = vadd.f32 0.0, %v1601
        %1603 = vmatmul.bf16.gmra.mxu0 %v724
        %v1604 = vpop.f32.mrf.mxu0
        %v1605 = vadd.f32 0.0, %v1604
        %v1606 = vpop.f32.mrf.mxu0
        %v1607 = vadd.f32 0.0, %v1606
        %1608 = vmatmul.bf16.gmra.mxu0 %v728
        %v1609 = vpop.f32.mrf.mxu0
        %v1610 = vadd.f32 0.0, %v1609
        %v1611 = vpop.f32.mrf.mxu0
        %v1612 = vadd.f32 0.0, %v1611
        %1613 = vmatmul.bf16.gmra.mxu0 %v732
        %v1614 = vpop.f32.mrf.mxu0
        %v1615 = vadd.f32 0.0, %v1614
        %v1616 = vpop.f32.mrf.mxu0
        %v1617 = vadd.f32 0.0, %v1616
        %1618 = vmatmul.bf16.gmra.mxu0 %v736
        %v1619 = vpop.f32.mrf.mxu0
        %v1620 = vadd.f32 0.0, %v1619
        %v1621 = vpop.f32.mrf.mxu0
        %v1622 = vadd.f32 0.0, %v1621
        %1623 = vmatmul.bf16.gmra.mxu0 %v740
        %v1624 = vpop.f32.mrf.mxu0
        %v1625 = vadd.f32 0.0, %v1624
        %v1626 = vpop.f32.mrf.mxu0
        %v1627 = vadd.f32 0.0, %v1626
        %1628 = vdwg.mxu0
        %1629 = vmatpush.bf16.msra.mxu0 %v1189
        %1630 = vmatpush.bf16.msra.mxu0 %v1185
        %1631 = vmatpush.bf16.msra.mxu0 %v1181
        %1632 = vmatpush.bf16.msra.mxu0 %v1177
        %1633 = vmatpush.bf16.msra.mxu0 %v1173
        %1634 = vmatpush.bf16.msra.mxu0 %v1169
        %1635 = vmatpush.bf16.msra.mxu0 %v1165
        %1636 = vmatpush.bf16.msra.mxu0 %v1161
        %1637 = vmatmul.bf16.gmra.mxu0 %v713
        %v1638 = vpop.f32.mrf.mxu0
        %v1639 = vadd.f32 %v1590, %v1638
        %v1640 = vpop.f32.mrf.mxu0
        %v1641 = vadd.f32 %v1592, %v1640
        %1642 = vmatmul.bf16.gmra.mxu0 %v717
        %v1643 = vpop.f32.mrf.mxu0
        %v1644 = vadd.f32 %v1595, %v1643
        %v1645 = vpop.f32.mrf.mxu0
        %v1646 = vadd.f32 %v1597, %v1645
        %1647 = vmatmul.bf16.gmra.mxu0 %v721
        %v1648 = vpop.f32.mrf.mxu0
        %v1649 = vadd.f32 %v1600, %v1648
        %v1650 = vpop.f32.mrf.mxu0
        %v1651 = vadd.f32 %v1602, %v1650
        %1652 = vmatmul.bf16.gmra.mxu0 %v725
        %v1653 = vpop.f32.mrf.mxu0
        %v1654 = vadd.f32 %v1605, %v1653
        %v1655 = vpop.f32.mrf.mxu0
        %v1656 = vadd.f32 %v1607, %v1655
        %1657 = vmatmul.bf16.gmra.mxu0 %v729
        %v1658 = vpop.f32.mrf.mxu0
        %v1659 = vadd.f32 %v1610, %v1658
        %v1660 = vpop.f32.mrf.mxu0
        %v1661 = vadd.f32 %v1612, %v1660
        %1662 = vmatmul.bf16.gmra.mxu0 %v733
        %v1663 = vpop.f32.mrf.mxu0
        %v1664 = vadd.f32 %v1615, %v1663
        %v1665 = vpop.f32.mrf.mxu0
        %v1666 = vadd.f32 %v1617, %v1665
        %1667 = vmatmul.bf16.gmra.mxu0 %v737
        %v1668 = vpop.f32.mrf.mxu0
        %v1669 = vadd.f32 %v1620, %v1668
        %v1670 = vpop.f32.mrf.mxu0
        %v1671 = vadd.f32 %v1622, %v1670
        %1672 = vmatmul.bf16.gmra.mxu0 %v741
        %v1673 = vpop.f32.mrf.mxu0
        %v1674 = vadd.f32 %v1625, %v1673
        %v1675 = vpop.f32.mrf.mxu0
        %v1676 = vadd.f32 %v1627, %v1675
        %1677 = vdwg.mxu0
        %1678 = vmatpush.bf16.msra.mxu0 %v1221
        %1679 = vmatpush.bf16.msra.mxu0 %v1217
        %1680 = vmatpush.bf16.msra.mxu0 %v1213
        %1681 = vmatpush.bf16.msra.mxu0 %v1209
        %1682 = vmatpush.bf16.msra.mxu0 %v1205
        %1683 = vmatpush.bf16.msra.mxu0 %v1201
        %1684 = vmatpush.bf16.msra.mxu0 %v1197
        %1685 = vmatpush.bf16.msra.mxu0 %v1193
        %1686 = vmatmul.bf16.gmra.mxu0 %v714
        %v1687 = vpop.f32.mrf.mxu0
        %v1688 = vadd.f32 %v1639, %v1687
        %v1689 = vpop.f32.mrf.mxu0
        %v1690 = vadd.f32 %v1641, %v1689
        %1691 = vmatmul.bf16.gmra.mxu0 %v718
        %v1692 = vpop.f32.mrf.mxu0
        %v1693 = vadd.f32 %v1644, %v1692
        %v1694 = vpop.f32.mrf.mxu0
        %v1695 = vadd.f32 %v1646, %v1694
        %1696 = vmatmul.bf16.gmra.mxu0 %v722
        %v1697 = vpop.f32.mrf.mxu0
        %v1698 = vadd.f32 %v1649, %v1697
        %v1699 = vpop.f32.mrf.mxu0
        %v1700 = vadd.f32 %v1651, %v1699
        %1701 = vmatmul.bf16.gmra.mxu0 %v726
        %v1702 = vpop.f32.mrf.mxu0
        %v1703 = vadd.f32 %v1654, %v1702
        %v1704 = vpop.f32.mrf.mxu0
        %v1705 = vadd.f32 %v1656, %v1704
        %1706 = vmatmul.bf16.gmra.mxu0 %v730
        %v1707 = vpop.f32.mrf.mxu0
        %v1708 = vadd.f32 %v1659, %v1707
        %v1709 = vpop.f32.mrf.mxu0
        %v1710 = vadd.f32 %v1661, %v1709
        %1711 = vmatmul.bf16.gmra.mxu0 %v734
        %v1712 = vpop.f32.mrf.mxu0
        %v1713 = vadd.f32 %v1664, %v1712
        %v1714 = vpop.f32.mrf.mxu0
        %v1715 = vadd.f32 %v1666, %v1714
        %1716 = vmatmul.bf16.gmra.mxu0 %v738
        %v1717 = vpop.f32.mrf.mxu0
        %v1718 = vadd.f32 %v1669, %v1717
        %v1719 = vpop.f32.mrf.mxu0
        %v1720 = vadd.f32 %v1671, %v1719
        %1721 = vmatmul.bf16.gmra.mxu0 %v742
        %v1722 = vpop.f32.mrf.mxu0
        %v1723 = vadd.f32 %v1674, %v1722
        %v1724 = vpop.f32.mrf.mxu0
        %v1725 = vadd.f32 %v1676, %v1724
        %1726 = vdwg.mxu0
        %1727 = vmatpush.bf16.msra.mxu0 %v1253
        %1728 = vmatpush.bf16.msra.mxu0 %v1249
        %1729 = vmatpush.bf16.msra.mxu0 %v1245
        %1730 = vmatpush.bf16.msra.mxu0 %v1241
        %1731 = vmatpush.bf16.msra.mxu0 %v1237
        %1732 = vmatpush.bf16.msra.mxu0 %v1233
        %1733 = vmatpush.bf16.msra.mxu0 %v1229
        %1734 = vmatpush.bf16.msra.mxu0 %v1225
        %1735 = vmatmul.bf16.gmra.mxu0 %v715
        %v1736 = vpop.f32.mrf.mxu0
        %v1737 = vadd.f32 %v1688, %v1736
        %v1738 = vpop.f32.mrf.mxu0
        %v1739 = vadd.f32 %v1690, %v1738
        %1740 = vmatmul.bf16.gmra.mxu0 %v719
        %v1741 = vpop.f32.mrf.mxu0
        %v1742 = vadd.f32 %v1693, %v1741
        %v1743 = vpop.f32.mrf.mxu0
        %v1744 = vadd.f32 %v1695, %v1743
        %1745 = vmatmul.bf16.gmra.mxu0 %v723
        %v1746 = vpop.f32.mrf.mxu0
        %v1747 = vadd.f32 %v1698, %v1746
        %v1748 = vpop.f32.mrf.mxu0
        %v1749 = vadd.f32 %v1700, %v1748
        %1750 = vmatmul.bf16.gmra.mxu0 %v727
        %v1751 = vpop.f32.mrf.mxu0
        %v1752 = vadd.f32 %v1703, %v1751
        %v1753 = vpop.f32.mrf.mxu0
        %v1754 = vadd.f32 %v1705, %v1753
        %1755 = vmatmul.bf16.gmra.mxu0 %v731
        %v1756 = vpop.f32.mrf.mxu0
        %v1757 = vadd.f32 %v1708, %v1756
        %v1758 = vpop.f32.mrf.mxu0
        %v1759 = vadd.f32 %v1710, %v1758
        %1760 = vmatmul.bf16.gmra.mxu0 %v735
        %v1761 = vpop.f32.mrf.mxu0
        %v1762 = vadd.f32 %v1713, %v1761
        %v1763 = vpop.f32.mrf.mxu0
        %v1764 = vadd.f32 %v1715, %v1763
        %1765 = vmatmul.bf16.gmra.mxu0 %v739
        %v1766 = vpop.f32.mrf.mxu0
        %v1767 = vadd.f32 %v1718, %v1766
        %v1768 = vpop.f32.mrf.mxu0
        %v1769 = vadd.f32 %v1720, %v1768
        %1770 = vmatmul.bf16.gmra.mxu0 %v743
        %v1771 = vpop.f32.mrf.mxu0
        %v1772 = vadd.f32 %v1723, %v1771
        %v1773 = vpop.f32.mrf.mxu0
        %v1774 = vadd.f32 %v1725, %v1773
        %1775 = vdwg.mxu0
        %1776 = vmatpush.bf16.msra.mxu0 %v1158
        %1777 = vmatpush.bf16.msra.mxu0 %v1154
        %1778 = vmatpush.bf16.msra.mxu0 %v1150
        %1779 = vmatpush.bf16.msra.mxu0 %v1146
        %1780 = vmatpush.bf16.msra.mxu0 %v1142
        %1781 = vmatpush.bf16.msra.mxu0 %v1138
        %1782 = vmatpush.bf16.msra.mxu0 %v1134
        %1783 = vmatpush.bf16.msra.mxu0 %v1130
        %1784 = vmatmul.bf16.gmra.mxu0 %v712
        %v1785 = vpop.f32.mrf.mxu0
        %v1786 = vadd.f32 0.0, %v1785
        %v1787 = vpop.f32.mrf.mxu0
        %v1788 = vadd.f32 0.0, %v1787
        %1789 = vmatmul.bf16.gmra.mxu0 %v716
        %v1790 = vpop.f32.mrf.mxu0
        %v1791 = vadd.f32 0.0, %v1790
        %v1792 = vpop.f32.mrf.mxu0
        %v1793 = vadd.f32 0.0, %v1792
        %1794 = vmatmul.bf16.gmra.mxu0 %v720
        %v1795 = vpop.f32.mrf.mxu0
        %v1796 = vadd.f32 0.0, %v1795
        %v1797 = vpop.f32.mrf.mxu0
        %v1798 = vadd.f32 0.0, %v1797
        %1799 = vmatmul.bf16.gmra.mxu0 %v724
        %v1800 = vpop.f32.mrf.mxu0
        %v1801 = vadd.f32 0.0, %v1800
        %v1802 = vpop.f32.mrf.mxu0
        %v1803 = vadd.f32 0.0, %v1802
        %1804 = vmatmul.bf16.gmra.mxu0 %v728
        %v1805 = vpop.f32.mrf.mxu0
        %v1806 = vadd.f32 0.0, %v1805
        %v1807 = vpop.f32.mrf.mxu0
        %v1808 = vadd.f32 0.0, %v1807
        %1809 = vmatmul.bf16.gmra.mxu0 %v732
        %v1810 = vpop.f32.mrf.mxu0
        %v1811 = vadd.f32 0.0, %v1810
        %v1812 = vpop.f32.mrf.mxu0
        %v1813 = vadd.f32 0.0, %v1812
        %1814 = vmatmul.bf16.gmra.mxu0 %v736
        %v1815 = vpop.f32.mrf.mxu0
        %v1816 = vadd.f32 0.0, %v1815
        %v1817 = vpop.f32.mrf.mxu0
        %v1818 = vadd.f32 0.0, %v1817
        %1819 = vmatmul.bf16.gmra.mxu0 %v740
        %v1820 = vpop.f32.mrf.mxu0
        %v1821 = vadd.f32 0.0, %v1820
        %v1822 = vpop.f32.mrf.mxu0
        %v1823 = vadd.f32 0.0, %v1822
        %1824 = vdwg.mxu0
        %1825 = vmatpush.bf16.msra.mxu0 %v1190
        %1826 = vmatpush.bf16.msra.mxu0 %v1186
        %1827 = vmatpush.bf16.msra.mxu0 %v1182
        %1828 = vmatpush.bf16.msra.mxu0 %v1178
        %1829 = vmatpush.bf16.msra.mxu0 %v1174
        %1830 = vmatpush.bf16.msra.mxu0 %v1170
        %1831 = vmatpush.bf16.msra.mxu0 %v1166
        %1832 = vmatpush.bf16.msra.mxu0 %v1162
        %1833 = vmatmul.bf16.gmra.mxu0 %v713
        %v1834 = vpop.f32.mrf.mxu0
        %v1835 = vadd.f32 %v1786, %v1834
        %v1836 = vpop.f32.mrf.mxu0
        %v1837 = vadd.f32 %v1788, %v1836
        %1838 = vmatmul.bf16.gmra.mxu0 %v717
        %v1839 = vpop.f32.mrf.mxu0
        %v1840 = vadd.f32 %v1791, %v1839
        %v1841 = vpop.f32.mrf.mxu0
        %v1842 = vadd.f32 %v1793, %v1841
        %1843 = vmatmul.bf16.gmra.mxu0 %v721
        %v1844 = vpop.f32.mrf.mxu0
        %v1845 = vadd.f32 %v1796, %v1844
        %v1846 = vpop.f32.mrf.mxu0
        %v1847 = vadd.f32 %v1798, %v1846
        %1848 = vmatmul.bf16.gmra.mxu0 %v725
        %v1849 = vpop.f32.mrf.mxu0
        %v1850 = vadd.f32 %v1801, %v1849
        %v1851 = vpop.f32.mrf.mxu0
        %v1852 = vadd.f32 %v1803, %v1851
        %1853 = vmatmul.bf16.gmra.mxu0 %v729
        %v1854 = vpop.f32.mrf.mxu0
        %v1855 = vadd.f32 %v1806, %v1854
        %v1856 = vpop.f32.mrf.mxu0
        %v1857 = vadd.f32 %v1808, %v1856
        %1858 = vmatmul.bf16.gmra.mxu0 %v733
        %v1859 = vpop.f32.mrf.mxu0
        %v1860 = vadd.f32 %v1811, %v1859
        %v1861 = vpop.f32.mrf.mxu0
        %v1862 = vadd.f32 %v1813, %v1861
        %1863 = vmatmul.bf16.gmra.mxu0 %v737
        %v1864 = vpop.f32.mrf.mxu0
        %v1865 = vadd.f32 %v1816, %v1864
        %v1866 = vpop.f32.mrf.mxu0
        %v1867 = vadd.f32 %v1818, %v1866
        %1868 = vmatmul.bf16.gmra.mxu0 %v741
        %v1869 = vpop.f32.mrf.mxu0
        %v1870 = vadd.f32 %v1821, %v1869
        %v1871 = vpop.f32.mrf.mxu0
        %v1872 = vadd.f32 %v1823, %v1871
        %1873 = vdwg.mxu0
        %1874 = vmatpush.bf16.msra.mxu0 %v1222
        %1875 = vmatpush.bf16.msra.mxu0 %v1218
        %1876 = vmatpush.bf16.msra.mxu0 %v1214
        %1877 = vmatpush.bf16.msra.mxu0 %v1210
        %1878 = vmatpush.bf16.msra.mxu0 %v1206
        %1879 = vmatpush.bf16.msra.mxu0 %v1202
        %1880 = vmatpush.bf16.msra.mxu0 %v1198
        %1881 = vmatpush.bf16.msra.mxu0 %v1194
        %1882 = vmatmul.bf16.gmra.mxu0 %v714
        %v1883 = vpop.f32.mrf.mxu0
        %v1884 = vadd.f32 %v1835, %v1883
        %v1885 = vpop.f32.mrf.mxu0
        %v1886 = vadd.f32 %v1837, %v1885
        %1887 = vmatmul.bf16.gmra.mxu0 %v718
        %v1888 = vpop.f32.mrf.mxu0
        %v1889 = vadd.f32 %v1840, %v1888
        %v1890 = vpop.f32.mrf.mxu0
        %v1891 = vadd.f32 %v1842, %v1890
        %1892 = vmatmul.bf16.gmra.mxu0 %v722
        %v1893 = vpop.f32.mrf.mxu0
        %v1894 = vadd.f32 %v1845, %v1893
        %v1895 = vpop.f32.mrf.mxu0
        %v1896 = vadd.f32 %v1847, %v1895
        %1897 = vmatmul.bf16.gmra.mxu0 %v726
        %v1898 = vpop.f32.mrf.mxu0
        %v1899 = vadd.f32 %v1850, %v1898
        %v1900 = vpop.f32.mrf.mxu0
        %v1901 = vadd.f32 %v1852, %v1900
        %1902 = vmatmul.bf16.gmra.mxu0 %v730
        %v1903 = vpop.f32.mrf.mxu0
        %v1904 = vadd.f32 %v1855, %v1903
        %v1905 = vpop.f32.mrf.mxu0
        %v1906 = vadd.f32 %v1857, %v1905
        %1907 = vmatmul.bf16.gmra.mxu0 %v734
        %v1908 = vpop.f32.mrf.mxu0
        %v1909 = vadd.f32 %v1860, %v1908
        %v1910 = vpop.f32.mrf.mxu0
        %v1911 = vadd.f32 %v1862, %v1910
        %1912 = vmatmul.bf16.gmra.mxu0 %v738
        %v1913 = vpop.f32.mrf.mxu0
        %v1914 = vadd.f32 %v1865, %v1913
        %v1915 = vpop.f32.mrf.mxu0
        %v1916 = vadd.f32 %v1867, %v1915
        %1917 = vmatmul.bf16.gmra.mxu0 %v742
        %v1918 = vpop.f32.mrf.mxu0
        %v1919 = vadd.f32 %v1870, %v1918
        %v1920 = vpop.f32.mrf.mxu0
        %v1921 = vadd.f32 %v1872, %v1920
        %1922 = vdwg.mxu0
        %1923 = vmatpush.bf16.msra.mxu0 %v1254
        %1924 = vmatpush.bf16.msra.mxu0 %v1250
        %1925 = vmatpush.bf16.msra.mxu0 %v1246
        %1926 = vmatpush.bf16.msra.mxu0 %v1242
        %1927 = vmatpush.bf16.msra.mxu0 %v1238
        %1928 = vmatpush.bf16.msra.mxu0 %v1234
        %1929 = vmatpush.bf16.msra.mxu0 %v1230
        %1930 = vmatpush.bf16.msra.mxu0 %v1226
        %1931 = vmatmul.bf16.gmra.mxu0 %v715
        %v1932 = vpop.f32.mrf.mxu0
        %v1933 = vadd.f32 %v1884, %v1932
        %v1934 = vpop.f32.mrf.mxu0
        %v1935 = vadd.f32 %v1886, %v1934
        %1936 = vmatmul.bf16.gmra.mxu0 %v719
        %v1937 = vpop.f32.mrf.mxu0
        %v1938 = vadd.f32 %v1889, %v1937
        %v1939 = vpop.f32.mrf.mxu0
        %v1940 = vadd.f32 %v1891, %v1939
        %1941 = vmatmul.bf16.gmra.mxu0 %v723
        %v1942 = vpop.f32.mrf.mxu0
        %v1943 = vadd.f32 %v1894, %v1942
        %v1944 = vpop.f32.mrf.mxu0
        %v1945 = vadd.f32 %v1896, %v1944
        %1946 = vmatmul.bf16.gmra.mxu0 %v727
        %v1947 = vpop.f32.mrf.mxu0
        %v1948 = vadd.f32 %v1899, %v1947
        %v1949 = vpop.f32.mrf.mxu0
        %v1950 = vadd.f32 %v1901, %v1949
        %1951 = vmatmul.bf16.gmra.mxu0 %v731
        %v1952 = vpop.f32.mrf.mxu0
        %v1953 = vadd.f32 %v1904, %v1952
        %v1954 = vpop.f32.mrf.mxu0
        %v1955 = vadd.f32 %v1906, %v1954
        %1956 = vmatmul.bf16.gmra.mxu0 %v735
        %v1957 = vpop.f32.mrf.mxu0
        %v1958 = vadd.f32 %v1909, %v1957
        %v1959 = vpop.f32.mrf.mxu0
        %v1960 = vadd.f32 %v1911, %v1959
        %1961 = vmatmul.bf16.gmra.mxu0 %v739
        %v1962 = vpop.f32.mrf.mxu0
        %v1963 = vadd.f32 %v1914, %v1962
        %v1964 = vpop.f32.mrf.mxu0
        %v1965 = vadd.f32 %v1916, %v1964
        %1966 = vmatmul.bf16.gmra.mxu0 %v743
        %v1967 = vpop.f32.mrf.mxu0
        %v1968 = vadd.f32 %v1919, %v1967
        %v1969 = vpop.f32.mrf.mxu0
        %v1970 = vadd.f32 %v1921, %v1969
        %1971 = vdwg.mxu0
        %1972 = vmatpush.bf16.msra.mxu0 %v1159
        %1973 = vmatpush.bf16.msra.mxu0 %v1155
        %1974 = vmatpush.bf16.msra.mxu0 %v1151
        %1975 = vmatpush.bf16.msra.mxu0 %v1147
        %1976 = vmatpush.bf16.msra.mxu0 %v1143
        %1977 = vmatpush.bf16.msra.mxu0 %v1139
        %1978 = vmatpush.bf16.msra.mxu0 %v1135
        %1979 = vmatpush.bf16.msra.mxu0 %v1131
        %1980 = vmatmul.bf16.gmra.mxu0 %v712
        %v1981 = vpop.f32.mrf.mxu0
        %v1982 = vadd.f32 0.0, %v1981
        %v1983 = vpop.f32.mrf.mxu0
        %v1984 = vadd.f32 0.0, %v1983
        %1985 = vmatmul.bf16.gmra.mxu0 %v716
        %v1986 = vpop.f32.mrf.mxu0
        %v1987 = vadd.f32 0.0, %v1986
        %v1988 = vpop.f32.mrf.mxu0
        %v1989 = vadd.f32 0.0, %v1988
        %1990 = vmatmul.bf16.gmra.mxu0 %v720
        %v1991 = vpop.f32.mrf.mxu0
        %v1992 = vadd.f32 0.0, %v1991
        %v1993 = vpop.f32.mrf.mxu0
        %v1994 = vadd.f32 0.0, %v1993
        %1995 = vmatmul.bf16.gmra.mxu0 %v724
        %v1996 = vpop.f32.mrf.mxu0
        %v1997 = vadd.f32 0.0, %v1996
        %v1998 = vpop.f32.mrf.mxu0
        %v1999 = vadd.f32 0.0, %v1998
        %2000 = vmatmul.bf16.gmra.mxu0 %v728
        %v2001 = vpop.f32.mrf.mxu0
        %v2002 = vadd.f32 0.0, %v2001
        %v2003 = vpop.f32.mrf.mxu0
        %v2004 = vadd.f32 0.0, %v2003
        %2005 = vmatmul.bf16.gmra.mxu0 %v732
        %v2006 = vpop.f32.mrf.mxu0
        %v2007 = vadd.f32 0.0, %v2006
        %v2008 = vpop.f32.mrf.mxu0
        %v2009 = vadd.f32 0.0, %v2008
        %2010 = vmatmul.bf16.gmra.mxu0 %v736
        %v2011 = vpop.f32.mrf.mxu0
        %v2012 = vadd.f32 0.0, %v2011
        %v2013 = vpop.f32.mrf.mxu0
        %v2014 = vadd.f32 0.0, %v2013
        %2015 = vmatmul.bf16.gmra.mxu0 %v740
        %v2016 = vpop.f32.mrf.mxu0
        %v2017 = vadd.f32 0.0, %v2016
        %v2018 = vpop.f32.mrf.mxu0
        %v2019 = vadd.f32 0.0, %v2018
        %2020 = vdwg.mxu0
        %2021 = vmatpush.bf16.msra.mxu0 %v1191
        %2022 = vmatpush.bf16.msra.mxu0 %v1187
        %2023 = vmatpush.bf16.msra.mxu0 %v1183
        %2024 = vmatpush.bf16.msra.mxu0 %v1179
        %2025 = vmatpush.bf16.msra.mxu0 %v1175
        %2026 = vmatpush.bf16.msra.mxu0 %v1171
        %2027 = vmatpush.bf16.msra.mxu0 %v1167
        %2028 = vmatpush.bf16.msra.mxu0 %v1163
        %2029 = vmatmul.bf16.gmra.mxu0 %v713
        %v2030 = vpop.f32.mrf.mxu0
        %v2031 = vadd.f32 %v1982, %v2030
        %v2032 = vpop.f32.mrf.mxu0
        %v2033 = vadd.f32 %v1984, %v2032
        %2034 = vmatmul.bf16.gmra.mxu0 %v717
        %v2035 = vpop.f32.mrf.mxu0
        %v2036 = vadd.f32 %v1987, %v2035
        %v2037 = vpop.f32.mrf.mxu0
        %v2038 = vadd.f32 %v1989, %v2037
        %2039 = vmatmul.bf16.gmra.mxu0 %v721
        %v2040 = vpop.f32.mrf.mxu0
        %v2041 = vadd.f32 %v1992, %v2040
        %v2042 = vpop.f32.mrf.mxu0
        %v2043 = vadd.f32 %v1994, %v2042
        %2044 = vmatmul.bf16.gmra.mxu0 %v725
        %v2045 = vpop.f32.mrf.mxu0
        %v2046 = vadd.f32 %v1997, %v2045
        %v2047 = vpop.f32.mrf.mxu0
        %v2048 = vadd.f32 %v1999, %v2047
        %2049 = vmatmul.bf16.gmra.mxu0 %v729
        %v2050 = vpop.f32.mrf.mxu0
        %v2051 = vadd.f32 %v2002, %v2050
        %v2052 = vpop.f32.mrf.mxu0
        %v2053 = vadd.f32 %v2004, %v2052
        %2054 = vmatmul.bf16.gmra.mxu0 %v733
        %v2055 = vpop.f32.mrf.mxu0
        %v2056 = vadd.f32 %v2007, %v2055
        %v2057 = vpop.f32.mrf.mxu0
        %v2058 = vadd.f32 %v2009, %v2057
        %2059 = vmatmul.bf16.gmra.mxu0 %v737
        %v2060 = vpop.f32.mrf.mxu0
        %v2061 = vadd.f32 %v2012, %v2060
        %v2062 = vpop.f32.mrf.mxu0
        %v2063 = vadd.f32 %v2014, %v2062
        %2064 = vmatmul.bf16.gmra.mxu0 %v741
        %v2065 = vpop.f32.mrf.mxu0
        %v2066 = vadd.f32 %v2017, %v2065
        %v2067 = vpop.f32.mrf.mxu0
        %v2068 = vadd.f32 %v2019, %v2067
        %2069 = vdwg.mxu0
        %2070 = vmatpush.bf16.msra.mxu0 %v1223
        %2071 = vmatpush.bf16.msra.mxu0 %v1219
        %2072 = vmatpush.bf16.msra.mxu0 %v1215
        %2073 = vmatpush.bf16.msra.mxu0 %v1211
        %2074 = vmatpush.bf16.msra.mxu0 %v1207
        %2075 = vmatpush.bf16.msra.mxu0 %v1203
        %2076 = vmatpush.bf16.msra.mxu0 %v1199
        %2077 = vmatpush.bf16.msra.mxu0 %v1195
        %2078 = vmatmul.bf16.gmra.mxu0 %v714
        %v2079 = vpop.f32.mrf.mxu0
        %v2080 = vadd.f32 %v2031, %v2079
        %v2081 = vpop.f32.mrf.mxu0
        %v2082 = vadd.f32 %v2033, %v2081
        %2083 = vmatmul.bf16.gmra.mxu0 %v718
        %v2084 = vpop.f32.mrf.mxu0
        %v2085 = vadd.f32 %v2036, %v2084
        %v2086 = vpop.f32.mrf.mxu0
        %v2087 = vadd.f32 %v2038, %v2086
        %2088 = vmatmul.bf16.gmra.mxu0 %v722
        %v2089 = vpop.f32.mrf.mxu0
        %v2090 = vadd.f32 %v2041, %v2089
        %v2091 = vpop.f32.mrf.mxu0
        %v2092 = vadd.f32 %v2043, %v2091
        %2093 = vmatmul.bf16.gmra.mxu0 %v726
        %v2094 = vpop.f32.mrf.mxu0
        %v2095 = vadd.f32 %v2046, %v2094
        %v2096 = vpop.f32.mrf.mxu0
        %v2097 = vadd.f32 %v2048, %v2096
        %2098 = vmatmul.bf16.gmra.mxu0 %v730
        %v2099 = vpop.f32.mrf.mxu0
        %v2100 = vadd.f32 %v2051, %v2099
        %v2101 = vpop.f32.mrf.mxu0
        %v2102 = vadd.f32 %v2053, %v2101
        %2103 = vmatmul.bf16.gmra.mxu0 %v734
        %v2104 = vpop.f32.mrf.mxu0
        %v2105 = vadd.f32 %v2056, %v2104
        %v2106 = vpop.f32.mrf.mxu0
        %v2107 = vadd.f32 %v2058, %v2106
        %2108 = vmatmul.bf16.gmra.mxu0 %v738
        %v2109 = vpop.f32.mrf.mxu0
        %v2110 = vadd.f32 %v2061, %v2109
        %v2111 = vpop.f32.mrf.mxu0
        %v2112 = vadd.f32 %v2063, %v2111
        %2113 = vmatmul.bf16.gmra.mxu0 %v742
        %v2114 = vpop.f32.mrf.mxu0
        %v2115 = vadd.f32 %v2066, %v2114
        %v2116 = vpop.f32.mrf.mxu0
        %v2117 = vadd.f32 %v2068, %v2116
        %2118 = vdwg.mxu0
        %2119 = vmatpush.bf16.msra.mxu0 %v1255
        %2120 = vmatpush.bf16.msra.mxu0 %v1251
        %2121 = vmatpush.bf16.msra.mxu0 %v1247
        %2122 = vmatpush.bf16.msra.mxu0 %v1243
        %2123 = vmatpush.bf16.msra.mxu0 %v1239
        %2124 = vmatpush.bf16.msra.mxu0 %v1235
        %2125 = vmatpush.bf16.msra.mxu0 %v1231
        %2126 = vmatpush.bf16.msra.mxu0 %v1227
        %2127 = vmatmul.bf16.gmra.mxu0 %v715
        %v2128 = vpop.f32.mrf.mxu0
        %v2129 = vadd.f32 %v2080, %v2128
        %v2130 = vpop.f32.mrf.mxu0
        %v2131 = vadd.f32 %v2082, %v2130
        %2132 = vmatmul.bf16.gmra.mxu0 %v719
        %v2133 = vpop.f32.mrf.mxu0
        %v2134 = vadd.f32 %v2085, %v2133
        %v2135 = vpop.f32.mrf.mxu0
        %v2136 = vadd.f32 %v2087, %v2135
        %2137 = vmatmul.bf16.gmra.mxu0 %v723
        %v2138 = vpop.f32.mrf.mxu0
        %v2139 = vadd.f32 %v2090, %v2138
        %v2140 = vpop.f32.mrf.mxu0
        %v2141 = vadd.f32 %v2092, %v2140
        %2142 = vmatmul.bf16.gmra.mxu0 %v727
        %v2143 = vpop.f32.mrf.mxu0
        %v2144 = vadd.f32 %v2095, %v2143
        %v2145 = vpop.f32.mrf.mxu0
        %v2146 = vadd.f32 %v2097, %v2145
        %2147 = vmatmul.bf16.gmra.mxu0 %v731
        %v2148 = vpop.f32.mrf.mxu0
        %v2149 = vadd.f32 %v2100, %v2148
        %v2150 = vpop.f32.mrf.mxu0
        %v2151 = vadd.f32 %v2102, %v2150
        %2152 = vmatmul.bf16.gmra.mxu0 %v735
        %v2153 = vpop.f32.mrf.mxu0
        %v2154 = vadd.f32 %v2105, %v2153
        %v2155 = vpop.f32.mrf.mxu0
        %v2156 = vadd.f32 %v2107, %v2155
        %2157 = vmatmul.bf16.gmra.mxu0 %v739
        %v2158 = vpop.f32.mrf.mxu0
        %v2159 = vadd.f32 %v2110, %v2158
        %v2160 = vpop.f32.mrf.mxu0
        %v2161 = vadd.f32 %v2112, %v2160
        %2162 = vmatmul.bf16.gmra.mxu0 %v743
        %v2163 = vpop.f32.mrf.mxu0
        %v2164 = vadd.f32 %v2115, %v2163
        %v2165 = vpop.f32.mrf.mxu0
        %v2166 = vadd.f32 %v2117, %v2165
        %2167 = vdwg.mxu0
        %v2168 = vmax.f32 %v1541, 0.0
        %v2169 = vmax.f32 %v1737, 0.0
        %v2170 = vmax.f32 %v1933, 0.0
        %v2171 = vmax.f32 %v2129, 0.0
        %v2172 = vmax.f32 %v1543, 0.0
        %v2173 = vmax.f32 %v1739, 0.0
        %v2174 = vmax.f32 %v1935, 0.0
        %v2175 = vmax.f32 %v2131, 0.0
        %v2176 = vmax.f32 %v1546, 0.0
        %v2177 = vmax.f32 %v1742, 0.0
        %v2178 = vmax.f32 %v1938, 0.0
        %v2179 = vmax.f32 %v2134, 0.0
        %v2180 = vmax.f32 %v1548, 0.0
        %v2181 = vmax.f32 %v1744, 0.0
        %v2182 = vmax.f32 %v1940, 0.0
        %v2183 = vmax.f32 %v2136, 0.0
        %v2184 = vmax.f32 %v1551, 0.0
        %v2185 = vmax.f32 %v1747, 0.0
        %v2186 = vmax.f32 %v1943, 0.0
        %v2187 = vmax.f32 %v2139, 0.0
        %v2188 = vmax.f32 %v1553, 0.0
        %v2189 = vmax.f32 %v1749, 0.0
        %v2190 = vmax.f32 %v1945, 0.0
        %v2191 = vmax.f32 %v2141, 0.0
        %v2192 = vmax.f32 %v1556, 0.0
        %v2193 = vmax.f32 %v1752, 0.0
        %v2194 = vmax.f32 %v1948, 0.0
        %v2195 = vmax.f32 %v2144, 0.0
        %v2196 = vmax.f32 %v1558, 0.0
        %v2197 = vmax.f32 %v1754, 0.0
        %v2198 = vmax.f32 %v1950, 0.0
        %v2199 = vmax.f32 %v2146, 0.0
        %v2200 = vmax.f32 %v1561, 0.0
        %v2201 = vmax.f32 %v1757, 0.0
        %v2202 = vmax.f32 %v1953, 0.0
        %v2203 = vmax.f32 %v2149, 0.0
        %v2204 = vmax.f32 %v1563, 0.0
        %v2205 = vmax.f32 %v1759, 0.0
        %v2206 = vmax.f32 %v1955, 0.0
        %v2207 = vmax.f32 %v2151, 0.0
        %v2208 = vmax.f32 %v1566, 0.0
        %v2209 = vmax.f32 %v1762, 0.0
        %v2210 = vmax.f32 %v1958, 0.0
        %v2211 = vmax.f32 %v2154, 0.0
        %v2212 = vmax.f32 %v1568, 0.0
        %v2213 = vmax.f32 %v1764, 0.0
        %v2214 = vmax.f32 %v1960, 0.0
        %v2215 = vmax.f32 %v2156, 0.0
        %v2216 = vmax.f32 %v1571, 0.0
        %v2217 = vmax.f32 %v1767, 0.0
        %v2218 = vmax.f32 %v1963, 0.0
        %v2219 = vmax.f32 %v2159, 0.0
        %v2220 = vmax.f32 %v1573, 0.0
        %v2221 = vmax.f32 %v1769, 0.0
        %v2222 = vmax.f32 %v1965, 0.0
        %v2223 = vmax.f32 %v2161, 0.0
        %v2224 = vmax.f32 %v1576, 0.0
        %v2225 = vmax.f32 %v1772, 0.0
        %v2226 = vmax.f32 %v1968, 0.0
        %v2227 = vmax.f32 %v2164, 0.0
        %v2228 = vmax.f32 %v1578, 0.0
        %v2229 = vmax.f32 %v1774, 0.0
        %v2230 = vmax.f32 %v1970, 0.0
        %v2231 = vmax.f32 %v2166, 0.0
        %v2232 = vpack.c.bf16 %v2172, %v2168
        %v2233 = vpack.c.bf16 %v2173, %v2169
        %v2234 = vpack.c.bf16 %v2174, %v2170
        %v2235 = vpack.c.bf16 %v2175, %v2171
        %v2236 = vpack.c.bf16 %v2180, %v2176
        %v2237 = vpack.c.bf16 %v2181, %v2177
        %v2238 = vpack.c.bf16 %v2182, %v2178
        %v2239 = vpack.c.bf16 %v2183, %v2179
        %v2240 = vpack.c.bf16 %v2188, %v2184
        %v2241 = vpack.c.bf16 %v2189, %v2185
        %v2242 = vpack.c.bf16 %v2190, %v2186
        %v2243 = vpack.c.bf16 %v2191, %v2187
        %v2244 = vpack.c.bf16 %v2196, %v2192
        %v2245 = vpack.c.bf16 %v2197, %v2193
        %v2246 = vpack.c.bf16 %v2198, %v2194
        %v2247 = vpack.c.bf16 %v2199, %v2195
        %v2248 = vpack.c.bf16 %v2204, %v2200
        %v2249 = vpack.c.bf16 %v2205, %v2201
        %v2250 = vpack.c.bf16 %v2206, %v2202
        %v2251 = vpack.c.bf16 %v2207, %v2203
        %v2252 = vpack.c.bf16 %v2212, %v2208
        %v2253 = vpack.c.bf16 %v2213, %v2209
        %v2254 = vpack.c.bf16 %v2214, %v2210
        %v2255 = vpack.c.bf16 %v2215, %v2211
        %v2256 = vpack.c.bf16 %v2220, %v2216
        %v2257 = vpack.c.bf16 %v2221, %v2217
        %v2258 = vpack.c.bf16 %v2222, %v2218
        %v2259 = vpack.c.bf16 %v2223, %v2219
        %v2260 = vpack.c.bf16 %v2228, %v2224
        %v2261 = vpack.c.bf16 %v2229, %v2225
        %v2262 = vpack.c.bf16 %v2230, %v2226
        %v2263 = vpack.c.bf16 %v2231, %v2227
        %v2392 = vunpack.c.l.b16 %v584
        %v2393 = vunpack.c.h.b16 %v584
        %v2394 = vunpack.c.l.b16 %v585
        %v2395 = vunpack.c.h.b16 %v585
        %v2396 = vunpack.c.l.b16 %v586
        %v2397 = vunpack.c.h.b16 %v586
        %v2398 = vunpack.c.l.b16 %v587
        %v2399 = vunpack.c.h.b16 %v587
        %v2400 = vunpack.c.l.b16 %v588
        %v2401 = vunpack.c.h.b16 %v588
        %v2402 = vunpack.c.l.b16 %v589
        %v2403 = vunpack.c.h.b16 %v589
        %v2404 = vunpack.c.l.b16 %v590
        %v2405 = vunpack.c.h.b16 %v590
        %v2406 = vunpack.c.l.b16 %v591
        %v2407 = vunpack.c.h.b16 %v591
        %v2408 = vunpack.c.l.b16 %v592
        %v2409 = vunpack.c.h.b16 %v592
        %v2410 = vunpack.c.l.b16 %v593
        %v2411 = vunpack.c.h.b16 %v593
        %v2412 = vunpack.c.l.b16 %v594
        %v2413 = vunpack.c.h.b16 %v594
        %v2414 = vunpack.c.l.b16 %v595
        %v2415 = vunpack.c.h.b16 %v595
        %v2416 = vunpack.c.l.b16 %v596
        %v2417 = vunpack.c.h.b16 %v596
        %v2418 = vunpack.c.l.b16 %v597
        %v2419 = vunpack.c.h.b16 %v597
        %v2420 = vunpack.c.l.b16 %v598
        %v2421 = vunpack.c.h.b16 %v598
        %v2422 = vunpack.c.l.b16 %v599
        %v2423 = vunpack.c.h.b16 %v599
        %v2424 = vunpack.c.l.b16 %v600
        %v2425 = vunpack.c.h.b16 %v600
        %v2426 = vunpack.c.l.b16 %v601
        %v2427 = vunpack.c.h.b16 %v601
        %v2428 = vunpack.c.l.b16 %v602
        %v2429 = vunpack.c.h.b16 %v602
        %v2430 = vunpack.c.l.b16 %v603
        %v2431 = vunpack.c.h.b16 %v603
        %v2432 = vunpack.c.l.b16 %v604
        %v2433 = vunpack.c.h.b16 %v604
        %v2434 = vunpack.c.l.b16 %v605
        %v2435 = vunpack.c.h.b16 %v605
        %v2436 = vunpack.c.l.b16 %v606
        %v2437 = vunpack.c.h.b16 %v606
        %v2438 = vunpack.c.l.b16 %v607
        %v2439 = vunpack.c.h.b16 %v607
        %v2440 = vunpack.c.l.b16 %v608
        %v2441 = vunpack.c.h.b16 %v608
        %v2442 = vunpack.c.l.b16 %v609
        %v2443 = vunpack.c.h.b16 %v609
        %v2444 = vunpack.c.l.b16 %v610
        %v2445 = vunpack.c.h.b16 %v610
        %v2446 = vunpack.c.l.b16 %v611
        %v2447 = vunpack.c.h.b16 %v611
        %v2448 = vunpack.c.l.b16 %v612
        %v2449 = vunpack.c.h.b16 %v612
        %v2450 = vunpack.c.l.b16 %v613
        %v2451 = vunpack.c.h.b16 %v613
        %v2452 = vunpack.c.l.b16 %v614
        %v2453 = vunpack.c.h.b16 %v614
        %v2454 = vunpack.c.l.b16 %v615
        %v2455 = vunpack.c.h.b16 %v615
        %v2456 = vunpack.c.l.b16 %v616
        %v2457 = vunpack.c.h.b16 %v616
        %v2458 = vunpack.c.l.b16 %v617
        %v2459 = vunpack.c.h.b16 %v617
        %v2460 = vunpack.c.l.b16 %v618
        %v2461 = vunpack.c.h.b16 %v618
        %v2462 = vunpack.c.l.b16 %v619
        %v2463 = vunpack.c.h.b16 %v619
        %v2464 = vunpack.c.l.b16 %v620
        %v2465 = vunpack.c.h.b16 %v620
        %v2466 = vunpack.c.l.b16 %v621
        %v2467 = vunpack.c.h.b16 %v621
        %v2468 = vunpack.c.l.b16 %v622
        %v2469 = vunpack.c.h.b16 %v622
        %v2470 = vunpack.c.l.b16 %v623
        %v2471 = vunpack.c.h.b16 %v623
        %v2472 = vunpack.c.l.b16 %v624
        %v2473 = vunpack.c.h.b16 %v624
        %v2474 = vunpack.c.l.b16 %v625
        %v2475 = vunpack.c.h.b16 %v625
        %v2476 = vunpack.c.l.b16 %v626
        %v2477 = vunpack.c.h.b16 %v626
        %v2478 = vunpack.c.l.b16 %v627
        %v2479 = vunpack.c.h.b16 %v627
        %v2480 = vunpack.c.l.b16 %v628
        %v2481 = vunpack.c.h.b16 %v628
        %v2482 = vunpack.c.l.b16 %v629
        %v2483 = vunpack.c.h.b16 %v629
        %v2484 = vunpack.c.l.b16 %v630
        %v2485 = vunpack.c.h.b16 %v630
        %v2486 = vunpack.c.l.b16 %v631
        %v2487 = vunpack.c.h.b16 %v631
        %v2488 = vunpack.c.l.b16 %v632
        %v2489 = vunpack.c.h.b16 %v632
        %v2490 = vunpack.c.l.b16 %v633
        %v2491 = vunpack.c.h.b16 %v633
        %v2492 = vunpack.c.l.b16 %v634
        %v2493 = vunpack.c.h.b16 %v634
        %v2494 = vunpack.c.l.b16 %v635
        %v2495 = vunpack.c.h.b16 %v635
        %v2496 = vunpack.c.l.b16 %v636
        %v2497 = vunpack.c.h.b16 %v636
        %v2498 = vunpack.c.l.b16 %v637
        %v2499 = vunpack.c.h.b16 %v637
        %v2500 = vunpack.c.l.b16 %v638
        %v2501 = vunpack.c.h.b16 %v638
        %v2502 = vunpack.c.l.b16 %v639
        %v2503 = vunpack.c.h.b16 %v639
        %v2504 = vunpack.c.l.b16 %v640
        %v2505 = vunpack.c.h.b16 %v640
        %v2506 = vunpack.c.l.b16 %v641
        %v2507 = vunpack.c.h.b16 %v641
        %v2508 = vunpack.c.l.b16 %v642
        %v2509 = vunpack.c.h.b16 %v642
        %v2510 = vunpack.c.l.b16 %v643
        %v2511 = vunpack.c.h.b16 %v643
        %v2512 = vunpack.c.l.b16 %v644
        %v2513 = vunpack.c.h.b16 %v644
        %v2514 = vunpack.c.l.b16 %v645
        %v2515 = vunpack.c.h.b16 %v645
        %v2516 = vunpack.c.l.b16 %v646
        %v2517 = vunpack.c.h.b16 %v646
        %v2518 = vunpack.c.l.b16 %v647
        %v2519 = vunpack.c.h.b16 %v647
        %v2520 = vunpack.c.l.b16 %v648
        %v2521 = vunpack.c.h.b16 %v648
        %v2522 = vunpack.c.l.b16 %v649
        %v2523 = vunpack.c.h.b16 %v649
        %v2524 = vunpack.c.l.b16 %v650
        %v2525 = vunpack.c.h.b16 %v650
        %v2526 = vunpack.c.l.b16 %v651
        %v2527 = vunpack.c.h.b16 %v651
        %v2528 = vunpack.c.l.b16 %v652
        %v2529 = vunpack.c.h.b16 %v652
        %v2530 = vunpack.c.l.b16 %v653
        %v2531 = vunpack.c.h.b16 %v653
        %v2532 = vunpack.c.l.b16 %v654
        %v2533 = vunpack.c.h.b16 %v654
        %v2534 = vunpack.c.l.b16 %v655
        %v2535 = vunpack.c.h.b16 %v655
        %v2536 = vunpack.c.l.b16 %v656
        %v2537 = vunpack.c.h.b16 %v656
        %v2538 = vunpack.c.l.b16 %v657
        %v2539 = vunpack.c.h.b16 %v657
        %v2540 = vunpack.c.l.b16 %v658
        %v2541 = vunpack.c.h.b16 %v658
        %v2542 = vunpack.c.l.b16 %v659
        %v2543 = vunpack.c.h.b16 %v659
        %v2544 = vunpack.c.l.b16 %v660
        %v2545 = vunpack.c.h.b16 %v660
        %v2546 = vunpack.c.l.b16 %v661
        %v2547 = vunpack.c.h.b16 %v661
        %v2548 = vunpack.c.l.b16 %v662
        %v2549 = vunpack.c.h.b16 %v662
        %v2550 = vunpack.c.l.b16 %v663
        %v2551 = vunpack.c.h.b16 %v663
        %v2552 = vunpack.c.l.b16 %v664
        %v2553 = vunpack.c.h.b16 %v664
        %v2554 = vunpack.c.l.b16 %v665
        %v2555 = vunpack.c.h.b16 %v665
        %v2556 = vunpack.c.l.b16 %v666
        %v2557 = vunpack.c.h.b16 %v666
        %v2558 = vunpack.c.l.b16 %v667
        %v2559 = vunpack.c.h.b16 %v667
        %v2560 = vunpack.c.l.b16 %v668
        %v2561 = vunpack.c.h.b16 %v668
        %v2562 = vunpack.c.l.b16 %v669
        %v2563 = vunpack.c.h.b16 %v669
        %v2564 = vunpack.c.l.b16 %v670
        %v2565 = vunpack.c.h.b16 %v670
        %v2566 = vunpack.c.l.b16 %v671
        %v2567 = vunpack.c.h.b16 %v671
        %v2568 = vunpack.c.l.b16 %v672
        %v2569 = vunpack.c.h.b16 %v672
        %v2570 = vunpack.c.l.b16 %v673
        %v2571 = vunpack.c.h.b16 %v673
        %v2572 = vunpack.c.l.b16 %v674
        %v2573 = vunpack.c.h.b16 %v674
        %v2574 = vunpack.c.l.b16 %v675
        %v2575 = vunpack.c.h.b16 %v675
        %v2576 = vunpack.c.l.b16 %v676
        %v2577 = vunpack.c.h.b16 %v676
        %v2578 = vunpack.c.l.b16 %v677
        %v2579 = vunpack.c.h.b16 %v677
        %v2580 = vunpack.c.l.b16 %v678
        %v2581 = vunpack.c.h.b16 %v678
        %v2582 = vunpack.c.l.b16 %v679
        %v2583 = vunpack.c.h.b16 %v679
        %v2584 = vunpack.c.l.b16 %v680
        %v2585 = vunpack.c.h.b16 %v680
        %v2586 = vunpack.c.l.b16 %v681
        %v2587 = vunpack.c.h.b16 %v681
        %v2588 = vunpack.c.l.b16 %v682
        %v2589 = vunpack.c.h.b16 %v682
        %v2590 = vunpack.c.l.b16 %v683
        %v2591 = vunpack.c.h.b16 %v683
        %v2592 = vunpack.c.l.b16 %v684
        %v2593 = vunpack.c.h.b16 %v684
        %v2594 = vunpack.c.l.b16 %v685
        %v2595 = vunpack.c.h.b16 %v685
        %v2596 = vunpack.c.l.b16 %v686
        %v2597 = vunpack.c.h.b16 %v686
        %v2598 = vunpack.c.l.b16 %v687
        %v2599 = vunpack.c.h.b16 %v687
        %v2600 = vunpack.c.l.b16 %v688
        %v2601 = vunpack.c.h.b16 %v688
        %v2602 = vunpack.c.l.b16 %v689
        %v2603 = vunpack.c.h.b16 %v689
        %v2604 = vunpack.c.l.b16 %v690
        %v2605 = vunpack.c.h.b16 %v690
        %v2606 = vunpack.c.l.b16 %v691
        %v2607 = vunpack.c.h.b16 %v691
        %v2608 = vunpack.c.l.b16 %v692
        %v2609 = vunpack.c.h.b16 %v692
        %v2610 = vunpack.c.l.b16 %v693
        %v2611 = vunpack.c.h.b16 %v693
        %v2612 = vunpack.c.l.b16 %v694
        %v2613 = vunpack.c.h.b16 %v694
        %v2614 = vunpack.c.l.b16 %v695
        %v2615 = vunpack.c.h.b16 %v695
        %v2616 = vunpack.c.l.b16 %v696
        %v2617 = vunpack.c.h.b16 %v696
        %v2618 = vunpack.c.l.b16 %v697
        %v2619 = vunpack.c.h.b16 %v697
        %v2620 = vunpack.c.l.b16 %v698
        %v2621 = vunpack.c.h.b16 %v698
        %v2622 = vunpack.c.l.b16 %v699
        %v2623 = vunpack.c.h.b16 %v699
        %v2624 = vunpack.c.l.b16 %v700
        %v2625 = vunpack.c.h.b16 %v700
        %v2626 = vunpack.c.l.b16 %v701
        %v2627 = vunpack.c.h.b16 %v701
        %v2628 = vunpack.c.l.b16 %v702
        %v2629 = vunpack.c.h.b16 %v702
        %v2630 = vunpack.c.l.b16 %v703
        %v2631 = vunpack.c.h.b16 %v703
        %v2632 = vunpack.c.l.b16 %v704
        %v2633 = vunpack.c.h.b16 %v704
        %v2634 = vunpack.c.l.b16 %v705
        %v2635 = vunpack.c.h.b16 %v705
        %v2636 = vunpack.c.l.b16 %v706
        %v2637 = vunpack.c.h.b16 %v706
        %v2638 = vunpack.c.l.b16 %v707
        %v2639 = vunpack.c.h.b16 %v707
        %v2640 = vunpack.c.l.b16 %v708
        %v2641 = vunpack.c.h.b16 %v708
        %v2642 = vunpack.c.l.b16 %v709
        %v2643 = vunpack.c.h.b16 %v709
        %v2644 = vunpack.c.l.b16 %v710
        %v2645 = vunpack.c.h.b16 %v710
        %v2646 = vunpack.c.l.b16 %v711
        %v2647 = vunpack.c.h.b16 %v711
        %v2648 = vpack.c.b16 %v2396, %v2392
        %v2649 = vpack.c.b16 %v2397, %v2393
        %v2650 = vpack.c.b16 %v2398, %v2394
        %v2651 = vpack.c.b16 %v2399, %v2395
        %v2652 = vpack.c.b16 %v2404, %v2400
        %v2653 = vpack.c.b16 %v2405, %v2401
        %v2654 = vpack.c.b16 %v2406, %v2402
        %v2655 = vpack.c.b16 %v2407, %v2403
        %v2656 = vpack.c.b16 %v2412, %v2408
        %v2657 = vpack.c.b16 %v2413, %v2409
        %v2658 = vpack.c.b16 %v2414, %v2410
        %v2659 = vpack.c.b16 %v2415, %v2411
        %v2660 = vpack.c.b16 %v2420, %v2416
        %v2661 = vpack.c.b16 %v2421, %v2417
        %v2662 = vpack.c.b16 %v2422, %v2418
        %v2663 = vpack.c.b16 %v2423, %v2419
        %v2664 = vpack.c.b16 %v2428, %v2424
        %v2665 = vpack.c.b16 %v2429, %v2425
        %v2666 = vpack.c.b16 %v2430, %v2426
        %v2667 = vpack.c.b16 %v2431, %v2427
        %v2668 = vpack.c.b16 %v2436, %v2432
        %v2669 = vpack.c.b16 %v2437, %v2433
        %v2670 = vpack.c.b16 %v2438, %v2434
        %v2671 = vpack.c.b16 %v2439, %v2435
        %v2672 = vpack.c.b16 %v2444, %v2440
        %v2673 = vpack.c.b16 %v2445, %v2441
        %v2674 = vpack.c.b16 %v2446, %v2442
        %v2675 = vpack.c.b16 %v2447, %v2443
        %v2676 = vpack.c.b16 %v2452, %v2448
        %v2677 = vpack.c.b16 %v2453, %v2449
        %v2678 = vpack.c.b16 %v2454, %v2450
        %v2679 = vpack.c.b16 %v2455, %v2451
        %v2680 = vpack.c.b16 %v2460, %v2456
        %v2681 = vpack.c.b16 %v2461, %v2457
        %v2682 = vpack.c.b16 %v2462, %v2458
        %v2683 = vpack.c.b16 %v2463, %v2459
        %v2684 = vpack.c.b16 %v2468, %v2464
        %v2685 = vpack.c.b16 %v2469, %v2465
        %v2686 = vpack.c.b16 %v2470, %v2466
        %v2687 = vpack.c.b16 %v2471, %v2467
        %v2688 = vpack.c.b16 %v2476, %v2472
        %v2689 = vpack.c.b16 %v2477, %v2473
        %v2690 = vpack.c.b16 %v2478, %v2474
        %v2691 = vpack.c.b16 %v2479, %v2475
        %v2692 = vpack.c.b16 %v2484, %v2480
        %v2693 = vpack.c.b16 %v2485, %v2481
        %v2694 = vpack.c.b16 %v2486, %v2482
        %v2695 = vpack.c.b16 %v2487, %v2483
        %v2696 = vpack.c.b16 %v2492, %v2488
        %v2697 = vpack.c.b16 %v2493, %v2489
        %v2698 = vpack.c.b16 %v2494, %v2490
        %v2699 = vpack.c.b16 %v2495, %v2491
        %v2700 = vpack.c.b16 %v2500, %v2496
        %v2701 = vpack.c.b16 %v2501, %v2497
        %v2702 = vpack.c.b16 %v2502, %v2498
        %v2703 = vpack.c.b16 %v2503, %v2499
        %v2704 = vpack.c.b16 %v2508, %v2504
        %v2705 = vpack.c.b16 %v2509, %v2505
        %v2706 = vpack.c.b16 %v2510, %v2506
        %v2707 = vpack.c.b16 %v2511, %v2507
        %v2708 = vpack.c.b16 %v2516, %v2512
        %v2709 = vpack.c.b16 %v2517, %v2513
        %v2710 = vpack.c.b16 %v2518, %v2514
        %v2711 = vpack.c.b16 %v2519, %v2515
        %v2712 = vpack.c.b16 %v2524, %v2520
        %v2713 = vpack.c.b16 %v2525, %v2521
        %v2714 = vpack.c.b16 %v2526, %v2522
        %v2715 = vpack.c.b16 %v2527, %v2523
        %v2716 = vpack.c.b16 %v2532, %v2528
        %v2717 = vpack.c.b16 %v2533, %v2529
        %v2718 = vpack.c.b16 %v2534, %v2530
        %v2719 = vpack.c.b16 %v2535, %v2531
        %v2720 = vpack.c.b16 %v2540, %v2536
        %v2721 = vpack.c.b16 %v2541, %v2537
        %v2722 = vpack.c.b16 %v2542, %v2538
        %v2723 = vpack.c.b16 %v2543, %v2539
        %v2724 = vpack.c.b16 %v2548, %v2544
        %v2725 = vpack.c.b16 %v2549, %v2545
        %v2726 = vpack.c.b16 %v2550, %v2546
        %v2727 = vpack.c.b16 %v2551, %v2547
        %v2728 = vpack.c.b16 %v2556, %v2552
        %v2729 = vpack.c.b16 %v2557, %v2553
        %v2730 = vpack.c.b16 %v2558, %v2554
        %v2731 = vpack.c.b16 %v2559, %v2555
        %v2732 = vpack.c.b16 %v2564, %v2560
        %v2733 = vpack.c.b16 %v2565, %v2561
        %v2734 = vpack.c.b16 %v2566, %v2562
        %v2735 = vpack.c.b16 %v2567, %v2563
        %v2736 = vpack.c.b16 %v2572, %v2568
        %v2737 = vpack.c.b16 %v2573, %v2569
        %v2738 = vpack.c.b16 %v2574, %v2570
        %v2739 = vpack.c.b16 %v2575, %v2571
        %v2740 = vpack.c.b16 %v2580, %v2576
        %v2741 = vpack.c.b16 %v2581, %v2577
        %v2742 = vpack.c.b16 %v2582, %v2578
        %v2743 = vpack.c.b16 %v2583, %v2579
        %v2744 = vpack.c.b16 %v2588, %v2584
        %v2745 = vpack.c.b16 %v2589, %v2585
        %v2746 = vpack.c.b16 %v2590, %v2586
        %v2747 = vpack.c.b16 %v2591, %v2587
        %v2748 = vpack.c.b16 %v2596, %v2592
        %v2749 = vpack.c.b16 %v2597, %v2593
        %v2750 = vpack.c.b16 %v2598, %v2594
        %v2751 = vpack.c.b16 %v2599, %v2595
        %v2752 = vpack.c.b16 %v2604, %v2600
        %v2753 = vpack.c.b16 %v2605, %v2601
        %v2754 = vpack.c.b16 %v2606, %v2602
        %v2755 = vpack.c.b16 %v2607, %v2603
        %v2756 = vpack.c.b16 %v2612, %v2608
        %v2757 = vpack.c.b16 %v2613, %v2609
        %v2758 = vpack.c.b16 %v2614, %v2610
        %v2759 = vpack.c.b16 %v2615, %v2611
        %v2760 = vpack.c.b16 %v2620, %v2616
        %v2761 = vpack.c.b16 %v2621, %v2617
        %v2762 = vpack.c.b16 %v2622, %v2618
        %v2763 = vpack.c.b16 %v2623, %v2619
        %v2764 = vpack.c.b16 %v2628, %v2624
        %v2765 = vpack.c.b16 %v2629, %v2625
        %v2766 = vpack.c.b16 %v2630, %v2626
        %v2767 = vpack.c.b16 %v2631, %v2627
        %v2768 = vpack.c.b16 %v2636, %v2632
        %v2769 = vpack.c.b16 %v2637, %v2633
        %v2770 = vpack.c.b16 %v2638, %v2634
        %v2771 = vpack.c.b16 %v2639, %v2635
        %v2772 = vpack.c.b16 %v2644, %v2640
        %v2773 = vpack.c.b16 %v2645, %v2641
        %v2774 = vpack.c.b16 %v2646, %v2642
        %v2775 = vpack.c.b16 %v2647, %v2643
        %2904 = vmatpush.bf16.msra.mxu0 %v2676
        %2905 = vmatpush.bf16.msra.mxu0 %v2672
        %2906 = vmatpush.bf16.msra.mxu0 %v2668
        %2907 = vmatpush.bf16.msra.mxu0 %v2664
        %2908 = vmatpush.bf16.msra.mxu0 %v2660
        %2909 = vmatpush.bf16.msra.mxu0 %v2656
        %2910 = vmatpush.bf16.msra.mxu0 %v2652
        %2911 = vmatpush.bf16.msra.mxu0 %v2648
        %2912 = vmatmul.bf16.gmra.mxu0 %v2232
        %v2913 = vpop.f32.mrf.mxu0
        %v2914 = vadd.f32 0.0, %v2913
        %v2915 = vpop.f32.mrf.mxu0
        %v2916 = vadd.f32 0.0, %v2915
        %2917 = vmatmul.bf16.gmra.mxu0 %v2236
        %v2918 = vpop.f32.mrf.mxu0
        %v2919 = vadd.f32 0.0, %v2918
        %v2920 = vpop.f32.mrf.mxu0
        %v2921 = vadd.f32 0.0, %v2920
        %2922 = vmatmul.bf16.gmra.mxu0 %v2240
        %v2923 = vpop.f32.mrf.mxu0
        %v2924 = vadd.f32 0.0, %v2923
        %v2925 = vpop.f32.mrf.mxu0
        %v2926 = vadd.f32 0.0, %v2925
        %2927 = vmatmul.bf16.gmra.mxu0 %v2244
        %v2928 = vpop.f32.mrf.mxu0
        %v2929 = vadd.f32 0.0, %v2928
        %v2930 = vpop.f32.mrf.mxu0
        %v2931 = vadd.f32 0.0, %v2930
        %2932 = vmatmul.bf16.gmra.mxu0 %v2248
        %v2933 = vpop.f32.mrf.mxu0
        %v2934 = vadd.f32 0.0, %v2933
        %v2935 = vpop.f32.mrf.mxu0
        %v2936 = vadd.f32 0.0, %v2935
        %2937 = vmatmul.bf16.gmra.mxu0 %v2252
        %v2938 = vpop.f32.mrf.mxu0
        %v2939 = vadd.f32 0.0, %v2938
        %v2940 = vpop.f32.mrf.mxu0
        %v2941 = vadd.f32 0.0, %v2940
        %2942 = vmatmul.bf16.gmra.mxu0 %v2256
        %v2943 = vpop.f32.mrf.mxu0
        %v2944 = vadd.f32 0.0, %v2943
        %v2945 = vpop.f32.mrf.mxu0
        %v2946 = vadd.f32 0.0, %v2945
        %2947 = vmatmul.bf16.gmra.mxu0 %v2260
        %v2948 = vpop.f32.mrf.mxu0
        %v2949 = vadd.f32 0.0, %v2948
        %v2950 = vpop.f32.mrf.mxu0
        %v2951 = vadd.f32 0.0, %v2950
        %2952 = vdwg.mxu0
        %2953 = vmatpush.bf16.msra.mxu0 %v2708
        %2954 = vmatpush.bf16.msra.mxu0 %v2704
        %2955 = vmatpush.bf16.msra.mxu0 %v2700
        %2956 = vmatpush.bf16.msra.mxu0 %v2696
        %2957 = vmatpush.bf16.msra.mxu0 %v2692
        %2958 = vmatpush.bf16.msra.mxu0 %v2688
        %2959 = vmatpush.bf16.msra.mxu0 %v2684
        %2960 = vmatpush.bf16.msra.mxu0 %v2680
        %2961 = vmatmul.bf16.gmra.mxu0 %v2233
        %v2962 = vpop.f32.mrf.mxu0
        %v2963 = vadd.f32 %v2914, %v2962
        %v2964 = vpop.f32.mrf.mxu0
        %v2965 = vadd.f32 %v2916, %v2964
        %2966 = vmatmul.bf16.gmra.mxu0 %v2237
        %v2967 = vpop.f32.mrf.mxu0
        %v2968 = vadd.f32 %v2919, %v2967
        %v2969 = vpop.f32.mrf.mxu0
        %v2970 = vadd.f32 %v2921, %v2969
        %2971 = vmatmul.bf16.gmra.mxu0 %v2241
        %v2972 = vpop.f32.mrf.mxu0
        %v2973 = vadd.f32 %v2924, %v2972
        %v2974 = vpop.f32.mrf.mxu0
        %v2975 = vadd.f32 %v2926, %v2974
        %2976 = vmatmul.bf16.gmra.mxu0 %v2245
        %v2977 = vpop.f32.mrf.mxu0
        %v2978 = vadd.f32 %v2929, %v2977
        %v2979 = vpop.f32.mrf.mxu0
        %v2980 = vadd.f32 %v2931, %v2979
        %2981 = vmatmul.bf16.gmra.mxu0 %v2249
        %v2982 = vpop.f32.mrf.mxu0
        %v2983 = vadd.f32 %v2934, %v2982
        %v2984 = vpop.f32.mrf.mxu0
        %v2985 = vadd.f32 %v2936, %v2984
        %2986 = vmatmul.bf16.gmra.mxu0 %v2253
        %v2987 = vpop.f32.mrf.mxu0
        %v2988 = vadd.f32 %v2939, %v2987
        %v2989 = vpop.f32.mrf.mxu0
        %v2990 = vadd.f32 %v2941, %v2989
        %2991 = vmatmul.bf16.gmra.mxu0 %v2257
        %v2992 = vpop.f32.mrf.mxu0
        %v2993 = vadd.f32 %v2944, %v2992
        %v2994 = vpop.f32.mrf.mxu0
        %v2995 = vadd.f32 %v2946, %v2994
        %2996 = vmatmul.bf16.gmra.mxu0 %v2261
        %v2997 = vpop.f32.mrf.mxu0
        %v2998 = vadd.f32 %v2949, %v2997
        %v2999 = vpop.f32.mrf.mxu0
        %v3000 = vadd.f32 %v2951, %v2999
        %3001 = vdwg.mxu0
        %3002 = vmatpush.bf16.msra.mxu0 %v2740
        %3003 = vmatpush.bf16.msra.mxu0 %v2736
        %3004 = vmatpush.bf16.msra.mxu0 %v2732
        %3005 = vmatpush.bf16.msra.mxu0 %v2728
        %3006 = vmatpush.bf16.msra.mxu0 %v2724
        %3007 = vmatpush.bf16.msra.mxu0 %v2720
        %3008 = vmatpush.bf16.msra.mxu0 %v2716
        %3009 = vmatpush.bf16.msra.mxu0 %v2712
        %3010 = vmatmul.bf16.gmra.mxu0 %v2234
        %v3011 = vpop.f32.mrf.mxu0
        %v3012 = vadd.f32 %v2963, %v3011
        %v3013 = vpop.f32.mrf.mxu0
        %v3014 = vadd.f32 %v2965, %v3013
        %3015 = vmatmul.bf16.gmra.mxu0 %v2238
        %v3016 = vpop.f32.mrf.mxu0
        %v3017 = vadd.f32 %v2968, %v3016
        %v3018 = vpop.f32.mrf.mxu0
        %v3019 = vadd.f32 %v2970, %v3018
        %3020 = vmatmul.bf16.gmra.mxu0 %v2242
        %v3021 = vpop.f32.mrf.mxu0
        %v3022 = vadd.f32 %v2973, %v3021
        %v3023 = vpop.f32.mrf.mxu0
        %v3024 = vadd.f32 %v2975, %v3023
        %3025 = vmatmul.bf16.gmra.mxu0 %v2246
        %v3026 = vpop.f32.mrf.mxu0
        %v3027 = vadd.f32 %v2978, %v3026
        %v3028 = vpop.f32.mrf.mxu0
        %v3029 = vadd.f32 %v2980, %v3028
        %3030 = vmatmul.bf16.gmra.mxu0 %v2250
        %v3031 = vpop.f32.mrf.mxu0
        %v3032 = vadd.f32 %v2983, %v3031
        %v3033 = vpop.f32.mrf.mxu0
        %v3034 = vadd.f32 %v2985, %v3033
        %3035 = vmatmul.bf16.gmra.mxu0 %v2254
        %v3036 = vpop.f32.mrf.mxu0
        %v3037 = vadd.f32 %v2988, %v3036
        %v3038 = vpop.f32.mrf.mxu0
        %v3039 = vadd.f32 %v2990, %v3038
        %3040 = vmatmul.bf16.gmra.mxu0 %v2258
        %v3041 = vpop.f32.mrf.mxu0
        %v3042 = vadd.f32 %v2993, %v3041
        %v3043 = vpop.f32.mrf.mxu0
        %v3044 = vadd.f32 %v2995, %v3043
        %3045 = vmatmul.bf16.gmra.mxu0 %v2262
        %v3046 = vpop.f32.mrf.mxu0
        %v3047 = vadd.f32 %v2998, %v3046
        %v3048 = vpop.f32.mrf.mxu0
        %v3049 = vadd.f32 %v3000, %v3048
        %3050 = vdwg.mxu0
        %3051 = vmatpush.bf16.msra.mxu0 %v2772
        %3052 = vmatpush.bf16.msra.mxu0 %v2768
        %3053 = vmatpush.bf16.msra.mxu0 %v2764
        %3054 = vmatpush.bf16.msra.mxu0 %v2760
        %3055 = vmatpush.bf16.msra.mxu0 %v2756
        %3056 = vmatpush.bf16.msra.mxu0 %v2752
        %3057 = vmatpush.bf16.msra.mxu0 %v2748
        %3058 = vmatpush.bf16.msra.mxu0 %v2744
        %3059 = vmatmul.bf16.gmra.mxu0 %v2235
        %v3060 = vpop.f32.mrf.mxu0
        %v3061 = vadd.f32 %v3012, %v3060
        %v3062 = vpop.f32.mrf.mxu0
        %v3063 = vadd.f32 %v3014, %v3062
        %3064 = vmatmul.bf16.gmra.mxu0 %v2239
        %v3065 = vpop.f32.mrf.mxu0
        %v3066 = vadd.f32 %v3017, %v3065
        %v3067 = vpop.f32.mrf.mxu0
        %v3068 = vadd.f32 %v3019, %v3067
        %3069 = vmatmul.bf16.gmra.mxu0 %v2243
        %v3070 = vpop.f32.mrf.mxu0
        %v3071 = vadd.f32 %v3022, %v3070
        %v3072 = vpop.f32.mrf.mxu0
        %v3073 = vadd.f32 %v3024, %v3072
        %3074 = vmatmul.bf16.gmra.mxu0 %v2247
        %v3075 = vpop.f32.mrf.mxu0
        %v3076 = vadd.f32 %v3027, %v3075
        %v3077 = vpop.f32.mrf.mxu0
        %v3078 = vadd.f32 %v3029, %v3077
        %3079 = vmatmul.bf16.gmra.mxu0 %v2251
        %v3080 = vpop.f32.mrf.mxu0
        %v3081 = vadd.f32 %v3032, %v3080
        %v3082 = vpop.f32.mrf.mxu0
        %v3083 = vadd.f32 %v3034, %v3082
        %3084 = vmatmul.bf16.gmra.mxu0 %v2255
        %v3085 = vpop.f32.mrf.mxu0
        %v3086 = vadd.f32 %v3037, %v3085
        %v3087 = vpop.f32.mrf.mxu0
        %v3088 = vadd.f32 %v3039, %v3087
        %3089 = vmatmul.bf16.gmra.mxu0 %v2259
        %v3090 = vpop.f32.mrf.mxu0
        %v3091 = vadd.f32 %v3042, %v3090
        %v3092 = vpop.f32.mrf.mxu0
        %v3093 = vadd.f32 %v3044, %v3092
        %3094 = vmatmul.bf16.gmra.mxu0 %v2263
        %v3095 = vpop.f32.mrf.mxu0
        %v3096 = vadd.f32 %v3047, %v3095
        %v3097 = vpop.f32.mrf.mxu0
        %v3098 = vadd.f32 %v3049, %v3097
        %3099 = vdwg.mxu0
        %3100 = vmatpush.bf16.msra.mxu0 %v2677
        %3101 = vmatpush.bf16.msra.mxu0 %v2673
        %3102 = vmatpush.bf16.msra.mxu0 %v2669
        %3103 = vmatpush.bf16.msra.mxu0 %v2665
        %3104 = vmatpush.bf16.msra.mxu0 %v2661
        %3105 = vmatpush.bf16.msra.mxu0 %v2657
        %3106 = vmatpush.bf16.msra.mxu0 %v2653
        %3107 = vmatpush.bf16.msra.mxu0 %v2649
        %3108 = vmatmul.bf16.gmra.mxu0 %v2232
        %v3109 = vpop.f32.mrf.mxu0
        %v3110 = vadd.f32 0.0, %v3109
        %v3111 = vpop.f32.mrf.mxu0
        %v3112 = vadd.f32 0.0, %v3111
        %3113 = vmatmul.bf16.gmra.mxu0 %v2236
        %v3114 = vpop.f32.mrf.mxu0
        %v3115 = vadd.f32 0.0, %v3114
        %v3116 = vpop.f32.mrf.mxu0
        %v3117 = vadd.f32 0.0, %v3116
        %3118 = vmatmul.bf16.gmra.mxu0 %v2240
        %v3119 = vpop.f32.mrf.mxu0
        %v3120 = vadd.f32 0.0, %v3119
        %v3121 = vpop.f32.mrf.mxu0
        %v3122 = vadd.f32 0.0, %v3121
        %3123 = vmatmul.bf16.gmra.mxu0 %v2244
        %v3124 = vpop.f32.mrf.mxu0
        %v3125 = vadd.f32 0.0, %v3124
        %v3126 = vpop.f32.mrf.mxu0
        %v3127 = vadd.f32 0.0, %v3126
        %3128 = vmatmul.bf16.gmra.mxu0 %v2248
        %v3129 = vpop.f32.mrf.mxu0
        %v3130 = vadd.f32 0.0, %v3129
        %v3131 = vpop.f32.mrf.mxu0
        %v3132 = vadd.f32 0.0, %v3131
        %3133 = vmatmul.bf16.gmra.mxu0 %v2252
        %v3134 = vpop.f32.mrf.mxu0
        %v3135 = vadd.f32 0.0, %v3134
        %v3136 = vpop.f32.mrf.mxu0
        %v3137 = vadd.f32 0.0, %v3136
        %3138 = vmatmul.bf16.gmra.mxu0 %v2256
        %v3139 = vpop.f32.mrf.mxu0
        %v3140 = vadd.f32 0.0, %v3139
        %v3141 = vpop.f32.mrf.mxu0
        %v3142 = vadd.f32 0.0, %v3141
        %3143 = vmatmul.bf16.gmra.mxu0 %v2260
        %v3144 = vpop.f32.mrf.mxu0
        %v3145 = vadd.f32 0.0, %v3144
        %v3146 = vpop.f32.mrf.mxu0
        %v3147 = vadd.f32 0.0, %v3146
        %3148 = vdwg.mxu0
        %3149 = vmatpush.bf16.msra.mxu0 %v2709
        %3150 = vmatpush.bf16.msra.mxu0 %v2705
        %3151 = vmatpush.bf16.msra.mxu0 %v2701
        %3152 = vmatpush.bf16.msra.mxu0 %v2697
        %3153 = vmatpush.bf16.msra.mxu0 %v2693
        %3154 = vmatpush.bf16.msra.mxu0 %v2689
        %3155 = vmatpush.bf16.msra.mxu0 %v2685
        %3156 = vmatpush.bf16.msra.mxu0 %v2681
        %3157 = vmatmul.bf16.gmra.mxu0 %v2233
        %v3158 = vpop.f32.mrf.mxu0
        %v3159 = vadd.f32 %v3110, %v3158
        %v3160 = vpop.f32.mrf.mxu0
        %v3161 = vadd.f32 %v3112, %v3160
        %3162 = vmatmul.bf16.gmra.mxu0 %v2237
        %v3163 = vpop.f32.mrf.mxu0
        %v3164 = vadd.f32 %v3115, %v3163
        %v3165 = vpop.f32.mrf.mxu0
        %v3166 = vadd.f32 %v3117, %v3165
        %3167 = vmatmul.bf16.gmra.mxu0 %v2241
        %v3168 = vpop.f32.mrf.mxu0
        %v3169 = vadd.f32 %v3120, %v3168
        %v3170 = vpop.f32.mrf.mxu0
        %v3171 = vadd.f32 %v3122, %v3170
        %3172 = vmatmul.bf16.gmra.mxu0 %v2245
        %v3173 = vpop.f32.mrf.mxu0
        %v3174 = vadd.f32 %v3125, %v3173
        %v3175 = vpop.f32.mrf.mxu0
        %v3176 = vadd.f32 %v3127, %v3175
        %3177 = vmatmul.bf16.gmra.mxu0 %v2249
        %v3178 = vpop.f32.mrf.mxu0
        %v3179 = vadd.f32 %v3130, %v3178
        %v3180 = vpop.f32.mrf.mxu0
        %v3181 = vadd.f32 %v3132, %v3180
        %3182 = vmatmul.bf16.gmra.mxu0 %v2253
        %v3183 = vpop.f32.mrf.mxu0
        %v3184 = vadd.f32 %v3135, %v3183
        %v3185 = vpop.f32.mrf.mxu0
        %v3186 = vadd.f32 %v3137, %v3185
        %3187 = vmatmul.bf16.gmra.mxu0 %v2257
        %v3188 = vpop.f32.mrf.mxu0
        %v3189 = vadd.f32 %v3140, %v3188
        %v3190 = vpop.f32.mrf.mxu0
        %v3191 = vadd.f32 %v3142, %v3190
        %3192 = vmatmul.bf16.gmra.mxu0 %v2261
        %v3193 = vpop.f32.mrf.mxu0
        %v3194 = vadd.f32 %v3145, %v3193
        %v3195 = vpop.f32.mrf.mxu0
        %v3196 = vadd.f32 %v3147, %v3195
        %3197 = vdwg.mxu0
        %3198 = vmatpush.bf16.msra.mxu0 %v2741
        %3199 = vmatpush.bf16.msra.mxu0 %v2737
        %3200 = vmatpush.bf16.msra.mxu0 %v2733
        %3201 = vmatpush.bf16.msra.mxu0 %v2729
        %3202 = vmatpush.bf16.msra.mxu0 %v2725
        %3203 = vmatpush.bf16.msra.mxu0 %v2721
        %3204 = vmatpush.bf16.msra.mxu0 %v2717
        %3205 = vmatpush.bf16.msra.mxu0 %v2713
        %3206 = vmatmul.bf16.gmra.mxu0 %v2234
        %v3207 = vpop.f32.mrf.mxu0
        %v3208 = vadd.f32 %v3159, %v3207
        %v3209 = vpop.f32.mrf.mxu0
        %v3210 = vadd.f32 %v3161, %v3209
        %3211 = vmatmul.bf16.gmra.mxu0 %v2238
        %v3212 = vpop.f32.mrf.mxu0
        %v3213 = vadd.f32 %v3164, %v3212
        %v3214 = vpop.f32.mrf.mxu0
        %v3215 = vadd.f32 %v3166, %v3214
        %3216 = vmatmul.bf16.gmra.mxu0 %v2242
        %v3217 = vpop.f32.mrf.mxu0
        %v3218 = vadd.f32 %v3169, %v3217
        %v3219 = vpop.f32.mrf.mxu0
        %v3220 = vadd.f32 %v3171, %v3219
        %3221 = vmatmul.bf16.gmra.mxu0 %v2246
        %v3222 = vpop.f32.mrf.mxu0
        %v3223 = vadd.f32 %v3174, %v3222
        %v3224 = vpop.f32.mrf.mxu0
        %v3225 = vadd.f32 %v3176, %v3224
        %3226 = vmatmul.bf16.gmra.mxu0 %v2250
        %v3227 = vpop.f32.mrf.mxu0
        %v3228 = vadd.f32 %v3179, %v3227
        %v3229 = vpop.f32.mrf.mxu0
        %v3230 = vadd.f32 %v3181, %v3229
        %3231 = vmatmul.bf16.gmra.mxu0 %v2254
        %v3232 = vpop.f32.mrf.mxu0
        %v3233 = vadd.f32 %v3184, %v3232
        %v3234 = vpop.f32.mrf.mxu0
        %v3235 = vadd.f32 %v3186, %v3234
        %3236 = vmatmul.bf16.gmra.mxu0 %v2258
        %v3237 = vpop.f32.mrf.mxu0
        %v3238 = vadd.f32 %v3189, %v3237
        %v3239 = vpop.f32.mrf.mxu0
        %v3240 = vadd.f32 %v3191, %v3239
        %3241 = vmatmul.bf16.gmra.mxu0 %v2262
        %v3242 = vpop.f32.mrf.mxu0
        %v3243 = vadd.f32 %v3194, %v3242
        %v3244 = vpop.f32.mrf.mxu0
        %v3245 = vadd.f32 %v3196, %v3244
        %3246 = vdwg.mxu0
        %3247 = vmatpush.bf16.msra.mxu0 %v2773
        %3248 = vmatpush.bf16.msra.mxu0 %v2769
        %3249 = vmatpush.bf16.msra.mxu0 %v2765
        %3250 = vmatpush.bf16.msra.mxu0 %v2761
        %3251 = vmatpush.bf16.msra.mxu0 %v2757
        %3252 = vmatpush.bf16.msra.mxu0 %v2753
        %3253 = vmatpush.bf16.msra.mxu0 %v2749
        %3254 = vmatpush.bf16.msra.mxu0 %v2745
        %3255 = vmatmul.bf16.gmra.mxu0 %v2235
        %v3256 = vpop.f32.mrf.mxu0
        %v3257 = vadd.f32 %v3208, %v3256
        %v3258 = vpop.f32.mrf.mxu0
        %v3259 = vadd.f32 %v3210, %v3258
        %3260 = vmatmul.bf16.gmra.mxu0 %v2239
        %v3261 = vpop.f32.mrf.mxu0
        %v3262 = vadd.f32 %v3213, %v3261
        %v3263 = vpop.f32.mrf.mxu0
        %v3264 = vadd.f32 %v3215, %v3263
        %3265 = vmatmul.bf16.gmra.mxu0 %v2243
        %v3266 = vpop.f32.mrf.mxu0
        %v3267 = vadd.f32 %v3218, %v3266
        %v3268 = vpop.f32.mrf.mxu0
        %v3269 = vadd.f32 %v3220, %v3268
        %3270 = vmatmul.bf16.gmra.mxu0 %v2247
        %v3271 = vpop.f32.mrf.mxu0
        %v3272 = vadd.f32 %v3223, %v3271
        %v3273 = vpop.f32.mrf.mxu0
        %v3274 = vadd.f32 %v3225, %v3273
        %3275 = vmatmul.bf16.gmra.mxu0 %v2251
        %v3276 = vpop.f32.mrf.mxu0
        %v3277 = vadd.f32 %v3228, %v3276
        %v3278 = vpop.f32.mrf.mxu0
        %v3279 = vadd.f32 %v3230, %v3278
        %3280 = vmatmul.bf16.gmra.mxu0 %v2255
        %v3281 = vpop.f32.mrf.mxu0
        %v3282 = vadd.f32 %v3233, %v3281
        %v3283 = vpop.f32.mrf.mxu0
        %v3284 = vadd.f32 %v3235, %v3283
        %3285 = vmatmul.bf16.gmra.mxu0 %v2259
        %v3286 = vpop.f32.mrf.mxu0
        %v3287 = vadd.f32 %v3238, %v3286
        %v3288 = vpop.f32.mrf.mxu0
        %v3289 = vadd.f32 %v3240, %v3288
        %3290 = vmatmul.bf16.gmra.mxu0 %v2263
        %v3291 = vpop.f32.mrf.mxu0
        %v3292 = vadd.f32 %v3243, %v3291
        %v3293 = vpop.f32.mrf.mxu0
        %v3294 = vadd.f32 %v3245, %v3293
        %3295 = vdwg.mxu0
        %3296 = vmatpush.bf16.msra.mxu0 %v2678
        %3297 = vmatpush.bf16.msra.mxu0 %v2674
        %3298 = vmatpush.bf16.msra.mxu0 %v2670
        %3299 = vmatpush.bf16.msra.mxu0 %v2666
        %3300 = vmatpush.bf16.msra.mxu0 %v2662
        %3301 = vmatpush.bf16.msra.mxu0 %v2658
        %3302 = vmatpush.bf16.msra.mxu0 %v2654
        %3303 = vmatpush.bf16.msra.mxu0 %v2650
        %3304 = vmatmul.bf16.gmra.mxu0 %v2232
        %v3305 = vpop.f32.mrf.mxu0
        %v3306 = vadd.f32 0.0, %v3305
        %v3307 = vpop.f32.mrf.mxu0
        %v3308 = vadd.f32 0.0, %v3307
        %3309 = vmatmul.bf16.gmra.mxu0 %v2236
        %v3310 = vpop.f32.mrf.mxu0
        %v3311 = vadd.f32 0.0, %v3310
        %v3312 = vpop.f32.mrf.mxu0
        %v3313 = vadd.f32 0.0, %v3312
        %3314 = vmatmul.bf16.gmra.mxu0 %v2240
        %v3315 = vpop.f32.mrf.mxu0
        %v3316 = vadd.f32 0.0, %v3315
        %v3317 = vpop.f32.mrf.mxu0
        %v3318 = vadd.f32 0.0, %v3317
        %3319 = vmatmul.bf16.gmra.mxu0 %v2244
        %v3320 = vpop.f32.mrf.mxu0
        %v3321 = vadd.f32 0.0, %v3320
        %v3322 = vpop.f32.mrf.mxu0
        %v3323 = vadd.f32 0.0, %v3322
        %3324 = vmatmul.bf16.gmra.mxu0 %v2248
        %v3325 = vpop.f32.mrf.mxu0
        %v3326 = vadd.f32 0.0, %v3325
        %v3327 = vpop.f32.mrf.mxu0
        %v3328 = vadd.f32 0.0, %v3327
        %3329 = vmatmul.bf16.gmra.mxu0 %v2252
        %v3330 = vpop.f32.mrf.mxu0
        %v3331 = vadd.f32 0.0, %v3330
        %v3332 = vpop.f32.mrf.mxu0
        %v3333 = vadd.f32 0.0, %v3332
        %3334 = vmatmul.bf16.gmra.mxu0 %v2256
        %v3335 = vpop.f32.mrf.mxu0
        %v3336 = vadd.f32 0.0, %v3335
        %v3337 = vpop.f32.mrf.mxu0
        %v3338 = vadd.f32 0.0, %v3337
        %3339 = vmatmul.bf16.gmra.mxu0 %v2260
        %v3340 = vpop.f32.mrf.mxu0
        %v3341 = vadd.f32 0.0, %v3340
        %v3342 = vpop.f32.mrf.mxu0
        %v3343 = vadd.f32 0.0, %v3342
        %3344 = vdwg.mxu0
        %3345 = vmatpush.bf16.msra.mxu0 %v2710
        %3346 = vmatpush.bf16.msra.mxu0 %v2706
        %3347 = vmatpush.bf16.msra.mxu0 %v2702
        %3348 = vmatpush.bf16.msra.mxu0 %v2698
        %3349 = vmatpush.bf16.msra.mxu0 %v2694
        %3350 = vmatpush.bf16.msra.mxu0 %v2690
        %3351 = vmatpush.bf16.msra.mxu0 %v2686
        %3352 = vmatpush.bf16.msra.mxu0 %v2682
        %3353 = vmatmul.bf16.gmra.mxu0 %v2233
        %v3354 = vpop.f32.mrf.mxu0
        %v3355 = vadd.f32 %v3306, %v3354
        %v3356 = vpop.f32.mrf.mxu0
        %v3357 = vadd.f32 %v3308, %v3356
        %3358 = vmatmul.bf16.gmra.mxu0 %v2237
        %v3359 = vpop.f32.mrf.mxu0
        %v3360 = vadd.f32 %v3311, %v3359
        %v3361 = vpop.f32.mrf.mxu0
        %v3362 = vadd.f32 %v3313, %v3361
        %3363 = vmatmul.bf16.gmra.mxu0 %v2241
        %v3364 = vpop.f32.mrf.mxu0
        %v3365 = vadd.f32 %v3316, %v3364
        %v3366 = vpop.f32.mrf.mxu0
        %v3367 = vadd.f32 %v3318, %v3366
        %3368 = vmatmul.bf16.gmra.mxu0 %v2245
        %v3369 = vpop.f32.mrf.mxu0
        %v3370 = vadd.f32 %v3321, %v3369
        %v3371 = vpop.f32.mrf.mxu0
        %v3372 = vadd.f32 %v3323, %v3371
        %3373 = vmatmul.bf16.gmra.mxu0 %v2249
        %v3374 = vpop.f32.mrf.mxu0
        %v3375 = vadd.f32 %v3326, %v3374
        %v3376 = vpop.f32.mrf.mxu0
        %v3377 = vadd.f32 %v3328, %v3376
        %3378 = vmatmul.bf16.gmra.mxu0 %v2253
        %v3379 = vpop.f32.mrf.mxu0
        %v3380 = vadd.f32 %v3331, %v3379
        %v3381 = vpop.f32.mrf.mxu0
        %v3382 = vadd.f32 %v3333, %v3381
        %3383 = vmatmul.bf16.gmra.mxu0 %v2257
        %v3384 = vpop.f32.mrf.mxu0
        %v3385 = vadd.f32 %v3336, %v3384
        %v3386 = vpop.f32.mrf.mxu0
        %v3387 = vadd.f32 %v3338, %v3386
        %3388 = vmatmul.bf16.gmra.mxu0 %v2261
        %v3389 = vpop.f32.mrf.mxu0
        %v3390 = vadd.f32 %v3341, %v3389
        %v3391 = vpop.f32.mrf.mxu0
        %v3392 = vadd.f32 %v3343, %v3391
        %3393 = vdwg.mxu0
        %3394 = vmatpush.bf16.msra.mxu0 %v2742
        %3395 = vmatpush.bf16.msra.mxu0 %v2738
        %3396 = vmatpush.bf16.msra.mxu0 %v2734
        %3397 = vmatpush.bf16.msra.mxu0 %v2730
        %3398 = vmatpush.bf16.msra.mxu0 %v2726
        %3399 = vmatpush.bf16.msra.mxu0 %v2722
        %3400 = vmatpush.bf16.msra.mxu0 %v2718
        %3401 = vmatpush.bf16.msra.mxu0 %v2714
        %3402 = vmatmul.bf16.gmra.mxu0 %v2234
        %v3403 = vpop.f32.mrf.mxu0
        %v3404 = vadd.f32 %v3355, %v3403
        %v3405 = vpop.f32.mrf.mxu0
        %v3406 = vadd.f32 %v3357, %v3405
        %3407 = vmatmul.bf16.gmra.mxu0 %v2238
        %v3408 = vpop.f32.mrf.mxu0
        %v3409 = vadd.f32 %v3360, %v3408
        %v3410 = vpop.f32.mrf.mxu0
        %v3411 = vadd.f32 %v3362, %v3410
        %3412 = vmatmul.bf16.gmra.mxu0 %v2242
        %v3413 = vpop.f32.mrf.mxu0
        %v3414 = vadd.f32 %v3365, %v3413
        %v3415 = vpop.f32.mrf.mxu0
        %v3416 = vadd.f32 %v3367, %v3415
        %3417 = vmatmul.bf16.gmra.mxu0 %v2246
        %v3418 = vpop.f32.mrf.mxu0
        %v3419 = vadd.f32 %v3370, %v3418
        %v3420 = vpop.f32.mrf.mxu0
        %v3421 = vadd.f32 %v3372, %v3420
        %3422 = vmatmul.bf16.gmra.mxu0 %v2250
        %v3423 = vpop.f32.mrf.mxu0
        %v3424 = vadd.f32 %v3375, %v3423
        %v3425 = vpop.f32.mrf.mxu0
        %v3426 = vadd.f32 %v3377, %v3425
        %3427 = vmatmul.bf16.gmra.mxu0 %v2254
        %v3428 = vpop.f32.mrf.mxu0
        %v3429 = vadd.f32 %v3380, %v3428
        %v3430 = vpop.f32.mrf.mxu0
        %v3431 = vadd.f32 %v3382, %v3430
        %3432 = vmatmul.bf16.gmra.mxu0 %v2258
        %v3433 = vpop.f32.mrf.mxu0
        %v3434 = vadd.f32 %v3385, %v3433
        %v3435 = vpop.f32.mrf.mxu0
        %v3436 = vadd.f32 %v3387, %v3435
        %3437 = vmatmul.bf16.gmra.mxu0 %v2262
        %v3438 = vpop.f32.mrf.mxu0
        %v3439 = vadd.f32 %v3390, %v3438
        %v3440 = vpop.f32.mrf.mxu0
        %v3441 = vadd.f32 %v3392, %v3440
        %3442 = vdwg.mxu0
        %3443 = vmatpush.bf16.msra.mxu0 %v2774
        %3444 = vmatpush.bf16.msra.mxu0 %v2770
        %3445 = vmatpush.bf16.msra.mxu0 %v2766
        %3446 = vmatpush.bf16.msra.mxu0 %v2762
        %3447 = vmatpush.bf16.msra.mxu0 %v2758
        %3448 = vmatpush.bf16.msra.mxu0 %v2754
        %3449 = vmatpush.bf16.msra.mxu0 %v2750
        %3450 = vmatpush.bf16.msra.mxu0 %v2746
        %3451 = vmatmul.bf16.gmra.mxu0 %v2235
        %v3452 = vpop.f32.mrf.mxu0
        %v3453 = vadd.f32 %v3404, %v3452
        %v3454 = vpop.f32.mrf.mxu0
        %v3455 = vadd.f32 %v3406, %v3454
        %3456 = vmatmul.bf16.gmra.mxu0 %v2239
        %v3457 = vpop.f32.mrf.mxu0
        %v3458 = vadd.f32 %v3409, %v3457
        %v3459 = vpop.f32.mrf.mxu0
        %v3460 = vadd.f32 %v3411, %v3459
        %3461 = vmatmul.bf16.gmra.mxu0 %v2243
        %v3462 = vpop.f32.mrf.mxu0
        %v3463 = vadd.f32 %v3414, %v3462
        %v3464 = vpop.f32.mrf.mxu0
        %v3465 = vadd.f32 %v3416, %v3464
        %3466 = vmatmul.bf16.gmra.mxu0 %v2247
        %v3467 = vpop.f32.mrf.mxu0
        %v3468 = vadd.f32 %v3419, %v3467
        %v3469 = vpop.f32.mrf.mxu0
        %v3470 = vadd.f32 %v3421, %v3469
        %3471 = vmatmul.bf16.gmra.mxu0 %v2251
        %v3472 = vpop.f32.mrf.mxu0
        %v3473 = vadd.f32 %v3424, %v3472
        %v3474 = vpop.f32.mrf.mxu0
        %v3475 = vadd.f32 %v3426, %v3474
        %3476 = vmatmul.bf16.gmra.mxu0 %v2255
        %v3477 = vpop.f32.mrf.mxu0
        %v3478 = vadd.f32 %v3429, %v3477
        %v3479 = vpop.f32.mrf.mxu0
        %v3480 = vadd.f32 %v3431, %v3479
        %3481 = vmatmul.bf16.gmra.mxu0 %v2259
        %v3482 = vpop.f32.mrf.mxu0
        %v3483 = vadd.f32 %v3434, %v3482
        %v3484 = vpop.f32.mrf.mxu0
        %v3485 = vadd.f32 %v3436, %v3484
        %3486 = vmatmul.bf16.gmra.mxu0 %v2263
        %v3487 = vpop.f32.mrf.mxu0
        %v3488 = vadd.f32 %v3439, %v3487
        %v3489 = vpop.f32.mrf.mxu0
        %v3490 = vadd.f32 %v3441, %v3489
        %3491 = vdwg.mxu0
        %3492 = vmatpush.bf16.msra.mxu0 %v2679
        %3493 = vmatpush.bf16.msra.mxu0 %v2675
        %3494 = vmatpush.bf16.msra.mxu0 %v2671
        %3495 = vmatpush.bf16.msra.mxu0 %v2667
        %3496 = vmatpush.bf16.msra.mxu0 %v2663
        %3497 = vmatpush.bf16.msra.mxu0 %v2659
        %3498 = vmatpush.bf16.msra.mxu0 %v2655
        %3499 = vmatpush.bf16.msra.mxu0 %v2651
        %3500 = vmatmul.bf16.gmra.mxu0 %v2232
        %v3501 = vpop.f32.mrf.mxu0
        %v3502 = vadd.f32 0.0, %v3501
        %v3503 = vpop.f32.mrf.mxu0
        %v3504 = vadd.f32 0.0, %v3503
        %3505 = vmatmul.bf16.gmra.mxu0 %v2236
        %v3506 = vpop.f32.mrf.mxu0
        %v3507 = vadd.f32 0.0, %v3506
        %v3508 = vpop.f32.mrf.mxu0
        %v3509 = vadd.f32 0.0, %v3508
        %3510 = vmatmul.bf16.gmra.mxu0 %v2240
        %v3511 = vpop.f32.mrf.mxu0
        %v3512 = vadd.f32 0.0, %v3511
        %v3513 = vpop.f32.mrf.mxu0
        %v3514 = vadd.f32 0.0, %v3513
        %3515 = vmatmul.bf16.gmra.mxu0 %v2244
        %v3516 = vpop.f32.mrf.mxu0
        %v3517 = vadd.f32 0.0, %v3516
        %v3518 = vpop.f32.mrf.mxu0
        %v3519 = vadd.f32 0.0, %v3518
        %3520 = vmatmul.bf16.gmra.mxu0 %v2248
        %v3521 = vpop.f32.mrf.mxu0
        %v3522 = vadd.f32 0.0, %v3521
        %v3523 = vpop.f32.mrf.mxu0
        %v3524 = vadd.f32 0.0, %v3523
        %3525 = vmatmul.bf16.gmra.mxu0 %v2252
        %v3526 = vpop.f32.mrf.mxu0
        %v3527 = vadd.f32 0.0, %v3526
        %v3528 = vpop.f32.mrf.mxu0
        %v3529 = vadd.f32 0.0, %v3528
        %3530 = vmatmul.bf16.gmra.mxu0 %v2256
        %v3531 = vpop.f32.mrf.mxu0
        %v3532 = vadd.f32 0.0, %v3531
        %v3533 = vpop.f32.mrf.mxu0
        %v3534 = vadd.f32 0.0, %v3533
        %3535 = vmatmul.bf16.gmra.mxu0 %v2260
        %v3536 = vpop.f32.mrf.mxu0
        %v3537 = vadd.f32 0.0, %v3536
        %v3538 = vpop.f32.mrf.mxu0
        %v3539 = vadd.f32 0.0, %v3538
        %3540 = vdwg.mxu0
        %3541 = vmatpush.bf16.msra.mxu0 %v2711
        %3542 = vmatpush.bf16.msra.mxu0 %v2707
        %3543 = vmatpush.bf16.msra.mxu0 %v2703
        %3544 = vmatpush.bf16.msra.mxu0 %v2699
        %3545 = vmatpush.bf16.msra.mxu0 %v2695
        %3546 = vmatpush.bf16.msra.mxu0 %v2691
        %3547 = vmatpush.bf16.msra.mxu0 %v2687
        %3548 = vmatpush.bf16.msra.mxu0 %v2683
        %3549 = vmatmul.bf16.gmra.mxu0 %v2233
        %v3550 = vpop.f32.mrf.mxu0
        %v3551 = vadd.f32 %v3502, %v3550
        %v3552 = vpop.f32.mrf.mxu0
        %v3553 = vadd.f32 %v3504, %v3552
        %3554 = vmatmul.bf16.gmra.mxu0 %v2237
        %v3555 = vpop.f32.mrf.mxu0
        %v3556 = vadd.f32 %v3507, %v3555
        %v3557 = vpop.f32.mrf.mxu0
        %v3558 = vadd.f32 %v3509, %v3557
        %3559 = vmatmul.bf16.gmra.mxu0 %v2241
        %v3560 = vpop.f32.mrf.mxu0
        %v3561 = vadd.f32 %v3512, %v3560
        %v3562 = vpop.f32.mrf.mxu0
        %v3563 = vadd.f32 %v3514, %v3562
        %3564 = vmatmul.bf16.gmra.mxu0 %v2245
        %v3565 = vpop.f32.mrf.mxu0
        %v3566 = vadd.f32 %v3517, %v3565
        %v3567 = vpop.f32.mrf.mxu0
        %v3568 = vadd.f32 %v3519, %v3567
        %3569 = vmatmul.bf16.gmra.mxu0 %v2249
        %v3570 = vpop.f32.mrf.mxu0
        %v3571 = vadd.f32 %v3522, %v3570
        %v3572 = vpop.f32.mrf.mxu0
        %v3573 = vadd.f32 %v3524, %v3572
        %3574 = vmatmul.bf16.gmra.mxu0 %v2253
        %v3575 = vpop.f32.mrf.mxu0
        %v3576 = vadd.f32 %v3527, %v3575
        %v3577 = vpop.f32.mrf.mxu0
        %v3578 = vadd.f32 %v3529, %v3577
        %3579 = vmatmul.bf16.gmra.mxu0 %v2257
        %v3580 = vpop.f32.mrf.mxu0
        %v3581 = vadd.f32 %v3532, %v3580
        %v3582 = vpop.f32.mrf.mxu0
        %v3583 = vadd.f32 %v3534, %v3582
        %3584 = vmatmul.bf16.gmra.mxu0 %v2261
        %v3585 = vpop.f32.mrf.mxu0
        %v3586 = vadd.f32 %v3537, %v3585
        %v3587 = vpop.f32.mrf.mxu0
        %v3588 = vadd.f32 %v3539, %v3587
        %3589 = vdwg.mxu0
        %3590 = vmatpush.bf16.msra.mxu0 %v2743
        %3591 = vmatpush.bf16.msra.mxu0 %v2739
        %3592 = vmatpush.bf16.msra.mxu0 %v2735
        %3593 = vmatpush.bf16.msra.mxu0 %v2731
        %3594 = vmatpush.bf16.msra.mxu0 %v2727
        %3595 = vmatpush.bf16.msra.mxu0 %v2723
        %3596 = vmatpush.bf16.msra.mxu0 %v2719
        %3597 = vmatpush.bf16.msra.mxu0 %v2715
        %3598 = vmatmul.bf16.gmra.mxu0 %v2234
        %v3599 = vpop.f32.mrf.mxu0
        %v3600 = vadd.f32 %v3551, %v3599
        %v3601 = vpop.f32.mrf.mxu0
        %v3602 = vadd.f32 %v3553, %v3601
        %3603 = vmatmul.bf16.gmra.mxu0 %v2238
        %v3604 = vpop.f32.mrf.mxu0
        %v3605 = vadd.f32 %v3556, %v3604
        %v3606 = vpop.f32.mrf.mxu0
        %v3607 = vadd.f32 %v3558, %v3606
        %3608 = vmatmul.bf16.gmra.mxu0 %v2242
        %v3609 = vpop.f32.mrf.mxu0
        %v3610 = vadd.f32 %v3561, %v3609
        %v3611 = vpop.f32.mrf.mxu0
        %v3612 = vadd.f32 %v3563, %v3611
        %3613 = vmatmul.bf16.gmra.mxu0 %v2246
        %v3614 = vpop.f32.mrf.mxu0
        %v3615 = vadd.f32 %v3566, %v3614
        %v3616 = vpop.f32.mrf.mxu0
        %v3617 = vadd.f32 %v3568, %v3616
        %3618 = vmatmul.bf16.gmra.mxu0 %v2250
        %v3619 = vpop.f32.mrf.mxu0
        %v3620 = vadd.f32 %v3571, %v3619
        %v3621 = vpop.f32.mrf.mxu0
        %v3622 = vadd.f32 %v3573, %v3621
        %3623 = vmatmul.bf16.gmra.mxu0 %v2254
        %v3624 = vpop.f32.mrf.mxu0
        %v3625 = vadd.f32 %v3576, %v3624
        %v3626 = vpop.f32.mrf.mxu0
        %v3627 = vadd.f32 %v3578, %v3626
        %3628 = vmatmul.bf16.gmra.mxu0 %v2258
        %v3629 = vpop.f32.mrf.mxu0
        %v3630 = vadd.f32 %v3581, %v3629
        %v3631 = vpop.f32.mrf.mxu0
        %v3632 = vadd.f32 %v3583, %v3631
        %3633 = vmatmul.bf16.gmra.mxu0 %v2262
        %v3634 = vpop.f32.mrf.mxu0
        %v3635 = vadd.f32 %v3586, %v3634
        %v3636 = vpop.f32.mrf.mxu0
        %v3637 = vadd.f32 %v3588, %v3636
        %3638 = vdwg.mxu0
        %3639 = vmatpush.bf16.msra.mxu0 %v2775
        %3640 = vmatpush.bf16.msra.mxu0 %v2771
        %3641 = vmatpush.bf16.msra.mxu0 %v2767
        %3642 = vmatpush.bf16.msra.mxu0 %v2763
        %3643 = vmatpush.bf16.msra.mxu0 %v2759
        %3644 = vmatpush.bf16.msra.mxu0 %v2755
        %3645 = vmatpush.bf16.msra.mxu0 %v2751
        %3646 = vmatpush.bf16.msra.mxu0 %v2747
        %3647 = vmatmul.bf16.gmra.mxu0 %v2235
        %v3648 = vpop.f32.mrf.mxu0
        %v3649 = vadd.f32 %v3600, %v3648
        %v3650 = vpop.f32.mrf.mxu0
        %v3651 = vadd.f32 %v3602, %v3650
        %3652 = vmatmul.bf16.gmra.mxu0 %v2239
        %v3653 = vpop.f32.mrf.mxu0
        %v3654 = vadd.f32 %v3605, %v3653
        %v3655 = vpop.f32.mrf.mxu0
        %v3656 = vadd.f32 %v3607, %v3655
        %3657 = vmatmul.bf16.gmra.mxu0 %v2243
        %v3658 = vpop.f32.mrf.mxu0
        %v3659 = vadd.f32 %v3610, %v3658
        %v3660 = vpop.f32.mrf.mxu0
        %v3661 = vadd.f32 %v3612, %v3660
        %3662 = vmatmul.bf16.gmra.mxu0 %v2247
        %v3663 = vpop.f32.mrf.mxu0
        %v3664 = vadd.f32 %v3615, %v3663
        %v3665 = vpop.f32.mrf.mxu0
        %v3666 = vadd.f32 %v3617, %v3665
        %3667 = vmatmul.bf16.gmra.mxu0 %v2251
        %v3668 = vpop.f32.mrf.mxu0
        %v3669 = vadd.f32 %v3620, %v3668
        %v3670 = vpop.f32.mrf.mxu0
        %v3671 = vadd.f32 %v3622, %v3670
        %3672 = vmatmul.bf16.gmra.mxu0 %v2255
        %v3673 = vpop.f32.mrf.mxu0
        %v3674 = vadd.f32 %v3625, %v3673
        %v3675 = vpop.f32.mrf.mxu0
        %v3676 = vadd.f32 %v3627, %v3675
        %3677 = vmatmul.bf16.gmra.mxu0 %v2259
        %v3678 = vpop.f32.mrf.mxu0
        %v3679 = vadd.f32 %v3630, %v3678
        %v3680 = vpop.f32.mrf.mxu0
        %v3681 = vadd.f32 %v3632, %v3680
        %3682 = vmatmul.bf16.gmra.mxu0 %v2263
        %v3683 = vpop.f32.mrf.mxu0
        %v3684 = vadd.f32 %v3635, %v3683
        %v3685 = vpop.f32.mrf.mxu0
        %v3686 = vadd.f32 %v3637, %v3685
        %3687 = vdwg.mxu0
        %v3688 = vmax.f32 %v3061, 0.0
        %v3689 = vmax.f32 %v3257, 0.0
        %v3690 = vmax.f32 %v3453, 0.0
        %v3691 = vmax.f32 %v3649, 0.0
        %v3692 = vmax.f32 %v3063, 0.0
        %v3693 = vmax.f32 %v3259, 0.0
        %v3694 = vmax.f32 %v3455, 0.0
        %v3695 = vmax.f32 %v3651, 0.0
        %v3696 = vmax.f32 %v3066, 0.0
        %v3697 = vmax.f32 %v3262, 0.0
        %v3698 = vmax.f32 %v3458, 0.0
        %v3699 = vmax.f32 %v3654, 0.0
        %v3700 = vmax.f32 %v3068, 0.0
        %v3701 = vmax.f32 %v3264, 0.0
        %v3702 = vmax.f32 %v3460, 0.0
        %v3703 = vmax.f32 %v3656, 0.0
        %v3704 = vmax.f32 %v3071, 0.0
        %v3705 = vmax.f32 %v3267, 0.0
        %v3706 = vmax.f32 %v3463, 0.0
        %v3707 = vmax.f32 %v3659, 0.0
        %v3708 = vmax.f32 %v3073, 0.0
        %v3709 = vmax.f32 %v3269, 0.0
        %v3710 = vmax.f32 %v3465, 0.0
        %v3711 = vmax.f32 %v3661, 0.0
        %v3712 = vmax.f32 %v3076, 0.0
        %v3713 = vmax.f32 %v3272, 0.0
        %v3714 = vmax.f32 %v3468, 0.0
        %v3715 = vmax.f32 %v3664, 0.0
        %v3716 = vmax.f32 %v3078, 0.0
        %v3717 = vmax.f32 %v3274, 0.0
        %v3718 = vmax.f32 %v3470, 0.0
        %v3719 = vmax.f32 %v3666, 0.0
        %v3720 = vmax.f32 %v3081, 0.0
        %v3721 = vmax.f32 %v3277, 0.0
        %v3722 = vmax.f32 %v3473, 0.0
        %v3723 = vmax.f32 %v3669, 0.0
        %v3724 = vmax.f32 %v3083, 0.0
        %v3725 = vmax.f32 %v3279, 0.0
        %v3726 = vmax.f32 %v3475, 0.0
        %v3727 = vmax.f32 %v3671, 0.0
        %v3728 = vmax.f32 %v3086, 0.0
        %v3729 = vmax.f32 %v3282, 0.0
        %v3730 = vmax.f32 %v3478, 0.0
        %v3731 = vmax.f32 %v3674, 0.0
        %v3732 = vmax.f32 %v3088, 0.0
        %v3733 = vmax.f32 %v3284, 0.0
        %v3734 = vmax.f32 %v3480, 0.0
        %v3735 = vmax.f32 %v3676, 0.0
        %v3736 = vmax.f32 %v3091, 0.0
        %v3737 = vmax.f32 %v3287, 0.0
        %v3738 = vmax.f32 %v3483, 0.0
        %v3739 = vmax.f32 %v3679, 0.0
        %v3740 = vmax.f32 %v3093, 0.0
        %v3741 = vmax.f32 %v3289, 0.0
        %v3742 = vmax.f32 %v3485, 0.0
        %v3743 = vmax.f32 %v3681, 0.0
        %v3744 = vmax.f32 %v3096, 0.0
        %v3745 = vmax.f32 %v3292, 0.0
        %v3746 = vmax.f32 %v3488, 0.0
        %v3747 = vmax.f32 %v3684, 0.0
        %v3748 = vmax.f32 %v3098, 0.0
        %v3749 = vmax.f32 %v3294, 0.0
        %v3750 = vmax.f32 %v3490, 0.0
        %v3751 = vmax.f32 %v3686, 0.0
        %v3752 = vadd.f32 %v387, %v3688
        %v3753 = vadd.f32 %v388, %v3689
        %v3754 = vadd.f32 %v389, %v3690
        %v3755 = vadd.f32 %v390, %v3691
        %v3756 = vadd.f32 %v391, %v3692
        %v3757 = vadd.f32 %v392, %v3693
        %v3758 = vadd.f32 %v393, %v3694
        %v3759 = vadd.f32 %v394, %v3695
        %v3760 = vadd.f32 %v395, %v3696
        %v3761 = vadd.f32 %v396, %v3697
        %v3762 = vadd.f32 %v397, %v3698
        %v3763 = vadd.f32 %v398, %v3699
        %v3764 = vadd.f32 %v399, %v3700
        %v3765 = vadd.f32 %v400, %v3701
        %v3766 = vadd.f32 %v401, %v3702
        %v3767 = vadd.f32 %v402, %v3703
        %v3768 = vadd.f32 %v403, %v3704
        %v3769 = vadd.f32 %v404, %v3705
        %v3770 = vadd.f32 %v405, %v3706
        %v3771 = vadd.f32 %v406, %v3707
        %v3772 = vadd.f32 %v407, %v3708
        %v3773 = vadd.f32 %v408, %v3709
        %v3774 = vadd.f32 %v409, %v3710
        %v3775 = vadd.f32 %v410, %v3711
        %v3776 = vadd.f32 %v411, %v3712
        %v3777 = vadd.f32 %v412, %v3713
        %v3778 = vadd.f32 %v413, %v3714
        %v3779 = vadd.f32 %v414, %v3715
        %v3780 = vadd.f32 %v415, %v3716
        %v3781 = vadd.f32 %v416, %v3717
        %v3782 = vadd.f32 %v417, %v3718
        %v3783 = vadd.f32 %v418, %v3719
        %v3784 = vadd.f32 %v419, %v3720
        %v3785 = vadd.f32 %v420, %v3721
        %v3786 = vadd.f32 %v421, %v3722
        %v3787 = vadd.f32 %v422, %v3723
        %v3788 = vadd.f32 %v423, %v3724
        %v3789 = vadd.f32 %v424, %v3725
        %v3790 = vadd.f32 %v425, %v3726
        %v3791 = vadd.f32 %v426, %v3727
        %v3792 = vadd.f32 %v427, %v3728
        %v3793 = vadd.f32 %v428, %v3729
        %v3794 = vadd.f32 %v429, %v3730
        %v3795 = vadd.f32 %v430, %v3731
        %v3796 = vadd.f32 %v431, %v3732
        %v3797 = vadd.f32 %v432, %v3733
        %v3798 = vadd.f32 %v433, %v3734
        %v3799 = vadd.f32 %v434, %v3735
        %v3800 = vadd.f32 %v435, %v3736
        %v3801 = vadd.f32 %v436, %v3737
        %v3802 = vadd.f32 %v437, %v3738
        %v3803 = vadd.f32 %v438, %v3739
        %v3804 = vadd.f32 %v439, %v3740
        %v3805 = vadd.f32 %v440, %v3741
        %v3806 = vadd.f32 %v441, %v3742
        %v3807 = vadd.f32 %v442, %v3743
        %v3808 = vadd.f32 %v443, %v3744
        %v3809 = vadd.f32 %v444, %v3745
        %v3810 = vadd.f32 %v445, %v3746
        %v3811 = vadd.f32 %v446, %v3747
        %v3812 = vadd.f32 %v447, %v3748
        %v3813 = vadd.f32 %v448, %v3749
        %v3814 = vadd.f32 %v449, %v3750
        %v3815 = vadd.f32 %v450, %v3751
        %3816 = vst [vmem:[#allocation2] sm:$0xff] %v3752
        %3817 = vst [vmem:[#allocation2 + $0x8] sm:$0xff] %v3753
        %3818 = vst [vmem:[#allocation2 + $0x10] sm:$0xff] %v3754
        %3819 = vst [vmem:[#allocation2 + $0x18] sm:$0xff] %v3755
        %3820 = vst [vmem:[#allocation2 + $0x20] sm:$0xff] %v3756
        %3821 = vst [vmem:[#allocation2 + $0x28] sm:$0xff] %v3757
        %3822 = vst [vmem:[#allocation2 + $0x30] sm:$0xff] %v3758
        %3823 = vst [vmem:[#allocation2 + $0x38] sm:$0xff] %v3759
        %3824 = vst [vmem:[#allocation2 + $0x40] sm:$0xff] %v3760
        %3825 = vst [vmem:[#allocation2 + $0x48] sm:$0xff] %v3761
        %3826 = vst [vmem:[#allocation2 + $0x50] sm:$0xff] %v3762
        %3827 = vst [vmem:[#allocation2 + $0x58] sm:$0xff] %v3763
        %3828 = vst [vmem:[#allocation2 + $0x60] sm:$0xff] %v3764
        %3829 = vst [vmem:[#allocation2 + $0x68] sm:$0xff] %v3765
        %3830 = vst [vmem:[#allocation2 + $0x70] sm:$0xff] %v3766
        %3831 = vst [vmem:[#allocation2 + $0x78] sm:$0xff] %v3767
        %3832 = vst [vmem:[#allocation2 + $0x80] sm:$0xff] %v3768
        %3833 = vst [vmem:[#allocation2 + $0x88] sm:$0xff] %v3769
        %3834 = vst [vmem:[#allocation2 + $0x90] sm:$0xff] %v3770
        %3835 = vst [vmem:[#allocation2 + $0x98] sm:$0xff] %v3771
        %3836 = vst [vmem:[#allocation2 + $0xa0] sm:$0xff] %v3772
        %3837 = vst [vmem:[#allocation2 + $0xa8] sm:$0xff] %v3773
        %3838 = vst [vmem:[#allocation2 + $0xb0] sm:$0xff] %v3774
        %3839 = vst [vmem:[#allocation2 + $0xb8] sm:$0xff] %v3775
        %3840 = vst [vmem:[#allocation2 + $0xc0] sm:$0xff] %v3776
        %3841 = vst [vmem:[#allocation2 + $0xc8] sm:$0xff] %v3777
        %3842 = vst [vmem:[#allocation2 + $0xd0] sm:$0xff] %v3778
        %3843 = vst [vmem:[#allocation2 + $0xd8] sm:$0xff] %v3779
        %3844 = vst [vmem:[#allocation2 + $0xe0] sm:$0xff] %v3780
        %3845 = vst [vmem:[#allocation2 + $0xe8] sm:$0xff] %v3781
        %3846 = vst [vmem:[#allocation2 + $0xf0] sm:$0xff] %v3782
        %3847 = vst [vmem:[#allocation2 + $0xf8] sm:$0xff] %v3783
        %3848 = vst [vmem:[#allocation2 + $0x100] sm:$0xff] %v3784
        %3849 = vst [vmem:[#allocation2 + $0x108] sm:$0xff] %v3785
        %3850 = vst [vmem:[#allocation2 + $0x110] sm:$0xff] %v3786
        %3851 = vst [vmem:[#allocation2 + $0x118] sm:$0xff] %v3787
        %3852 = vst [vmem:[#allocation2 + $0x120] sm:$0xff] %v3788
        %3853 = vst [vmem:[#allocation2 + $0x128] sm:$0xff] %v3789
        %3854 = vst [vmem:[#allocation2 + $0x130] sm:$0xff] %v3790
        %3855 = vst [vmem:[#allocation2 + $0x138] sm:$0xff] %v3791
        %3856 = vst [vmem:[#allocation2 + $0x140] sm:$0xff] %v3792
        %3857 = vst [vmem:[#allocation2 + $0x148] sm:$0xff] %v3793
        %3858 = vst [vmem:[#allocation2 + $0x150] sm:$0xff] %v3794
        %3859 = vst [vmem:[#allocation2 + $0x158] sm:$0xff] %v3795
        %3860 = vst [vmem:[#allocation2 + $0x160] sm:$0xff] %v3796
        %3861 = vst [vmem:[#allocation2 + $0x168] sm:$0xff] %v3797
        %3862 = vst [vmem:[#allocation2 + $0x170] sm:$0xff] %v3798
        %3863 = vst [vmem:[#allocation2 + $0x178] sm:$0xff] %v3799
        %3864 = vst [vmem:[#allocation2 + $0x180] sm:$0xff] %v3800
        %3865 = vst [vmem:[#allocation2 + $0x188] sm:$0xff] %v3801
        %3866 = vst [vmem:[#allocation2 + $0x190] sm:$0xff] %v3802
        %3867 = vst [vmem:[#allocation2 + $0x198] sm:$0xff] %v3803
        %3868 = vst [vmem:[#allocation2 + $0x1a0] sm:$0xff] %v3804
        %3869 = vst [vmem:[#allocation2 + $0x1a8] sm:$0xff] %v3805
        %3870 = vst [vmem:[#allocation2 + $0x1b0] sm:$0xff] %v3806
        %3871 = vst [vmem:[#allocation2 + $0x1b8] sm:$0xff] %v3807
        %3872 = vst [vmem:[#allocation2 + $0x1c0] sm:$0xff] %v3808
        %3873 = vst [vmem:[#allocation2 + $0x1c8] sm:$0xff] %v3809
        %3874 = vst [vmem:[#allocation2 + $0x1d0] sm:$0xff] %v3810
        %3875 = vst [vmem:[#allocation2 + $0x1d8] sm:$0xff] %v3811
        %3876 = vst [vmem:[#allocation2 + $0x1e0] sm:$0xff] %v3812
        %3877 = vst [vmem:[#allocation2 + $0x1e8] sm:$0xff] %v3813
        %3878 = vst [vmem:[#allocation2 + $0x1f0] sm:$0xff] %v3814
        %3879 = vst [vmem:[#allocation2 + $0x1f8] sm:$0xff] %v3815
        // Predicated region
        $region45: #{tpu_custom_call.1} parent=31 // pred_check
          %p3880 = pneg %p223
        $region46: #{tpu_custom_call.1} parent=31 // pred_check_branch
          %3882 = sbr.rel (%p3880) target = $region48
        $region47: #{tpu_custom_call.1} parent=31 // pred_region
          %v3883 = vld [vmem:[#allocation2] sm:$0xff]
          %v3884 = vld [vmem:[#allocation2 + $0x8] sm:$0xff]
          %v3885 = vld [vmem:[#allocation2 + $0x10] sm:$0xff]
          %v3886 = vld [vmem:[#allocation2 + $0x18] sm:$0xff]
          %v3887 = vld [vmem:[#allocation2 + $0x20] sm:$0xff]
          %v3888 = vld [vmem:[#allocation2 + $0x28] sm:$0xff]
          %v3889 = vld [vmem:[#allocation2 + $0x30] sm:$0xff]
          %v3890 = vld [vmem:[#allocation2 + $0x38] sm:$0xff]
          %v3891 = vld [vmem:[#allocation2 + $0x40] sm:$0xff]
          %v3892 = vld [vmem:[#allocation2 + $0x48] sm:$0xff]
          %v3893 = vld [vmem:[#allocation2 + $0x50] sm:$0xff]
          %v3894 = vld [vmem:[#allocation2 + $0x58] sm:$0xff]
          %v3895 = vld [vmem:[#allocation2 + $0x60] sm:$0xff]
          %v3896 = vld [vmem:[#allocation2 + $0x68] sm:$0xff]
          %v3897 = vld [vmem:[#allocation2 + $0x70] sm:$0xff]
          %v3898 = vld [vmem:[#allocation2 + $0x78] sm:$0xff]
          %v3899 = vld [vmem:[#allocation2 + $0x80] sm:$0xff]
          %v3900 = vld [vmem:[#allocation2 + $0x88] sm:$0xff]
          %v3901 = vld [vmem:[#allocation2 + $0x90] sm:$0xff]
          %v3902 = vld [vmem:[#allocation2 + $0x98] sm:$0xff]
          %v3903 = vld [vmem:[#allocation2 + $0xa0] sm:$0xff]
          %v3904 = vld [vmem:[#allocation2 + $0xa8] sm:$0xff]
          %v3905 = vld [vmem:[#allocation2 + $0xb0] sm:$0xff]
          %v3906 = vld [vmem:[#allocation2 + $0xb8] sm:$0xff]
          %v3907 = vld [vmem:[#allocation2 + $0xc0] sm:$0xff]
          %v3908 = vld [vmem:[#allocation2 + $0xc8] sm:$0xff]
          %v3909 = vld [vmem:[#allocation2 + $0xd0] sm:$0xff]
          %v3910 = vld [vmem:[#allocation2 + $0xd8] sm:$0xff]
          %v3911 = vld [vmem:[#allocation2 + $0xe0] sm:$0xff]
          %v3912 = vld [vmem:[#allocation2 + $0xe8] sm:$0xff]
          %v3913 = vld [vmem:[#allocation2 + $0xf0] sm:$0xff]
          %v3914 = vld [vmem:[#allocation2 + $0xf8] sm:$0xff]
          %v3915 = vld [vmem:[#allocation2 + $0x100] sm:$0xff]
          %v3916 = vld [vmem:[#allocation2 + $0x108] sm:$0xff]
          %v3917 = vld [vmem:[#allocation2 + $0x110] sm:$0xff]
          %v3918 = vld [vmem:[#allocation2 + $0x118] sm:$0xff]
          %v3919 = vld [vmem:[#allocation2 + $0x120] sm:$0xff]
          %v3920 = vld [vmem:[#allocation2 + $0x128] sm:$0xff]
          %v3921 = vld [vmem:[#allocation2 + $0x130] sm:$0xff]
          %v3922 = vld [vmem:[#allocation2 + $0x138] sm:$0xff]
          %v3923 = vld [vmem:[#allocation2 + $0x140] sm:$0xff]
          %v3924 = vld [vmem:[#allocation2 + $0x148] sm:$0xff]
          %v3925 = vld [vmem:[#allocation2 + $0x150] sm:$0xff]
          %v3926 = vld [vmem:[#allocation2 + $0x158] sm:$0xff]
          %v3927 = vld [vmem:[#allocation2 + $0x160] sm:$0xff]
          %v3928 = vld [vmem:[#allocation2 + $0x168] sm:$0xff]
          %v3929 = vld [vmem:[#allocation2 + $0x170] sm:$0xff]
          %v3930 = vld [vmem:[#allocation2 + $0x178] sm:$0xff]
          %v3931 = vld [vmem:[#allocation2 + $0x180] sm:$0xff]
          %v3932 = vld [vmem:[#allocation2 + $0x188] sm:$0xff]
          %v3933 = vld [vmem:[#allocation2 + $0x190] sm:$0xff]
          %v3934 = vld [vmem:[#allocation2 + $0x198] sm:$0xff]
          %v3935 = vld [vmem:[#allocation2 + $0x1a0] sm:$0xff]
          %v3936 = vld [vmem:[#allocation2 + $0x1a8] sm:$0xff]
          %v3937 = vld [vmem:[#allocation2 + $0x1b0] sm:$0xff]
          %v3938 = vld [vmem:[#allocation2 + $0x1b8] sm:$0xff]
          %v3939 = vld [vmem:[#allocation2 + $0x1c0] sm:$0xff]
          %v3940 = vld [vmem:[#allocation2 + $0x1c8] sm:$0xff]
          %v3941 = vld [vmem:[#allocation2 + $0x1d0] sm:$0xff]
          %v3942 = vld [vmem:[#allocation2 + $0x1d8] sm:$0xff]
          %v3943 = vld [vmem:[#allocation2 + $0x1e0] sm:$0xff]
          %v3944 = vld [vmem:[#allocation2 + $0x1e8] sm:$0xff]
          %v3945 = vld [vmem:[#allocation2 + $0x1f0] sm:$0xff]
          %v3946 = vld [vmem:[#allocation2 + $0x1f8] sm:$0xff]
          %v3947 = vpack.c.bf16 %v3884, %v3883
          %v3948 = vpack.c.bf16 %v3886, %v3885
          %v3949 = vpack.c.bf16 %v3888, %v3887
          %v3950 = vpack.c.bf16 %v3890, %v3889
          %v3951 = vpack.c.bf16 %v3892, %v3891
          %v3952 = vpack.c.bf16 %v3894, %v3893
          %v3953 = vpack.c.bf16 %v3896, %v3895
          %v3954 = vpack.c.bf16 %v3898, %v3897
          %v3955 = vpack.c.bf16 %v3900, %v3899
          %v3956 = vpack.c.bf16 %v3902, %v3901
          %v3957 = vpack.c.bf16 %v3904, %v3903
          %v3958 = vpack.c.bf16 %v3906, %v3905
          %v3959 = vpack.c.bf16 %v3908, %v3907
          %v3960 = vpack.c.bf16 %v3910, %v3909
          %v3961 = vpack.c.bf16 %v3912, %v3911
          %v3962 = vpack.c.bf16 %v3914, %v3913
          %v3963 = vpack.c.bf16 %v3916, %v3915
          %v3964 = vpack.c.bf16 %v3918, %v3917
          %v3965 = vpack.c.bf16 %v3920, %v3919
          %v3966 = vpack.c.bf16 %v3922, %v3921
          %v3967 = vpack.c.bf16 %v3924, %v3923
          %v3968 = vpack.c.bf16 %v3926, %v3925
          %v3969 = vpack.c.bf16 %v3928, %v3927
          %v3970 = vpack.c.bf16 %v3930, %v3929
          %v3971 = vpack.c.bf16 %v3932, %v3931
          %v3972 = vpack.c.bf16 %v3934, %v3933
          %v3973 = vpack.c.bf16 %v3936, %v3935
          %v3974 = vpack.c.bf16 %v3938, %v3937
          %v3975 = vpack.c.bf16 %v3940, %v3939
          %v3976 = vpack.c.bf16 %v3942, %v3941
          %v3977 = vpack.c.bf16 %v3944, %v3943
          %v3978 = vpack.c.bf16 %v3946, %v3945
          %3979 = vst [vmem:[%s220] sm:$0xff] %v3947
          %3980 = vst [vmem:[%s220 + $0x8] sm:$0xff] %v3948
          %3981 = vst [vmem:[%s220 + $0x10] sm:$0xff] %v3949
          %3982 = vst [vmem:[%s220 + $0x18] sm:$0xff] %v3950
          %3983 = vst [vmem:[%s220 + $0x20] sm:$0xff] %v3951
          %3984 = vst [vmem:[%s220 + $0x28] sm:$0xff] %v3952
          %3985 = vst [vmem:[%s220 + $0x30] sm:$0xff] %v3953
          %3986 = vst [vmem:[%s220 + $0x38] sm:$0xff] %v3954
          %3987 = vst [vmem:[%s220 + $0x40] sm:$0xff] %v3955
          %3988 = vst [vmem:[%s220 + $0x48] sm:$0xff] %v3956
          %3989 = vst [vmem:[%s220 + $0x50] sm:$0xff] %v3957
          %3990 = vst [vmem:[%s220 + $0x58] sm:$0xff] %v3958
          %3991 = vst [vmem:[%s220 + $0x60] sm:$0xff] %v3959
          %3992 = vst [vmem:[%s220 + $0x68] sm:$0xff] %v3960
          %3993 = vst [vmem:[%s220 + $0x70] sm:$0xff] %v3961
          %3994 = vst [vmem:[%s220 + $0x78] sm:$0xff] %v3962
          %3995 = vst [vmem:[%s220 + $0x80] sm:$0xff] %v3963
          %3996 = vst [vmem:[%s220 + $0x88] sm:$0xff] %v3964
          %3997 = vst [vmem:[%s220 + $0x90] sm:$0xff] %v3965
          %3998 = vst [vmem:[%s220 + $0x98] sm:$0xff] %v3966
          %3999 = vst [vmem:[%s220 + $0xa0] sm:$0xff] %v3967
          %4000 = vst [vmem:[%s220 + $0xa8] sm:$0xff] %v3968
          %4001 = vst [vmem:[%s220 + $0xb0] sm:$0xff] %v3969
          %4002 = vst [vmem:[%s220 + $0xb8] sm:$0xff] %v3970
          %4003 = vst [vmem:[%s220 + $0xc0] sm:$0xff] %v3971
          %4004 = vst [vmem:[%s220 + $0xc8] sm:$0xff] %v3972
          %4005 = vst [vmem:[%s220 + $0xd0] sm:$0xff] %v3973
          %4006 = vst [vmem:[%s220 + $0xd8] sm:$0xff] %v3974
          %4007 = vst [vmem:[%s220 + $0xe0] sm:$0xff] %v3975
          %4008 = vst [vmem:[%s220 + $0xe8] sm:$0xff] %v3976
          %4009 = vst [vmem:[%s220 + $0xf0] sm:$0xff] %v3977
          %4010 = vst [vmem:[%s220 + $0xf8] sm:$0xff] %v3978
        $region48: #{tpu_custom_call.1} parent=31 // pred_fallthru
          _
        %s4011 = sand.u32 %s109, 1
        %s4012 = scalar_lea.sflag [#allocation5], %s4011
        %s4013 = sand.u32 %s109, 1
        %s4014 = smul.addr %s4013, 256
        %s4015 = scalar_lea.vmem [#allocation8], %s4014
        // Predicated region
        $region49: #{tpu_custom_call.1} parent=31 // pred_check
          %p4016 = pneg %p119
        $region50: #{tpu_custom_call.1} parent=31 // pred_check_branch
          %4018 = sbr.rel (%p4016) target = $region52
        $region51: #{tpu_custom_call.1} parent=31 // pred_region
          %s4019 = smul.u32 16, %s25
          %4021 = vsyncadd %s4012, 0
          %s4022 = smul.addr %s4019, 4
          %s4023 = smul.addr %s4022, 4
          %s4024 = scalar_lea.hbm %s3, %s4023
          %s4025 = sshll.u32 %s4015, 4
          %s4026 = int_to_ptr.vmem [resolvable:$true] %s4025
          %s4027 = sshll.u32 %s4024, 4
          %s4028 = int_to_ptr.hbm [resolvable:$true] %s4027
          %4033 = dma.vmem_to_hbm [thread:$0]  %s4026, 4096, %s4028, %s4012, 256, 256, 16
        $region52: #{tpu_custom_call.1} parent=31 // pred_fallthru
          _
      $region32: #{tpu_custom_call.1} parent=5 // pred_fallthru
        _
      %p4034 = scmp.le.s32.totalorder 2, %s16
      // Predicated region
      $region53: #{tpu_custom_call.1} parent=5 // pred_check
        %p4035 = pneg %p4034
      $region54: #{tpu_custom_call.1} parent=5 // pred_check_branch
        %4037 = sbr.rel (%p4035) target = $region56
      $region55: #{tpu_custom_call.1} parent=5 // pred_region
        %s4038 = ssub.s32 %s16, 2
        // Predicated region
        $region57: #{tpu_custom_call.1} parent=55 // pred_check
          %p4039 = pneg %p125
        $region58: #{tpu_custom_call.1} parent=55 // pred_check_branch
          %4041 = sbr.rel (%p4039) target = $region60
        $region59: #{tpu_custom_call.1} parent=55 // pred_region
          %s4042 = sand.u32 %s110, 1
          %s4043 = scalar_lea.sflag [#allocation5], %s4042
          %s4044 = sand.u32 %s110, 1
          %s4045 = smul.addr %s4044, 256
          %s4046 = scalar_lea.vmem [#allocation8], %s4045
          %4048 = dma.done %s4043, 4096
        $region60: #{tpu_custom_call.1} parent=55 // pred_fallthru
          _
      $region56: #{tpu_custom_call.1} parent=5 // pred_fallthru
        _
    $region6: #{tpu_custom_call.1} parent=1 // loop_footer
      %s20 = sadd.s32 1, %s16
    $region7: #{tpu_custom_call.1} parent=1 // loop_footer_branch
      %15 = sbr.rel target = $region3
    $region8: #{tpu_custom_call.1} parent=1 // loop_exit
      _
    %4049 = vsyncpa [#allocation4], 1
    %s4050 = scalar_lea.sflag [#allocation4], 1
    %4051 = vsyncpa %s4050, 1
    %4052 = vsyncpa [#allocation7], 1
    %4053 = vsyncpa [#allocation5], 1
    %s4054 = scalar_lea.sflag [#allocation5], 1
    %4055 = vsyncpa %s4054, 1

</llo_original>
